<compile_context>
chip_gen: v7x
topology: tpu7x:2x2x1
jax: 0.10.0
libtpu: 0.0.40
codegen_flags: <defaults>
</compile_context>

<pallas_src>
import functools

import jax
import jax.numpy as jnp
from jax.experimental import pallas as pl
from jax.experimental.pallas import tpu as pltpu

HIDDEN = 1024      # fixed by the module: Linear(1024 + 4 -> 1024)
BIE = 4            # bie_label feature dim
LANE = 128         # lane width; bie is padded 4 -> 128 for the MXU path
NUM_CLASSES = 2    # start/end layers: Linear(1024 -> 2)


def _round_up(x, m):
    return ((x + m - 1) // m) * m


def _bie_on_mxu_default():
    """Fold the K=4 bie path onto the MXU on v6e/v7x; keep it on the VPU on v5x."""
    try:
        kind = jax.devices()[0].device_kind.lower()
    except Exception:
        return True
    return "v5" not in kind


def _head_kernel(enc_ref, bie_ref,
                 w1e_ref, w1b_ref, b1_ref,
                 wse_ref, bse_ref,
                 out_ref, *, bie_on_mxu):
    """One row-tile of the MRC head: linear+tanh, fused start/end head, softmax."""
    # Main matmul on the MXU: bf16 inputs, f32 accumulation.
    h = jnp.dot(enc_ref[...], w1e_ref[...],
                preferred_element_type=jnp.float32)          # (tm, H) f32

    if bie_on_mxu:
        # bie lane-padded to 128 (zeros beyond column 3) -> exact small MXU pass.
        h = h + jnp.dot(bie_ref[...], w1b_ref[...],
                        preferred_element_type=jnp.float32)
    else:
        # v5x: kernel is MXU-bound, so 4 broadcast-FMAs in idle VALU slots are free.
        bie = bie_ref[:, 0:BIE].astype(jnp.float32)          # (tm, 4)
        w1b = w1b_ref[0:BIE, :].astype(jnp.float32)          # (4, H)
        for k in range(BIE):                                 # unrolled
            h = h + bie[:, k:k + 1] * w1b[k:k + 1, :]

    h = jnp.tanh(h + b1_ref[...])                            # bias broadcast over rows
    # nn.Dropout is identity at inference time -> no-op.

    # Fused start/end head: one (tm, H) @ (H, 4) matmul; columns = [s0, s1, e0, e1].
    logits = jnp.dot(h.astype(jnp.bfloat16), wse_ref[...],
                     preferred_element_type=jnp.float32) + bse_ref[...]

    # 2-class softmax == sigmoid of the logit difference: no cross-lane
    # reductions, exp on the EUP, divide via approx reciprocal (EUP slot),
    # P(class=0) = 1 - P(class=1) halves the exp work; single full-tile store.
    s0 = logits[:, 0:1]
    s1 = logits[:, 1:2]
    e0 = logits[:, 2:3]
    e1 = logits[:, 3:4]
    ps1 = pl.reciprocal(1.0 + jnp.exp(s0 - s1), approx=True)  # P(start=1)
    pe1 = pl.reciprocal(1.0 + jnp.exp(e0 - e1), approx=True)  # P(end=1)

    col = jax.lax.broadcasted_iota(jnp.int32, logits.shape, 1)   # (tm, 4) column ids
    p1 = jnp.where(col < NUM_CLASSES, ps1, pe1)                  # broadcast (tm,1)->(tm,4)
    out_ref[...] = jnp.where((col % 2) == 1, p1, 1.0 - p1)       # [1-ps1, ps1, 1-pe1, pe1]


@functools.partial(jax.jit, static_argnames=("tm", "bie_on_mxu"))
def mrc_head_pallas(enc, bie, w1, b1, ws, bs, we, be, *, tm=512, bie_on_mxu=True):
    """enc: (M, H), bie: (M, 4).  Returns (start_prob, end_prob), each (M, 2) f32."""
    M, H = enc.shape
    assert H == HIDDEN and bie.shape == (M, BIE)

    # Tile rows: big tiles amortize per-grid-step overhead; small M collapses
    # to a single just-fits tile (multiple of 8 for the sublane constraint).
    tm_eff = min(tm, _round_up(M, 8))
    m_pad = _round_up(M, tm_eff)

    # Encoder activations: bf16 MXU operands (cast is a no-op if already bf16).
    enc_bf = enc if enc.dtype == jnp.bfloat16 else enc.astype(jnp.bfloat16)
    if m_pad != M:
        enc_bf = jnp.pad(enc_bf, ((0, m_pad - M), (0, 0)))

    # bie: lane-pad 4 -> 128 (zeros), bf16.  Tiny array; used by both paths.
    bie128 = jnp.pad(bie.astype(jnp.bfloat16),
                     ((0, m_pad - M), (0, LANE - BIE)))

    # Weight preprocessing (runs once under jit, fused by XLA).
    w1e = w1[:H, :].astype(jnp.bfloat16)                      # (H, H)   encoder part
    w1b128 = jnp.pad(w1[H:, :].astype(jnp.bfloat16),          # (128, H) bie part (rows 4..127 zero)
                     ((0, LANE - BIE), (0, 0)))
    b1_2d = b1.reshape(1, H).astype(jnp.float32)
    wse = jnp.concatenate([ws, we], axis=1).astype(jnp.bfloat16)               # (H, 4) fused head
    bse = jnp.concatenate([bs, be], axis=0).reshape(1, 2 * NUM_CLASSES).astype(jnp.float32)

    grid = (m_pad // tm_eff,)
    row_spec = lambda shape: pl.BlockSpec(shape, lambda i: (i, 0))
    full_spec = lambda shape: pl.BlockSpec(shape, lambda i: (0, 0))

    kernel = functools.partial(_head_kernel, bie_on_mxu=bie_on_mxu)

    out = pl.pallas_call(
        kernel,
        out_shape=jax.ShapeDtypeStruct((m_pad, 2 * NUM_CLASSES), jnp.float32),
        grid_spec=pltpu.PrefetchScalarGridSpec(
            num_scalar_prefetch=0,
            grid=grid,
            in_specs=[
                row_spec((tm_eff, H)),                     # encoder_rep tile (bf16)
                row_spec((tm_eff, LANE)),                  # bie_label tile, lane-padded (bf16)
                full_spec((H, H)),                         # W1 encoder part  (bf16)
                full_spec((LANE, H)),                      # W1 bie part, row-padded (bf16)
                full_spec((1, H)),                         # b1
                full_spec((H, 2 * NUM_CLASSES)),           # fused [W_start | W_end]
                full_spec((1, 2 * NUM_CLASSES)),           # fused [b_start | b_end]
            ],
            out_specs=row_spec((tm_eff, 2 * NUM_CLASSES)), # [start_prob | end_prob] tile
        ),
        compiler_params=pltpu.CompilerParams(
            dimension_semantics=("parallel",),
            vmem_limit_bytes=32 * 1024 * 1024),
    )(enc_bf, bie128, w1e, w1b128, b1_2d, wse, bse)

    out = out[:M]
    return out[:, 0:NUM_CLASSES], out[:, NUM_CLASSES:2 * NUM_CLASSES]


def stand_in_encoder(input_ids, input_mask, input_seg, word_emb, type_emb):
    """Deterministic substitute for BertModel.from_pretrained (plain-JAX glue)."""
    rep = word_emb[input_ids] + type_emb[input_seg]          # (B, S, H), dtype of the tables
    return rep * input_mask[..., None].astype(rep.dtype)


def my_model_forward(params, input_ids, input_mask, input_seg, bie_label):
    B, S = input_ids.shape
    # Emit bf16 straight out of the stand-in encoder: no separate full-array
    # f32->bf16 pass over the (B*S, H) activations before the kernel.
    enc = stand_in_encoder(input_ids, input_mask, input_seg,
                           params["word_emb"].astype(jnp.bfloat16),
                           params["type_emb"].astype(jnp.bfloat16))
    enc_flat = enc.reshape(B * S, HIDDEN)
    bie_flat = bie_label.reshape(B * S, BIE).astype(jnp.float32)
    sp, ep = mrc_head_pallas(enc_flat, bie_flat,
                             params["w1"], params["b1"],
                             params["ws"], params["bs"],
                             params["we"], params["be"],
                             bie_on_mxu=_bie_on_mxu_default())
    return sp.reshape(B, S, NUM_CLASSES), ep.reshape(B, S, NUM_CLASSES)


def reference_forward(params, input_ids, input_mask, input_seg, bie_label):
    """Pure-JAX f32 reference mirroring the PyTorch forward (eval mode)."""
    enc = stand_in_encoder(input_ids, input_mask, input_seg,
                           params["word_emb"], params["type_emb"])
    x = jnp.concatenate([enc, bie_label.astype(enc.dtype)], axis=-1)
    h = jnp.tanh(x @ params["w1"] + params["b1"])
    sl = h @ params["ws"] + params["bs"]
    el = h @ params["we"] + params["be"]
    return jax.nn.softmax(sl, axis=-1), jax.nn.softmax(el, axis=-1)


def init_params(key, vocab=100, n_types=2):
    ks = jax.random.split(key, 8)
    def lin(k, fan_in, fan_out):
        bound = 1.0 / (fan_in ** 0.5)
        kw, kb = jax.random.split(k)
        w = jax.random.uniform(kw, (fan_in, fan_out), jnp.float32, -bound, bound)
        b = jax.random.uniform(kb, (fan_out,), jnp.float32, -bound, bound)
        return w, b
    w1, b1 = lin(ks[0], HIDDEN + BIE, HIDDEN)
    ws, bs = lin(ks[1], HIDDEN, NUM_CLASSES)
    we, be = lin(ks[2], HIDDEN, NUM_CLASSES)
    word_emb = 0.02 * jax.random.normal(ks[3], (vocab, HIDDEN), jnp.float32)
    type_emb = 0.02 * jax.random.normal(ks[4], (n_types, HIDDEN), jnp.float32)
    return dict(w1=w1, b1=b1, ws=ws, bs=bs, we=we, be=be,
                word_emb=word_emb, type_emb=type_emb)


if __name__ == "__main__":
    key = jax.random.PRNGKey(0)
    kp, k_ids, k_seg, k_bie = jax.random.split(key, 4)

    B, S = 2, 8
    params = init_params(kp)

    input_ids = jax.random.randint(k_ids, (B, S), 0, 100, dtype=jnp.int32)
    input_mask = jnp.ones((B, S), dtype=jnp.int32)
    input_seg = jax.random.randint(k_seg, (B, S), 0, 2, dtype=jnp.int32)
    bie_label = jax.random.uniform(k_bie, (B, S, BIE), dtype=jnp.float32)

    start_prob, end_prob = my_model_forward(params, input_ids, input_mask,
                                            input_seg, bie_label)
    jax.block_until_ready((start_prob, end_prob))

    sp_ref, ep_ref = reference_forward(params, input_ids, input_mask,
                                       input_seg, bie_label)
    assert start_prob.shape == (B, S, NUM_CLASSES)
    assert end_prob.shape == (B, S, NUM_CLASSES)
    # bf16 matmul inputs (f32 accumulation) + approx reciprocal -> relaxed
    # tolerance vs f32 reference.
    assert jnp.allclose(start_prob, sp_ref, atol=1e-2, rtol=1e-2)
    assert jnp.allclose(end_prob, ep_ref, atol=1e-2, rtol=1e-2)
    print("KERNEL_OK")
</pallas_src>

<mosaic_0001>
module attributes {stable_mosaic.version = 11 : i64} {
  func.func @_head_kernel(%arg0: i32, %arg1: memref<16x1024xbf16, #tpu.memory_space<vmem>>, %arg2: memref<16x128xbf16, #tpu.memory_space<vmem>>, %arg3: memref<1024x1024xbf16, #tpu.memory_space<vmem>>, %arg4: memref<128x1024xbf16, #tpu.memory_space<vmem>>, %arg5: memref<1x1024xf32, #tpu.memory_space<vmem>>, %arg6: memref<1024x4xbf16, #tpu.memory_space<vmem>>, %arg7: memref<1x4xf32, #tpu.memory_space<vmem>>, %arg8: memref<16x4xf32, #tpu.memory_space<vmem>>) attributes {dimension_semantics = [#tpu.dimension_semantics<parallel>], iteration_bounds = array<i64: 1>, scalar_prefetch = 0 : i64, scratch_operands = 0 : i64, tpu.core_type = #tpu.core_type<tc>, window_params = [{transform_indices = @transform_0, window_bounds = array<i64: 16, 1024>}, {transform_indices = @transform_1, window_bounds = array<i64: 16, 128>}, {pipeline_mode = #tpu.pipeline_mode<synchronous>, transform_indices = @transform_2, window_bounds = array<i64: 1024, 1024>}, {pipeline_mode = #tpu.pipeline_mode<synchronous>, transform_indices = @transform_3, window_bounds = array<i64: 128, 1024>}, {pipeline_mode = #tpu.pipeline_mode<synchronous>, transform_indices = @transform_4, window_bounds = array<i64: 1, 1024>}, {pipeline_mode = #tpu.pipeline_mode<synchronous>, transform_indices = @transform_5, window_bounds = array<i64: 1024, 4>}, {pipeline_mode = #tpu.pipeline_mode<synchronous>, transform_indices = @transform_6, window_bounds = array<i64: 1, 4>}, {transform_indices = @transform_7, window_bounds = array<i64: 16, 4>}]} {
    %c0 = arith.constant 0 : index
    %c0_0 = arith.constant 0 : index
    %0 = vector.load %arg1[%c0, %c0_0] : memref<16x1024xbf16, #tpu.memory_space<vmem>>, vector<16x1024xbf16>
    %c0_1 = arith.constant 0 : index
    %c0_2 = arith.constant 0 : index
    %1 = vector.load %arg3[%c0_1, %c0_2] : memref<1024x1024xbf16, #tpu.memory_space<vmem>>, vector<1024x1024xbf16>
    %cst = arith.constant dense<0.000000e+00> : vector<16x1024xf32>
    %2 = tpu.matmul %0, %1, %cst {dimension_numbers = #tpu.dot_dimension_numbers<[1], [0], [0], [1], [0, 0, 1, 1], [], []>} : vector<16x1024xbf16>, vector<1024x1024xbf16>, vector<16x1024xf32> -> vector<16x1024xf32>
    %c0_3 = arith.constant 0 : index
    %c0_4 = arith.constant 0 : index
    %3 = vector.load %arg2[%c0_3, %c0_4] : memref<16x128xbf16, #tpu.memory_space<vmem>>, vector<16x128xbf16>
    %c0_5 = arith.constant 0 : index
    %c0_6 = arith.constant 0 : index
    %4 = vector.load %arg4[%c0_5, %c0_6] : memref<128x1024xbf16, #tpu.memory_space<vmem>>, vector<128x1024xbf16>
    %cst_7 = arith.constant dense<0.000000e+00> : vector<16x1024xf32>
    %5 = tpu.matmul %3, %4, %cst_7 {dimension_numbers = #tpu.dot_dimension_numbers<[1], [0], [0], [1], [0, 0, 1, 1], [], []>} : vector<16x128xbf16>, vector<128x1024xbf16>, vector<16x1024xf32> -> vector<16x1024xf32>
    %6 = arith.addf %2, %5 : vector<16x1024xf32>
    %c0_8 = arith.constant 0 : index
    %c0_9 = arith.constant 0 : index
    %7 = vector.load %arg5[%c0_8, %c0_9] : memref<1x1024xf32, #tpu.memory_space<vmem>>, vector<1x1024xf32>
    %8 = vector.broadcast %7 : vector<1x1024xf32> to vector<16x1024xf32>
    %9 = arith.addf %6, %8 : vector<16x1024xf32>
    %10 = math.tanh %9 : vector<16x1024xf32>
    %11 = arith.truncf %10 : vector<16x1024xf32> to vector<16x1024xbf16>
    %c0_10 = arith.constant 0 : index
    %c0_11 = arith.constant 0 : index
    %12 = vector.load %arg6[%c0_10, %c0_11] : memref<1024x4xbf16, #tpu.memory_space<vmem>>, vector<1024x4xbf16>
    %cst_12 = arith.constant dense<0.000000e+00> : vector<16x4xf32>
    %13 = tpu.matmul %11, %12, %cst_12 {dimension_numbers = #tpu.dot_dimension_numbers<[1], [0], [0], [1], [0, 0, 1, 1], [], []>} : vector<16x1024xbf16>, vector<1024x4xbf16>, vector<16x4xf32> -> vector<16x4xf32>
    %c0_13 = arith.constant 0 : index
    %c0_14 = arith.constant 0 : index
    %14 = vector.load %arg7[%c0_13, %c0_14] : memref<1x4xf32, #tpu.memory_space<vmem>>, vector<1x4xf32>
    %15 = vector.broadcast %14 : vector<1x4xf32> to vector<16x4xf32>
    %16 = arith.addf %13, %15 : vector<16x4xf32>
    %17 = vector.extract_strided_slice %16 {offsets = [0, 0], sizes = [16, 1], strides = [1, 1]} : vector<16x4xf32> to vector<16x1xf32>
    %18 = vector.extract_strided_slice %16 {offsets = [0, 1], sizes = [16, 1], strides = [1, 1]} : vector<16x4xf32> to vector<16x1xf32>
    %19 = vector.extract_strided_slice %16 {offsets = [0, 2], sizes = [16, 1], strides = [1, 1]} : vector<16x4xf32> to vector<16x1xf32>
    %20 = vector.extract_strided_slice %16 {offsets = [0, 3], sizes = [16, 1], strides = [1, 1]} : vector<16x4xf32> to vector<16x1xf32>
    %21 = arith.subf %17, %18 : vector<16x1xf32>
    %22 = math.exp %21 : vector<16x1xf32>
    %cst_15 = arith.constant 1.000000e+00 : f32
    %23 = vector.broadcast %cst_15 : f32 to vector<16x1xf32>
    %24 = arith.addf %23, %22 : vector<16x1xf32>
    %25 = tpu.reciprocal %24 {approx = true} : vector<16x1xf32> -> vector<16x1xf32>
    %26 = arith.subf %19, %20 : vector<16x1xf32>
    %27 = math.exp %26 : vector<16x1xf32>
    %cst_16 = arith.constant 1.000000e+00 : f32
    %28 = vector.broadcast %cst_16 : f32 to vector<16x1xf32>
    %29 = arith.addf %28, %27 : vector<16x1xf32>
    %30 = tpu.reciprocal %29 {approx = true} : vector<16x1xf32> -> vector<16x1xf32>
    %31 = tpu.iota {dimensions = array<i32: 1>} : vector<16x4xi32>
    %c2_i32 = arith.constant 2 : i32
    %32 = vector.broadcast %c2_i32 : i32 to vector<16x4xi32>
    %33 = arith.cmpi slt, %31, %32 : vector<16x4xi32>
    %34 = vector.shape_cast %25 : vector<16x1xf32> to vector<16x1xf32>
    %35 = vector.broadcast %34 : vector<16x1xf32> to vector<16x4xf32>
    %36 = vector.shape_cast %30 : vector<16x1xf32> to vector<16x1xf32>
    %37 = vector.broadcast %36 : vector<16x1xf32> to vector<16x4xf32>
    %38 = arith.select %33, %35, %37 : vector<16x4xi1>, vector<16x4xf32>
    %c2_i32_17 = arith.constant 2 : i32
    %c0_i32 = arith.constant 0 : i32
    %39 = arith.cmpi eq, %c2_i32_17, %c0_i32 : i32
    %c1_i32 = arith.constant 1 : i32
    %40 = arith.select %39, %c1_i32, %c2_i32_17 : i32
    %41 = vector.broadcast %40 : i32 to vector<16x4xi32>
    %42 = arith.remsi %31, %41 : vector<16x4xi32>
    %c0_i32_18 = arith.constant 0 : i32
    %43 = vector.broadcast %c0_i32_18 : i32 to vector<16x4xi32>
    %44 = arith.cmpi ne, %42, %43 : vector<16x4xi32>
    %c0_i32_19 = arith.constant 0 : i32
    %45 = vector.broadcast %c0_i32_19 : i32 to vector<16x4xi32>
    %46 = arith.cmpi slt, %42, %45 : vector<16x4xi32>
    %c0_i32_20 = arith.constant 0 : i32
    %47 = arith.cmpi slt, %40, %c0_i32_20 : i32
    %48 = vector.broadcast %47 : i1 to vector<16x4xi1>
    %49 = vector.broadcast %48 : vector<16x4xi1> to vector<16x4xi1>
    %50 = arith.xori %46, %49 : vector<16x4xi1>
    %51 = arith.andi %50, %44 : vector<16x4xi1>
    %52 = vector.broadcast %40 : i32 to vector<16x4xi32>
    %53 = arith.addi %42, %52 : vector<16x4xi32>
    %54 = arith.select %51, %53, %42 : vector<16x4xi1>, vector<16x4xi32>
    %c1_i32_21 = arith.constant 1 : i32
    %55 = vector.broadcast %c1_i32_21 : i32 to vector<16x4xi32>
    %56 = arith.cmpi eq, %54, %55 : vector<16x4xi32>
    %cst_22 = arith.constant 1.000000e+00 : f32
    %57 = vector.broadcast %cst_22 : f32 to vector<16x4xf32>
    %58 = arith.subf %57, %38 : vector<16x4xf32>
    %59 = arith.select %56, %38, %58 : vector<16x4xi1>, vector<16x4xf32>
    %c0_23 = arith.constant 0 : index
    %c0_24 = arith.constant 0 : index
    %60 = vector.load %arg8[%c0_23, %c0_24] : memref<16x4xf32, #tpu.memory_space<vmem>>, vector<16x4xf32>
    tpu.vector_store %arg8[%c0_23, %c0_24], %59 {strides = array<i32>} : memref<16x4xf32, #tpu.memory_space<vmem>>, vector<16x4xf32>,
    return
  }
  func.func @transform_0(%arg0: i32) -> (i32, i32) {
    %c0_i32 = arith.constant 0 : i32
    %c0_i32_0 = arith.constant 0 : i32
    return %arg0, %c0_i32 : i32, i32
  }
  func.func @transform_1(%arg0: i32) -> (i32, i32) {
    %c0_i32 = arith.constant 0 : i32
    %c0_i32_0 = arith.constant 0 : i32
    return %arg0, %c0_i32 : i32, i32
  }
  func.func @transform_2(%arg0: i32) -> (i32, i32) {
    %c0_i32 = arith.constant 0 : i32
    %c0_i32_0 = arith.constant 0 : i32
    %c0_i32_1 = arith.constant 0 : i32
    return %c0_i32, %c0_i32_0 : i32, i32
  }
  func.func @transform_3(%arg0: i32) -> (i32, i32) {
    %c0_i32 = arith.constant 0 : i32
    %c0_i32_0 = arith.constant 0 : i32
    %c0_i32_1 = arith.constant 0 : i32
    return %c0_i32, %c0_i32_0 : i32, i32
  }
  func.func @transform_4(%arg0: i32) -> (i32, i32) {
    %c0_i32 = arith.constant 0 : i32
    %c0_i32_0 = arith.constant 0 : i32
    %c0_i32_1 = arith.constant 0 : i32
    return %c0_i32, %c0_i32_0 : i32, i32
  }
  func.func @transform_5(%arg0: i32) -> (i32, i32) {
    %c0_i32 = arith.constant 0 : i32
    %c0_i32_0 = arith.constant 0 : i32
    %c0_i32_1 = arith.constant 0 : i32
    return %c0_i32, %c0_i32_0 : i32, i32
  }
  func.func @transform_6(%arg0: i32) -> (i32, i32) {
    %c0_i32 = arith.constant 0 : i32
    %c0_i32_0 = arith.constant 0 : i32
    %c0_i32_1 = arith.constant 0 : i32
    return %c0_i32, %c0_i32_0 : i32, i32
  }
  func.func @transform_7(%arg0: i32) -> (i32, i32) {
    %c0_i32 = arith.constant 0 : i32
    %c0_i32_0 = arith.constant 0 : i32
    return %arg0, %c0_i32 : i32, i32
  }
}

</mosaic_0001>

<llo_original>
// kernel: mrc_head_pallas.1
$region0: #{mrc_head_pallas.1}
  #allocation0 [shape = 'u32[]', space=smem, size = 0x4, offset = 0x4, fixed_abs, tag = 'smem constant byte address 0x4 - core index']
  #allocation1 [shape = 'u32[144,128]{1,0:T(1,128)}', space=vmem, size = 0x12000, scoped, tag = 'internal scratch']
  %s0 = inlined_call_operand.vmem [shape: bf16[16,1024], index: 0, kind: input, shape index: {}]
  %s1 = inlined_call_operand.vmem [shape: bf16[16,128], index: 1, kind: input, shape index: {}]
  %s2 = inlined_call_operand.vmem [shape: bf16[1024,1024], index: 2, kind: input, shape index: {}]
  %s3 = inlined_call_operand.vmem [shape: bf16[128,1024], index: 3, kind: input, shape index: {}]
  %s4 = inlined_call_operand.vmem [shape: f32[1,1024], index: 4, kind: input, shape index: {}]
  %s5 = inlined_call_operand.vmem [shape: bf16[1024,4], index: 5, kind: input, shape index: {}]
  %s6 = inlined_call_operand.vmem [shape: f32[1,4], index: 6, kind: input, shape index: {}]
  %s7 = inlined_call_operand.vmem [shape: f32[16,4], index: 7, kind: output, shape index: {}]
  %s8 = sld [smem:[#allocation0]]
  $region38: #{mrc_head_pallas.1} parent=0
    _
  %s10 = ssub.s32 1, %s8
  %s11 = scalar_select 0, %s10, %s8
  // Predicated region
  $region2: #{mrc_head_pallas.1} parent=0 // pred_check
    _
  $region3: #{mrc_head_pallas.1} parent=0 // pred_check_branch
    %13 = sbr.rel (0) target = $region5
  $region4: #{mrc_head_pallas.1} parent=0 // pred_region
    _
  $region5: #{mrc_head_pallas.1} parent=0 // pred_fallthru
    _
  // Predicated region
  $region6: #{mrc_head_pallas.1} parent=0 // pred_check
    _
  $region7: #{mrc_head_pallas.1} parent=0 // pred_check_branch
    %15 = sbr.rel (0) target = $region9
  $region8: #{mrc_head_pallas.1} parent=0 // pred_region
    _
  $region9: #{mrc_head_pallas.1} parent=0 // pred_fallthru
    _
  // Predicated region
  $region10: #{mrc_head_pallas.1} parent=0 // pred_check
    _
  $region11: #{mrc_head_pallas.1} parent=0 // pred_check_branch
    %17 = sbr.rel (0) target = $region13
  $region12: #{mrc_head_pallas.1} parent=0 // pred_region
    _
  $region13: #{mrc_head_pallas.1} parent=0 // pred_fallthru
    _
  // Predicated region
  $region14: #{mrc_head_pallas.1} parent=0 // pred_check
    _
  $region15: #{mrc_head_pallas.1} parent=0 // pred_check_branch
    %19 = sbr.rel (0) target = $region17
  $region16: #{mrc_head_pallas.1} parent=0 // pred_region
    _
  $region17: #{mrc_head_pallas.1} parent=0 // pred_fallthru
    _
  // Predicated region
  $region18: #{mrc_head_pallas.1} parent=0 // pred_check
    _
  $region19: #{mrc_head_pallas.1} parent=0 // pred_check_branch
    %21 = sbr.rel (0) target = $region21
  $region20: #{mrc_head_pallas.1} parent=0 // pred_region
    _
  $region21: #{mrc_head_pallas.1} parent=0 // pred_fallthru
    _
  // Predicated region
  $region22: #{mrc_head_pallas.1} parent=0 // pred_check
    _
  $region23: #{mrc_head_pallas.1} parent=0 // pred_check_branch
    %23 = sbr.rel (0) target = $region25
  $region24: #{mrc_head_pallas.1} parent=0 // pred_region
    _
  $region25: #{mrc_head_pallas.1} parent=0 // pred_fallthru
    _
  // Predicated region
  $region26: #{mrc_head_pallas.1} parent=0 // pred_check
    _
  $region27: #{mrc_head_pallas.1} parent=0 // pred_check_branch
    %25 = sbr.rel (0) target = $region29
  $region28: #{mrc_head_pallas.1} parent=0 // pred_region
    _
  $region29: #{mrc_head_pallas.1} parent=0 // pred_fallthru
    _
  %v27 = vld [vmem:[%s0] sm:$0xff]
  %v28 = vld [vmem:[%s0 + $0x8] sm:$0xff]
  %v29 = vld [vmem:[%s0 + $0x10] sm:$0xff]
  %v30 = vld [vmem:[%s0 + $0x18] sm:$0xff]
  %v31 = vld [vmem:[%s0 + $0x20] sm:$0xff]
  %v32 = vld [vmem:[%s0 + $0x28] sm:$0xff]
  %v33 = vld [vmem:[%s0 + $0x30] sm:$0xff]
  %v34 = vld [vmem:[%s0 + $0x38] sm:$0xff]
  %v35 = vld [vmem:[%s2] sm:$0xff]
  %v36 = vld [vmem:[%s2 + $0x8] sm:$0xff]
  %v37 = vld [vmem:[%s2 + $0x10] sm:$0xff]
  %v38 = vld [vmem:[%s2 + $0x18] sm:$0xff]
  %v39 = vld [vmem:[%s2 + $0x20] sm:$0xff]
  %v40 = vld [vmem:[%s2 + $0x28] sm:$0xff]
  %v41 = vld [vmem:[%s2 + $0x30] sm:$0xff]
  %v42 = vld [vmem:[%s2 + $0x38] sm:$0xff]
  %v43 = vld [vmem:[%s2 + $0x40] sm:$0xff]
  %v44 = vld [vmem:[%s2 + $0x48] sm:$0xff]
  %v45 = vld [vmem:[%s2 + $0x50] sm:$0xff]
  %v46 = vld [vmem:[%s2 + $0x58] sm:$0xff]
  %v47 = vld [vmem:[%s2 + $0x60] sm:$0xff]
  %v48 = vld [vmem:[%s2 + $0x68] sm:$0xff]
  %v49 = vld [vmem:[%s2 + $0x70] sm:$0xff]
  %v50 = vld [vmem:[%s2 + $0x78] sm:$0xff]
  %v51 = vld [vmem:[%s2 + $0x80] sm:$0xff]
  %v52 = vld [vmem:[%s2 + $0x88] sm:$0xff]
  %v53 = vld [vmem:[%s2 + $0x90] sm:$0xff]
  %v54 = vld [vmem:[%s2 + $0x98] sm:$0xff]
  %v55 = vld [vmem:[%s2 + $0xa0] sm:$0xff]
  %v56 = vld [vmem:[%s2 + $0xa8] sm:$0xff]
  %v57 = vld [vmem:[%s2 + $0xb0] sm:$0xff]
  %v58 = vld [vmem:[%s2 + $0xb8] sm:$0xff]
  %v59 = vld [vmem:[%s2 + $0xc0] sm:$0xff]
  %v60 = vld [vmem:[%s2 + $0xc8] sm:$0xff]
  %v61 = vld [vmem:[%s2 + $0xd0] sm:$0xff]
  %v62 = vld [vmem:[%s2 + $0xd8] sm:$0xff]
  %v63 = vld [vmem:[%s2 + $0xe0] sm:$0xff]
  %v64 = vld [vmem:[%s2 + $0xe8] sm:$0xff]
  %v65 = vld [vmem:[%s2 + $0xf0] sm:$0xff]
  %v66 = vld [vmem:[%s2 + $0xf8] sm:$0xff]
  %v67 = vld [vmem:[%s2 + $0x100] sm:$0xff]
  %v68 = vld [vmem:[%s2 + $0x108] sm:$0xff]
  %v69 = vld [vmem:[%s2 + $0x110] sm:$0xff]
  %v70 = vld [vmem:[%s2 + $0x118] sm:$0xff]
  %v71 = vld [vmem:[%s2 + $0x120] sm:$0xff]
  %v72 = vld [vmem:[%s2 + $0x128] sm:$0xff]
  %v73 = vld [vmem:[%s2 + $0x130] sm:$0xff]
  %v74 = vld [vmem:[%s2 + $0x138] sm:$0xff]
  %v75 = vld [vmem:[%s2 + $0x140] sm:$0xff]
  %v76 = vld [vmem:[%s2 + $0x148] sm:$0xff]
  %v77 = vld [vmem:[%s2 + $0x150] sm:$0xff]
  %v78 = vld [vmem:[%s2 + $0x158] sm:$0xff]
  %v79 = vld [vmem:[%s2 + $0x160] sm:$0xff]
  %v80 = vld [vmem:[%s2 + $0x168] sm:$0xff]
  %v81 = vld [vmem:[%s2 + $0x170] sm:$0xff]
  %v82 = vld [vmem:[%s2 + $0x178] sm:$0xff]
  %v83 = vld [vmem:[%s2 + $0x180] sm:$0xff]
  %v84 = vld [vmem:[%s2 + $0x188] sm:$0xff]
  %v85 = vld [vmem:[%s2 + $0x190] sm:$0xff]
  %v86 = vld [vmem:[%s2 + $0x198] sm:$0xff]
  %v87 = vld [vmem:[%s2 + $0x1a0] sm:$0xff]
  %v88 = vld [vmem:[%s2 + $0x1a8] sm:$0xff]
  %v89 = vld [vmem:[%s2 + $0x1b0] sm:$0xff]
  %v90 = vld [vmem:[%s2 + $0x1b8] sm:$0xff]
  %v91 = vld [vmem:[%s2 + $0x1c0] sm:$0xff]
  %v92 = vld [vmem:[%s2 + $0x1c8] sm:$0xff]
  %v93 = vld [vmem:[%s2 + $0x1d0] sm:$0xff]
  %v94 = vld [vmem:[%s2 + $0x1d8] sm:$0xff]
  %v95 = vld [vmem:[%s2 + $0x1e0] sm:$0xff]
  %v96 = vld [vmem:[%s2 + $0x1e8] sm:$0xff]
  %v97 = vld [vmem:[%s2 + $0x1f0] sm:$0xff]
  %v98 = vld [vmem:[%s2 + $0x1f8] sm:$0xff]
  %v99 = vld [vmem:[%s2 + $0x200] sm:$0xff]
  %v100 = vld [vmem:[%s2 + $0x208] sm:$0xff]
  %v101 = vld [vmem:[%s2 + $0x210] sm:$0xff]
  %v102 = vld [vmem:[%s2 + $0x218] sm:$0xff]
  %v103 = vld [vmem:[%s2 + $0x220] sm:$0xff]
  %v104 = vld [vmem:[%s2 + $0x228] sm:$0xff]
  %v105 = vld [vmem:[%s2 + $0x230] sm:$0xff]
  %v106 = vld [vmem:[%s2 + $0x238] sm:$0xff]
  %v107 = vld [vmem:[%s2 + $0x240] sm:$0xff]
  %v108 = vld [vmem:[%s2 + $0x248] sm:$0xff]
  %v109 = vld [vmem:[%s2 + $0x250] sm:$0xff]
  %v110 = vld [vmem:[%s2 + $0x258] sm:$0xff]
  %v111 = vld [vmem:[%s2 + $0x260] sm:$0xff]
  %v112 = vld [vmem:[%s2 + $0x268] sm:$0xff]
  %v113 = vld [vmem:[%s2 + $0x270] sm:$0xff]
  %v114 = vld [vmem:[%s2 + $0x278] sm:$0xff]
  %v115 = vld [vmem:[%s2 + $0x280] sm:$0xff]
  %v116 = vld [vmem:[%s2 + $0x288] sm:$0xff]
  %v117 = vld [vmem:[%s2 + $0x290] sm:$0xff]
  %v118 = vld [vmem:[%s2 + $0x298] sm:$0xff]
  %v119 = vld [vmem:[%s2 + $0x2a0] sm:$0xff]
  %v120 = vld [vmem:[%s2 + $0x2a8] sm:$0xff]
  %v121 = vld [vmem:[%s2 + $0x2b0] sm:$0xff]
  %v122 = vld [vmem:[%s2 + $0x2b8] sm:$0xff]
  %v123 = vld [vmem:[%s2 + $0x2c0] sm:$0xff]
  %v124 = vld [vmem:[%s2 + $0x2c8] sm:$0xff]
  %v125 = vld [vmem:[%s2 + $0x2d0] sm:$0xff]
  %v126 = vld [vmem:[%s2 + $0x2d8] sm:$0xff]
  %v127 = vld [vmem:[%s2 + $0x2e0] sm:$0xff]
  %v128 = vld [vmem:[%s2 + $0x2e8] sm:$0xff]
  %v129 = vld [vmem:[%s2 + $0x2f0] sm:$0xff]
  %v130 = vld [vmem:[%s2 + $0x2f8] sm:$0xff]
  %v131 = vld [vmem:[%s2 + $0x300] sm:$0xff]
  %v132 = vld [vmem:[%s2 + $0x308] sm:$0xff]
  %v133 = vld [vmem:[%s2 + $0x310] sm:$0xff]
  %v134 = vld [vmem:[%s2 + $0x318] sm:$0xff]
  %v135 = vld [vmem:[%s2 + $0x320] sm:$0xff]
  %v136 = vld [vmem:[%s2 + $0x328] sm:$0xff]
  %v137 = vld [vmem:[%s2 + $0x330] sm:$0xff]
  %v138 = vld [vmem:[%s2 + $0x338] sm:$0xff]
  %v139 = vld [vmem:[%s2 + $0x340] sm:$0xff]
  %v140 = vld [vmem:[%s2 + $0x348] sm:$0xff]
  %v141 = vld [vmem:[%s2 + $0x350] sm:$0xff]
  %v142 = vld [vmem:[%s2 + $0x358] sm:$0xff]
  %v143 = vld [vmem:[%s2 + $0x360] sm:$0xff]
  %v144 = vld [vmem:[%s2 + $0x368] sm:$0xff]
  %v145 = vld [vmem:[%s2 + $0x370] sm:$0xff]
  %v146 = vld [vmem:[%s2 + $0x378] sm:$0xff]
  %v147 = vld [vmem:[%s2 + $0x380] sm:$0xff]
  %v148 = vld [vmem:[%s2 + $0x388] sm:$0xff]
  %v149 = vld [vmem:[%s2 + $0x390] sm:$0xff]
  %v150 = vld [vmem:[%s2 + $0x398] sm:$0xff]
  %v151 = vld [vmem:[%s2 + $0x3a0] sm:$0xff]
  %v152 = vld [vmem:[%s2 + $0x3a8] sm:$0xff]
  %v153 = vld [vmem:[%s2 + $0x3b0] sm:$0xff]
  %v154 = vld [vmem:[%s2 + $0x3b8] sm:$0xff]
  %v155 = vld [vmem:[%s2 + $0x3c0] sm:$0xff]
  %v156 = vld [vmem:[%s2 + $0x3c8] sm:$0xff]
  %v157 = vld [vmem:[%s2 + $0x3d0] sm:$0xff]
  %v158 = vld [vmem:[%s2 + $0x3d8] sm:$0xff]
  %v159 = vld [vmem:[%s2 + $0x3e0] sm:$0xff]
  %v160 = vld [vmem:[%s2 + $0x3e8] sm:$0xff]
  %v161 = vld [vmem:[%s2 + $0x3f0] sm:$0xff]
  %v162 = vld [vmem:[%s2 + $0x3f8] sm:$0xff]
  %v163 = vld [vmem:[%s2 + $0x400] sm:$0xff]
  %v164 = vld [vmem:[%s2 + $0x408] sm:$0xff]
  %v165 = vld [vmem:[%s2 + $0x410] sm:$0xff]
  %v166 = vld [vmem:[%s2 + $0x418] sm:$0xff]
  %v167 = vld [vmem:[%s2 + $0x420] sm:$0xff]
  %v168 = vld [vmem:[%s2 + $0x428] sm:$0xff]
  %v169 = vld [vmem:[%s2 + $0x430] sm:$0xff]
  %v170 = vld [vmem:[%s2 + $0x438] sm:$0xff]
  %v171 = vld [vmem:[%s2 + $0x440] sm:$0xff]
  %v172 = vld [vmem:[%s2 + $0x448] sm:$0xff]
  %v173 = vld [vmem:[%s2 + $0x450] sm:$0xff]
  %v174 = vld [vmem:[%s2 + $0x458] sm:$0xff]
  %v175 = vld [vmem:[%s2 + $0x460] sm:$0xff]
  %v176 = vld [vmem:[%s2 + $0x468] sm:$0xff]
  %v177 = vld [vmem:[%s2 + $0x470] sm:$0xff]
  %v178 = vld [vmem:[%s2 + $0x478] sm:$0xff]
  %v179 = vld [vmem:[%s2 + $0x480] sm:$0xff]
  %v180 = vld [vmem:[%s2 + $0x488] sm:$0xff]
  %v181 = vld [vmem:[%s2 + $0x490] sm:$0xff]
  %v182 = vld [vmem:[%s2 + $0x498] sm:$0xff]
  %v183 = vld [vmem:[%s2 + $0x4a0] sm:$0xff]
  %v184 = vld [vmem:[%s2 + $0x4a8] sm:$0xff]
  %v185 = vld [vmem:[%s2 + $0x4b0] sm:$0xff]
  %v186 = vld [vmem:[%s2 + $0x4b8] sm:$0xff]
  %v187 = vld [vmem:[%s2 + $0x4c0] sm:$0xff]
  %v188 = vld [vmem:[%s2 + $0x4c8] sm:$0xff]
  %v189 = vld [vmem:[%s2 + $0x4d0] sm:$0xff]
  %v190 = vld [vmem:[%s2 + $0x4d8] sm:$0xff]
  %v191 = vld [vmem:[%s2 + $0x4e0] sm:$0xff]
  %v192 = vld [vmem:[%s2 + $0x4e8] sm:$0xff]
  %v193 = vld [vmem:[%s2 + $0x4f0] sm:$0xff]
  %v194 = vld [vmem:[%s2 + $0x4f8] sm:$0xff]
  %v195 = vld [vmem:[%s2 + $0x500] sm:$0xff]
  %v196 = vld [vmem:[%s2 + $0x508] sm:$0xff]
  %v197 = vld [vmem:[%s2 + $0x510] sm:$0xff]
  %v198 = vld [vmem:[%s2 + $0x518] sm:$0xff]
  %v199 = vld [vmem:[%s2 + $0x520] sm:$0xff]
  %v200 = vld [vmem:[%s2 + $0x528] sm:$0xff]
  %v201 = vld [vmem:[%s2 + $0x530] sm:$0xff]
  %v202 = vld [vmem:[%s2 + $0x538] sm:$0xff]
  %v203 = vld [vmem:[%s2 + $0x540] sm:$0xff]
  %v204 = vld [vmem:[%s2 + $0x548] sm:$0xff]
  %v205 = vld [vmem:[%s2 + $0x550] sm:$0xff]
  %v206 = vld [vmem:[%s2 + $0x558] sm:$0xff]
  %v207 = vld [vmem:[%s2 + $0x560] sm:$0xff]
  %v208 = vld [vmem:[%s2 + $0x568] sm:$0xff]
  %v209 = vld [vmem:[%s2 + $0x570] sm:$0xff]
  %v210 = vld [vmem:[%s2 + $0x578] sm:$0xff]
  %v211 = vld [vmem:[%s2 + $0x580] sm:$0xff]
  %v212 = vld [vmem:[%s2 + $0x588] sm:$0xff]
  %v213 = vld [vmem:[%s2 + $0x590] sm:$0xff]
  %v214 = vld [vmem:[%s2 + $0x598] sm:$0xff]
  %v215 = vld [vmem:[%s2 + $0x5a0] sm:$0xff]
  %v216 = vld [vmem:[%s2 + $0x5a8] sm:$0xff]
  %v217 = vld [vmem:[%s2 + $0x5b0] sm:$0xff]
  %v218 = vld [vmem:[%s2 + $0x5b8] sm:$0xff]
  %v219 = vld [vmem:[%s2 + $0x5c0] sm:$0xff]
  %v220 = vld [vmem:[%s2 + $0x5c8] sm:$0xff]
  %v221 = vld [vmem:[%s2 + $0x5d0] sm:$0xff]
  %v222 = vld [vmem:[%s2 + $0x5d8] sm:$0xff]
  %v223 = vld [vmem:[%s2 + $0x5e0] sm:$0xff]
  %v224 = vld [vmem:[%s2 + $0x5e8] sm:$0xff]
  %v225 = vld [vmem:[%s2 + $0x5f0] sm:$0xff]
  %v226 = vld [vmem:[%s2 + $0x5f8] sm:$0xff]
  %v227 = vld [vmem:[%s2 + $0x600] sm:$0xff]
  %v228 = vld [vmem:[%s2 + $0x608] sm:$0xff]
  %v229 = vld [vmem:[%s2 + $0x610] sm:$0xff]
  %v230 = vld [vmem:[%s2 + $0x618] sm:$0xff]
  %v231 = vld [vmem:[%s2 + $0x620] sm:$0xff]
  %v232 = vld [vmem:[%s2 + $0x628] sm:$0xff]
  %v233 = vld [vmem:[%s2 + $0x630] sm:$0xff]
  %v234 = vld [vmem:[%s2 + $0x638] sm:$0xff]
  %v235 = vld [vmem:[%s2 + $0x640] sm:$0xff]
  %v236 = vld [vmem:[%s2 + $0x648] sm:$0xff]
  %v237 = vld [vmem:[%s2 + $0x650] sm:$0xff]
  %v238 = vld [vmem:[%s2 + $0x658] sm:$0xff]
  %v239 = vld [vmem:[%s2 + $0x660] sm:$0xff]
  %v240 = vld [vmem:[%s2 + $0x668] sm:$0xff]
  %v241 = vld [vmem:[%s2 + $0x670] sm:$0xff]
  %v242 = vld [vmem:[%s2 + $0x678] sm:$0xff]
  %v243 = vld [vmem:[%s2 + $0x680] sm:$0xff]
  %v244 = vld [vmem:[%s2 + $0x688] sm:$0xff]
  %v245 = vld [vmem:[%s2 + $0x690] sm:$0xff]
  %v246 = vld [vmem:[%s2 + $0x698] sm:$0xff]
  %v247 = vld [vmem:[%s2 + $0x6a0] sm:$0xff]
  %v248 = vld [vmem:[%s2 + $0x6a8] sm:$0xff]
  %v249 = vld [vmem:[%s2 + $0x6b0] sm:$0xff]
  %v250 = vld [vmem:[%s2 + $0x6b8] sm:$0xff]
  %v251 = vld [vmem:[%s2 + $0x6c0] sm:$0xff]
  %v252 = vld [vmem:[%s2 + $0x6c8] sm:$0xff]
  %v253 = vld [vmem:[%s2 + $0x6d0] sm:$0xff]
  %v254 = vld [vmem:[%s2 + $0x6d8] sm:$0xff]
  %v255 = vld [vmem:[%s2 + $0x6e0] sm:$0xff]
  %v256 = vld [vmem:[%s2 + $0x6e8] sm:$0xff]
  %v257 = vld [vmem:[%s2 + $0x6f0] sm:$0xff]
  %v258 = vld [vmem:[%s2 + $0x6f8] sm:$0xff]
  %v259 = vld [vmem:[%s2 + $0x700] sm:$0xff]
  %v260 = vld [vmem:[%s2 + $0x708] sm:$0xff]
  %v261 = vld [vmem:[%s2 + $0x710] sm:$0xff]
  %v262 = vld [vmem:[%s2 + $0x718] sm:$0xff]
  %v263 = vld [vmem:[%s2 + $0x720] sm:$0xff]
  %v264 = vld [vmem:[%s2 + $0x728] sm:$0xff]
  %v265 = vld [vmem:[%s2 + $0x730] sm:$0xff]
  %v266 = vld [vmem:[%s2 + $0x738] sm:$0xff]
  %v267 = vld [vmem:[%s2 + $0x740] sm:$0xff]
  %v268 = vld [vmem:[%s2 + $0x748] sm:$0xff]
  %v269 = vld [vmem:[%s2 + $0x750] sm:$0xff]
  %v270 = vld [vmem:[%s2 + $0x758] sm:$0xff]
  %v271 = vld [vmem:[%s2 + $0x760] sm:$0xff]
  %v272 = vld [vmem:[%s2 + $0x768] sm:$0xff]
  %v273 = vld [vmem:[%s2 + $0x770] sm:$0xff]
  %v274 = vld [vmem:[%s2 + $0x778] sm:$0xff]
  %v275 = vld [vmem:[%s2 + $0x780] sm:$0xff]
  %v276 = vld [vmem:[%s2 + $0x788] sm:$0xff]
  %v277 = vld [vmem:[%s2 + $0x790] sm:$0xff]
  %v278 = vld [vmem:[%s2 + $0x798] sm:$0xff]
  %v279 = vld [vmem:[%s2 + $0x7a0] sm:$0xff]
  %v280 = vld [vmem:[%s2 + $0x7a8] sm:$0xff]
  %v281 = vld [vmem:[%s2 + $0x7b0] sm:$0xff]
  %v282 = vld [vmem:[%s2 + $0x7b8] sm:$0xff]
  %v283 = vld [vmem:[%s2 + $0x7c0] sm:$0xff]
  %v284 = vld [vmem:[%s2 + $0x7c8] sm:$0xff]
  %v285 = vld [vmem:[%s2 + $0x7d0] sm:$0xff]
  %v286 = vld [vmem:[%s2 + $0x7d8] sm:$0xff]
  %v287 = vld [vmem:[%s2 + $0x7e0] sm:$0xff]
  %v288 = vld [vmem:[%s2 + $0x7e8] sm:$0xff]
  %v289 = vld [vmem:[%s2 + $0x7f0] sm:$0xff]
  %v290 = vld [vmem:[%s2 + $0x7f8] sm:$0xff]
  %v291 = vld [vmem:[%s2 + $0x800] sm:$0xff]
  %v292 = vld [vmem:[%s2 + $0x808] sm:$0xff]
  %v293 = vld [vmem:[%s2 + $0x810] sm:$0xff]
  %v294 = vld [vmem:[%s2 + $0x818] sm:$0xff]
  %v295 = vld [vmem:[%s2 + $0x820] sm:$0xff]
  %v296 = vld [vmem:[%s2 + $0x828] sm:$0xff]
  %v297 = vld [vmem:[%s2 + $0x830] sm:$0xff]
  %v298 = vld [vmem:[%s2 + $0x838] sm:$0xff]
  %v299 = vld [vmem:[%s2 + $0x840] sm:$0xff]
  %v300 = vld [vmem:[%s2 + $0x848] sm:$0xff]
  %v301 = vld [vmem:[%s2 + $0x850] sm:$0xff]
  %v302 = vld [vmem:[%s2 + $0x858] sm:$0xff]
  %v303 = vld [vmem:[%s2 + $0x860] sm:$0xff]
  %v304 = vld [vmem:[%s2 + $0x868] sm:$0xff]
  %v305 = vld [vmem:[%s2 + $0x870] sm:$0xff]
  %v306 = vld [vmem:[%s2 + $0x878] sm:$0xff]
  %v307 = vld [vmem:[%s2 + $0x880] sm:$0xff]
  %v308 = vld [vmem:[%s2 + $0x888] sm:$0xff]
  %v309 = vld [vmem:[%s2 + $0x890] sm:$0xff]
  %v310 = vld [vmem:[%s2 + $0x898] sm:$0xff]
  %v311 = vld [vmem:[%s2 + $0x8a0] sm:$0xff]
  %v312 = vld [vmem:[%s2 + $0x8a8] sm:$0xff]
  %v313 = vld [vmem:[%s2 + $0x8b0] sm:$0xff]
  %v314 = vld [vmem:[%s2 + $0x8b8] sm:$0xff]
  %v315 = vld [vmem:[%s2 + $0x8c0] sm:$0xff]
  %v316 = vld [vmem:[%s2 + $0x8c8] sm:$0xff]
  %v317 = vld [vmem:[%s2 + $0x8d0] sm:$0xff]
  %v318 = vld [vmem:[%s2 + $0x8d8] sm:$0xff]
  %v319 = vld [vmem:[%s2 + $0x8e0] sm:$0xff]
  %v320 = vld [vmem:[%s2 + $0x8e8] sm:$0xff]
  %v321 = vld [vmem:[%s2 + $0x8f0] sm:$0xff]
  %v322 = vld [vmem:[%s2 + $0x8f8] sm:$0xff]
  %v323 = vld [vmem:[%s2 + $0x900] sm:$0xff]
  %v324 = vld [vmem:[%s2 + $0x908] sm:$0xff]
  %v325 = vld [vmem:[%s2 + $0x910] sm:$0xff]
  %v326 = vld [vmem:[%s2 + $0x918] sm:$0xff]
  %v327 = vld [vmem:[%s2 + $0x920] sm:$0xff]
  %v328 = vld [vmem:[%s2 + $0x928] sm:$0xff]
  %v329 = vld [vmem:[%s2 + $0x930] sm:$0xff]
  %v330 = vld [vmem:[%s2 + $0x938] sm:$0xff]
  %v331 = vld [vmem:[%s2 + $0x940] sm:$0xff]
  %v332 = vld [vmem:[%s2 + $0x948] sm:$0xff]
  %v333 = vld [vmem:[%s2 + $0x950] sm:$0xff]
  %v334 = vld [vmem:[%s2 + $0x958] sm:$0xff]
  %v335 = vld [vmem:[%s2 + $0x960] sm:$0xff]
  %v336 = vld [vmem:[%s2 + $0x968] sm:$0xff]
  %v337 = vld [vmem:[%s2 + $0x970] sm:$0xff]
  %v338 = vld [vmem:[%s2 + $0x978] sm:$0xff]
  %v339 = vld [vmem:[%s2 + $0x980] sm:$0xff]
  %v340 = vld [vmem:[%s2 + $0x988] sm:$0xff]
  %v341 = vld [vmem:[%s2 + $0x990] sm:$0xff]
  %v342 = vld [vmem:[%s2 + $0x998] sm:$0xff]
  %v343 = vld [vmem:[%s2 + $0x9a0] sm:$0xff]
  %v344 = vld [vmem:[%s2 + $0x9a8] sm:$0xff]
  %v345 = vld [vmem:[%s2 + $0x9b0] sm:$0xff]
  %v346 = vld [vmem:[%s2 + $0x9b8] sm:$0xff]
  %v347 = vld [vmem:[%s2 + $0x9c0] sm:$0xff]
  %v348 = vld [vmem:[%s2 + $0x9c8] sm:$0xff]
  %v349 = vld [vmem:[%s2 + $0x9d0] sm:$0xff]
  %v350 = vld [vmem:[%s2 + $0x9d8] sm:$0xff]
  %v351 = vld [vmem:[%s2 + $0x9e0] sm:$0xff]
  %v352 = vld [vmem:[%s2 + $0x9e8] sm:$0xff]
  %v353 = vld [vmem:[%s2 + $0x9f0] sm:$0xff]
  %v354 = vld [vmem:[%s2 + $0x9f8] sm:$0xff]
  %v355 = vld [vmem:[%s2 + $0xa00] sm:$0xff]
  %v356 = vld [vmem:[%s2 + $0xa08] sm:$0xff]
  %v357 = vld [vmem:[%s2 + $0xa10] sm:$0xff]
  %v358 = vld [vmem:[%s2 + $0xa18] sm:$0xff]
  %v359 = vld [vmem:[%s2 + $0xa20] sm:$0xff]
  %v360 = vld [vmem:[%s2 + $0xa28] sm:$0xff]
  %v361 = vld [vmem:[%s2 + $0xa30] sm:$0xff]
  %v362 = vld [vmem:[%s2 + $0xa38] sm:$0xff]
  %v363 = vld [vmem:[%s2 + $0xa40] sm:$0xff]
  %v364 = vld [vmem:[%s2 + $0xa48] sm:$0xff]
  %v365 = vld [vmem:[%s2 + $0xa50] sm:$0xff]
  %v366 = vld [vmem:[%s2 + $0xa58] sm:$0xff]
  %v367 = vld [vmem:[%s2 + $0xa60] sm:$0xff]
  %v368 = vld [vmem:[%s2 + $0xa68] sm:$0xff]
  %v369 = vld [vmem:[%s2 + $0xa70] sm:$0xff]
  %v370 = vld [vmem:[%s2 + $0xa78] sm:$0xff]
  %v371 = vld [vmem:[%s2 + $0xa80] sm:$0xff]
  %v372 = vld [vmem:[%s2 + $0xa88] sm:$0xff]
  %v373 = vld [vmem:[%s2 + $0xa90] sm:$0xff]
  %v374 = vld [vmem:[%s2 + $0xa98] sm:$0xff]
  %v375 = vld [vmem:[%s2 + $0xaa0] sm:$0xff]
  %v376 = vld [vmem:[%s2 + $0xaa8] sm:$0xff]
  %v377 = vld [vmem:[%s2 + $0xab0] sm:$0xff]
  %v378 = vld [vmem:[%s2 + $0xab8] sm:$0xff]
  %v379 = vld [vmem:[%s2 + $0xac0] sm:$0xff]
  %v380 = vld [vmem:[%s2 + $0xac8] sm:$0xff]
  %v381 = vld [vmem:[%s2 + $0xad0] sm:$0xff]
  %v382 = vld [vmem:[%s2 + $0xad8] sm:$0xff]
  %v383 = vld [vmem:[%s2 + $0xae0] sm:$0xff]
  %v384 = vld [vmem:[%s2 + $0xae8] sm:$0xff]
  %v385 = vld [vmem:[%s2 + $0xaf0] sm:$0xff]
  %v386 = vld [vmem:[%s2 + $0xaf8] sm:$0xff]
  %v387 = vld [vmem:[%s2 + $0xb00] sm:$0xff]
  %v388 = vld [vmem:[%s2 + $0xb08] sm:$0xff]
  %v389 = vld [vmem:[%s2 + $0xb10] sm:$0xff]
  %v390 = vld [vmem:[%s2 + $0xb18] sm:$0xff]
  %v391 = vld [vmem:[%s2 + $0xb20] sm:$0xff]
  %v392 = vld [vmem:[%s2 + $0xb28] sm:$0xff]
  %v393 = vld [vmem:[%s2 + $0xb30] sm:$0xff]
  %v394 = vld [vmem:[%s2 + $0xb38] sm:$0xff]
  %v395 = vld [vmem:[%s2 + $0xb40] sm:$0xff]
  %v396 = vld [vmem:[%s2 + $0xb48] sm:$0xff]
  %v397 = vld [vmem:[%s2 + $0xb50] sm:$0xff]
  %v398 = vld [vmem:[%s2 + $0xb58] sm:$0xff]
  %v399 = vld [vmem:[%s2 + $0xb60] sm:$0xff]
  %v400 = vld [vmem:[%s2 + $0xb68] sm:$0xff]
  %v401 = vld [vmem:[%s2 + $0xb70] sm:$0xff]
  %v402 = vld [vmem:[%s2 + $0xb78] sm:$0xff]
  %v403 = vld [vmem:[%s2 + $0xb80] sm:$0xff]
  %v404 = vld [vmem:[%s2 + $0xb88] sm:$0xff]
  %v405 = vld [vmem:[%s2 + $0xb90] sm:$0xff]
  %v406 = vld [vmem:[%s2 + $0xb98] sm:$0xff]
  %v407 = vld [vmem:[%s2 + $0xba0] sm:$0xff]
  %v408 = vld [vmem:[%s2 + $0xba8] sm:$0xff]
  %v409 = vld [vmem:[%s2 + $0xbb0] sm:$0xff]
  %v410 = vld [vmem:[%s2 + $0xbb8] sm:$0xff]
  %v411 = vld [vmem:[%s2 + $0xbc0] sm:$0xff]
  %v412 = vld [vmem:[%s2 + $0xbc8] sm:$0xff]
  %v413 = vld [vmem:[%s2 + $0xbd0] sm:$0xff]
  %v414 = vld [vmem:[%s2 + $0xbd8] sm:$0xff]
  %v415 = vld [vmem:[%s2 + $0xbe0] sm:$0xff]
  %v416 = vld [vmem:[%s2 + $0xbe8] sm:$0xff]
  %v417 = vld [vmem:[%s2 + $0xbf0] sm:$0xff]
  %v418 = vld [vmem:[%s2 + $0xbf8] sm:$0xff]
  %v419 = vld [vmem:[%s2 + $0xc00] sm:$0xff]
  %v420 = vld [vmem:[%s2 + $0xc08] sm:$0xff]
  %v421 = vld [vmem:[%s2 + $0xc10] sm:$0xff]
  %v422 = vld [vmem:[%s2 + $0xc18] sm:$0xff]
  %v423 = vld [vmem:[%s2 + $0xc20] sm:$0xff]
  %v424 = vld [vmem:[%s2 + $0xc28] sm:$0xff]
  %v425 = vld [vmem:[%s2 + $0xc30] sm:$0xff]
  %v426 = vld [vmem:[%s2 + $0xc38] sm:$0xff]
  %v427 = vld [vmem:[%s2 + $0xc40] sm:$0xff]
  %v428 = vld [vmem:[%s2 + $0xc48] sm:$0xff]
  %v429 = vld [vmem:[%s2 + $0xc50] sm:$0xff]
  %v430 = vld [vmem:[%s2 + $0xc58] sm:$0xff]
  %v431 = vld [vmem:[%s2 + $0xc60] sm:$0xff]
  %v432 = vld [vmem:[%s2 + $0xc68] sm:$0xff]
  %v433 = vld [vmem:[%s2 + $0xc70] sm:$0xff]
  %v434 = vld [vmem:[%s2 + $0xc78] sm:$0xff]
  %v435 = vld [vmem:[%s2 + $0xc80] sm:$0xff]
  %v436 = vld [vmem:[%s2 + $0xc88] sm:$0xff]
  %v437 = vld [vmem:[%s2 + $0xc90] sm:$0xff]
  %v438 = vld [vmem:[%s2 + $0xc98] sm:$0xff]
  %v439 = vld [vmem:[%s2 + $0xca0] sm:$0xff]
  %v440 = vld [vmem:[%s2 + $0xca8] sm:$0xff]
  %v441 = vld [vmem:[%s2 + $0xcb0] sm:$0xff]
  %v442 = vld [vmem:[%s2 + $0xcb8] sm:$0xff]
  %v443 = vld [vmem:[%s2 + $0xcc0] sm:$0xff]
  %v444 = vld [vmem:[%s2 + $0xcc8] sm:$0xff]
  %v445 = vld [vmem:[%s2 + $0xcd0] sm:$0xff]
  %v446 = vld [vmem:[%s2 + $0xcd8] sm:$0xff]
  %v447 = vld [vmem:[%s2 + $0xce0] sm:$0xff]
  %v448 = vld [vmem:[%s2 + $0xce8] sm:$0xff]
  %v449 = vld [vmem:[%s2 + $0xcf0] sm:$0xff]
  %v450 = vld [vmem:[%s2 + $0xcf8] sm:$0xff]
  %v451 = vld [vmem:[%s2 + $0xd00] sm:$0xff]
  %v452 = vld [vmem:[%s2 + $0xd08] sm:$0xff]
  %v453 = vld [vmem:[%s2 + $0xd10] sm:$0xff]
  %v454 = vld [vmem:[%s2 + $0xd18] sm:$0xff]
  %v455 = vld [vmem:[%s2 + $0xd20] sm:$0xff]
  %v456 = vld [vmem:[%s2 + $0xd28] sm:$0xff]
  %v457 = vld [vmem:[%s2 + $0xd30] sm:$0xff]
  %v458 = vld [vmem:[%s2 + $0xd38] sm:$0xff]
  %v459 = vld [vmem:[%s2 + $0xd40] sm:$0xff]
  %v460 = vld [vmem:[%s2 + $0xd48] sm:$0xff]
  %v461 = vld [vmem:[%s2 + $0xd50] sm:$0xff]
  %v462 = vld [vmem:[%s2 + $0xd58] sm:$0xff]
  %v463 = vld [vmem:[%s2 + $0xd60] sm:$0xff]
  %v464 = vld [vmem:[%s2 + $0xd68] sm:$0xff]
  %v465 = vld [vmem:[%s2 + $0xd70] sm:$0xff]
  %v466 = vld [vmem:[%s2 + $0xd78] sm:$0xff]
  %v467 = vld [vmem:[%s2 + $0xd80] sm:$0xff]
  %v468 = vld [vmem:[%s2 + $0xd88] sm:$0xff]
  %v469 = vld [vmem:[%s2 + $0xd90] sm:$0xff]
  %v470 = vld [vmem:[%s2 + $0xd98] sm:$0xff]
  %v471 = vld [vmem:[%s2 + $0xda0] sm:$0xff]
  %v472 = vld [vmem:[%s2 + $0xda8] sm:$0xff]
  %v473 = vld [vmem:[%s2 + $0xdb0] sm:$0xff]
  %v474 = vld [vmem:[%s2 + $0xdb8] sm:$0xff]
  %v475 = vld [vmem:[%s2 + $0xdc0] sm:$0xff]
  %v476 = vld [vmem:[%s2 + $0xdc8] sm:$0xff]
  %v477 = vld [vmem:[%s2 + $0xdd0] sm:$0xff]
  %v478 = vld [vmem:[%s2 + $0xdd8] sm:$0xff]
  %v479 = vld [vmem:[%s2 + $0xde0] sm:$0xff]
  %v480 = vld [vmem:[%s2 + $0xde8] sm:$0xff]
  %v481 = vld [vmem:[%s2 + $0xdf0] sm:$0xff]
  %v482 = vld [vmem:[%s2 + $0xdf8] sm:$0xff]
  %v483 = vld [vmem:[%s2 + $0xe00] sm:$0xff]
  %v484 = vld [vmem:[%s2 + $0xe08] sm:$0xff]
  %v485 = vld [vmem:[%s2 + $0xe10] sm:$0xff]
  %v486 = vld [vmem:[%s2 + $0xe18] sm:$0xff]
  %v487 = vld [vmem:[%s2 + $0xe20] sm:$0xff]
  %v488 = vld [vmem:[%s2 + $0xe28] sm:$0xff]
  %v489 = vld [vmem:[%s2 + $0xe30] sm:$0xff]
  %v490 = vld [vmem:[%s2 + $0xe38] sm:$0xff]
  %v491 = vld [vmem:[%s2 + $0xe40] sm:$0xff]
  %v492 = vld [vmem:[%s2 + $0xe48] sm:$0xff]
  %v493 = vld [vmem:[%s2 + $0xe50] sm:$0xff]
  %v494 = vld [vmem:[%s2 + $0xe58] sm:$0xff]
  %v495 = vld [vmem:[%s2 + $0xe60] sm:$0xff]
  %v496 = vld [vmem:[%s2 + $0xe68] sm:$0xff]
  %v497 = vld [vmem:[%s2 + $0xe70] sm:$0xff]
  %v498 = vld [vmem:[%s2 + $0xe78] sm:$0xff]
  %v499 = vld [vmem:[%s2 + $0xe80] sm:$0xff]
  %v500 = vld [vmem:[%s2 + $0xe88] sm:$0xff]
  %v501 = vld [vmem:[%s2 + $0xe90] sm:$0xff]
  %v502 = vld [vmem:[%s2 + $0xe98] sm:$0xff]
  %v503 = vld [vmem:[%s2 + $0xea0] sm:$0xff]
  %v504 = vld [vmem:[%s2 + $0xea8] sm:$0xff]
  %v505 = vld [vmem:[%s2 + $0xeb0] sm:$0xff]
  %v506 = vld [vmem:[%s2 + $0xeb8] sm:$0xff]
  %v507 = vld [vmem:[%s2 + $0xec0] sm:$0xff]
  %v508 = vld [vmem:[%s2 + $0xec8] sm:$0xff]
  %v509 = vld [vmem:[%s2 + $0xed0] sm:$0xff]
  %v510 = vld [vmem:[%s2 + $0xed8] sm:$0xff]
  %v511 = vld [vmem:[%s2 + $0xee0] sm:$0xff]
  %v512 = vld [vmem:[%s2 + $0xee8] sm:$0xff]
  %v513 = vld [vmem:[%s2 + $0xef0] sm:$0xff]
  %v514 = vld [vmem:[%s2 + $0xef8] sm:$0xff]
  %v515 = vld [vmem:[%s2 + $0xf00] sm:$0xff]
  %v516 = vld [vmem:[%s2 + $0xf08] sm:$0xff]
  %v517 = vld [vmem:[%s2 + $0xf10] sm:$0xff]
  %v518 = vld [vmem:[%s2 + $0xf18] sm:$0xff]
  %v519 = vld [vmem:[%s2 + $0xf20] sm:$0xff]
  %v520 = vld [vmem:[%s2 + $0xf28] sm:$0xff]
  %v521 = vld [vmem:[%s2 + $0xf30] sm:$0xff]
  %v522 = vld [vmem:[%s2 + $0xf38] sm:$0xff]
  %v523 = vld [vmem:[%s2 + $0xf40] sm:$0xff]
  %v524 = vld [vmem:[%s2 + $0xf48] sm:$0xff]
  %v525 = vld [vmem:[%s2 + $0xf50] sm:$0xff]
  %v526 = vld [vmem:[%s2 + $0xf58] sm:$0xff]
  %v527 = vld [vmem:[%s2 + $0xf60] sm:$0xff]
  %v528 = vld [vmem:[%s2 + $0xf68] sm:$0xff]
  %v529 = vld [vmem:[%s2 + $0xf70] sm:$0xff]
  %v530 = vld [vmem:[%s2 + $0xf78] sm:$0xff]
  %v531 = vld [vmem:[%s2 + $0xf80] sm:$0xff]
  %v532 = vld [vmem:[%s2 + $0xf88] sm:$0xff]
  %v533 = vld [vmem:[%s2 + $0xf90] sm:$0xff]
  %v534 = vld [vmem:[%s2 + $0xf98] sm:$0xff]
  %v535 = vld [vmem:[%s2 + $0xfa0] sm:$0xff]
  %v536 = vld [vmem:[%s2 + $0xfa8] sm:$0xff]
  %v537 = vld [vmem:[%s2 + $0xfb0] sm:$0xff]
  %v538 = vld [vmem:[%s2 + $0xfb8] sm:$0xff]
  %v539 = vld [vmem:[%s2 + $0xfc0] sm:$0xff]
  %v540 = vld [vmem:[%s2 + $0xfc8] sm:$0xff]
  %v541 = vld [vmem:[%s2 + $0xfd0] sm:$0xff]
  %v542 = vld [vmem:[%s2 + $0xfd8] sm:$0xff]
  %v543 = vld [vmem:[%s2 + $0xfe0] sm:$0xff]
  %v544 = vld [vmem:[%s2 + $0xfe8] sm:$0xff]
  %v545 = vld [vmem:[%s2 + $0xff0] sm:$0xff]
  %v546 = vld [vmem:[%s2 + $0xff8] sm:$0xff]
  %v547 = vld [vmem:[%s1] sm:$0xf]
  %v548 = vld [vmem:[%s1 + $0x4] sm:$0xf]
  %v549 = vld [vmem:[%s3] sm:$0xff]
  %v550 = vld [vmem:[%s3 + $0x8] sm:$0xff]
  %v551 = vld [vmem:[%s3 + $0x10] sm:$0xff]
  %v552 = vld [vmem:[%s3 + $0x18] sm:$0xff]
  %v553 = vld [vmem:[%s3 + $0x20] sm:$0xff]
  %v554 = vld [vmem:[%s3 + $0x28] sm:$0xff]
  %v555 = vld [vmem:[%s3 + $0x30] sm:$0xff]
  %v556 = vld [vmem:[%s3 + $0x38] sm:$0xff]
  %v557 = vld [vmem:[%s3 + $0x40] sm:$0xff]
  %v558 = vld [vmem:[%s3 + $0x48] sm:$0xff]
  %v559 = vld [vmem:[%s3 + $0x50] sm:$0xff]
  %v560 = vld [vmem:[%s3 + $0x58] sm:$0xff]
  %v561 = vld [vmem:[%s3 + $0x60] sm:$0xff]
  %v562 = vld [vmem:[%s3 + $0x68] sm:$0xff]
  %v563 = vld [vmem:[%s3 + $0x70] sm:$0xff]
  %v564 = vld [vmem:[%s3 + $0x78] sm:$0xff]
  %v565 = vld [vmem:[%s3 + $0x80] sm:$0xff]
  %v566 = vld [vmem:[%s3 + $0x88] sm:$0xff]
  %v567 = vld [vmem:[%s3 + $0x90] sm:$0xff]
  %v568 = vld [vmem:[%s3 + $0x98] sm:$0xff]
  %v569 = vld [vmem:[%s3 + $0xa0] sm:$0xff]
  %v570 = vld [vmem:[%s3 + $0xa8] sm:$0xff]
  %v571 = vld [vmem:[%s3 + $0xb0] sm:$0xff]
  %v572 = vld [vmem:[%s3 + $0xb8] sm:$0xff]
  %v573 = vld [vmem:[%s3 + $0xc0] sm:$0xff]
  %v574 = vld [vmem:[%s3 + $0xc8] sm:$0xff]
  %v575 = vld [vmem:[%s3 + $0xd0] sm:$0xff]
  %v576 = vld [vmem:[%s3 + $0xd8] sm:$0xff]
  %v577 = vld [vmem:[%s3 + $0xe0] sm:$0xff]
  %v578 = vld [vmem:[%s3 + $0xe8] sm:$0xff]
  %v579 = vld [vmem:[%s3 + $0xf0] sm:$0xff]
  %v580 = vld [vmem:[%s3 + $0xf8] sm:$0xff]
  %v581 = vld [vmem:[%s3 + $0x100] sm:$0xff]
  %v582 = vld [vmem:[%s3 + $0x108] sm:$0xff]
  %v583 = vld [vmem:[%s3 + $0x110] sm:$0xff]
  %v584 = vld [vmem:[%s3 + $0x118] sm:$0xff]
  %v585 = vld [vmem:[%s3 + $0x120] sm:$0xff]
  %v586 = vld [vmem:[%s3 + $0x128] sm:$0xff]
  %v587 = vld [vmem:[%s3 + $0x130] sm:$0xff]
  %v588 = vld [vmem:[%s3 + $0x138] sm:$0xff]
  %v589 = vld [vmem:[%s3 + $0x140] sm:$0xff]
  %v590 = vld [vmem:[%s3 + $0x148] sm:$0xff]
  %v591 = vld [vmem:[%s3 + $0x150] sm:$0xff]
  %v592 = vld [vmem:[%s3 + $0x158] sm:$0xff]
  %v593 = vld [vmem:[%s3 + $0x160] sm:$0xff]
  %v594 = vld [vmem:[%s3 + $0x168] sm:$0xff]
  %v595 = vld [vmem:[%s3 + $0x170] sm:$0xff]
  %v596 = vld [vmem:[%s3 + $0x178] sm:$0xff]
  %v597 = vld [vmem:[%s3 + $0x180] sm:$0xff]
  %v598 = vld [vmem:[%s3 + $0x188] sm:$0xff]
  %v599 = vld [vmem:[%s3 + $0x190] sm:$0xff]
  %v600 = vld [vmem:[%s3 + $0x198] sm:$0xff]
  %v601 = vld [vmem:[%s3 + $0x1a0] sm:$0xff]
  %v602 = vld [vmem:[%s3 + $0x1a8] sm:$0xff]
  %v603 = vld [vmem:[%s3 + $0x1b0] sm:$0xff]
  %v604 = vld [vmem:[%s3 + $0x1b8] sm:$0xff]
  %v605 = vld [vmem:[%s3 + $0x1c0] sm:$0xff]
  %v606 = vld [vmem:[%s3 + $0x1c8] sm:$0xff]
  %v607 = vld [vmem:[%s3 + $0x1d0] sm:$0xff]
  %v608 = vld [vmem:[%s3 + $0x1d8] sm:$0xff]
  %v609 = vld [vmem:[%s3 + $0x1e0] sm:$0xff]
  %v610 = vld [vmem:[%s3 + $0x1e8] sm:$0xff]
  %v611 = vld [vmem:[%s3 + $0x1f0] sm:$0xff]
  %v612 = vld [vmem:[%s3 + $0x1f8] sm:$0xff]
  %v615 = vunpack.c.l.b16 %v547
  %v616 = vunpack.c.l.b16 %v548
  %v617 = vpack.c.b16 %v616, %v615
  %v683 = vunpack.c.l.b16 %v549
  %v684 = vunpack.c.h.b16 %v549
  %v685 = vunpack.c.l.b16 %v550
  %v686 = vunpack.c.h.b16 %v550
  %v687 = vunpack.c.l.b16 %v551
  %v688 = vunpack.c.h.b16 %v551
  %v689 = vunpack.c.l.b16 %v552
  %v690 = vunpack.c.h.b16 %v552
  %v691 = vunpack.c.l.b16 %v553
  %v692 = vunpack.c.h.b16 %v553
  %v693 = vunpack.c.l.b16 %v554
  %v694 = vunpack.c.h.b16 %v554
  %v695 = vunpack.c.l.b16 %v555
  %v696 = vunpack.c.h.b16 %v555
  %v697 = vunpack.c.l.b16 %v556
  %v698 = vunpack.c.h.b16 %v556
  %v699 = vunpack.c.l.b16 %v557
  %v700 = vunpack.c.h.b16 %v557
  %v701 = vunpack.c.l.b16 %v558
  %v702 = vunpack.c.h.b16 %v558
  %v703 = vunpack.c.l.b16 %v559
  %v704 = vunpack.c.h.b16 %v559
  %v705 = vunpack.c.l.b16 %v560
  %v706 = vunpack.c.h.b16 %v560
  %v707 = vunpack.c.l.b16 %v561
  %v708 = vunpack.c.h.b16 %v561
  %v709 = vunpack.c.l.b16 %v562
  %v710 = vunpack.c.h.b16 %v562
  %v711 = vunpack.c.l.b16 %v563
  %v712 = vunpack.c.h.b16 %v563
  %v713 = vunpack.c.l.b16 %v564
  %v714 = vunpack.c.h.b16 %v564
  %v715 = vunpack.c.l.b16 %v565
  %v716 = vunpack.c.h.b16 %v565
  %v717 = vunpack.c.l.b16 %v566
  %v718 = vunpack.c.h.b16 %v566
  %v719 = vunpack.c.l.b16 %v567
  %v720 = vunpack.c.h.b16 %v567
  %v721 = vunpack.c.l.b16 %v568
  %v722 = vunpack.c.h.b16 %v568
  %v723 = vunpack.c.l.b16 %v569
  %v724 = vunpack.c.h.b16 %v569
  %v725 = vunpack.c.l.b16 %v570
  %v726 = vunpack.c.h.b16 %v570
  %v727 = vunpack.c.l.b16 %v571
  %v728 = vunpack.c.h.b16 %v571
  %v729 = vunpack.c.l.b16 %v572
  %v730 = vunpack.c.h.b16 %v572
  %v731 = vunpack.c.l.b16 %v573
  %v732 = vunpack.c.h.b16 %v573
  %v733 = vunpack.c.l.b16 %v574
  %v734 = vunpack.c.h.b16 %v574
  %v735 = vunpack.c.l.b16 %v575
  %v736 = vunpack.c.h.b16 %v575
  %v737 = vunpack.c.l.b16 %v576
  %v738 = vunpack.c.h.b16 %v576
  %v739 = vunpack.c.l.b16 %v577
  %v740 = vunpack.c.h.b16 %v577
  %v741 = vunpack.c.l.b16 %v578
  %v742 = vunpack.c.h.b16 %v578
  %v743 = vunpack.c.l.b16 %v579
  %v744 = vunpack.c.h.b16 %v579
  %v745 = vunpack.c.l.b16 %v580
  %v746 = vunpack.c.h.b16 %v580
  %v747 = vunpack.c.l.b16 %v581
  %v748 = vunpack.c.h.b16 %v581
  %v749 = vunpack.c.l.b16 %v582
  %v750 = vunpack.c.h.b16 %v582
  %v751 = vunpack.c.l.b16 %v583
  %v752 = vunpack.c.h.b16 %v583
  %v753 = vunpack.c.l.b16 %v584
  %v754 = vunpack.c.h.b16 %v584
  %v755 = vunpack.c.l.b16 %v585
  %v756 = vunpack.c.h.b16 %v585
  %v757 = vunpack.c.l.b16 %v586
  %v758 = vunpack.c.h.b16 %v586
  %v759 = vunpack.c.l.b16 %v587
  %v760 = vunpack.c.h.b16 %v587
  %v761 = vunpack.c.l.b16 %v588
  %v762 = vunpack.c.h.b16 %v588
  %v763 = vunpack.c.l.b16 %v589
  %v764 = vunpack.c.h.b16 %v589
  %v765 = vunpack.c.l.b16 %v590
  %v766 = vunpack.c.h.b16 %v590
  %v767 = vunpack.c.l.b16 %v591
  %v768 = vunpack.c.h.b16 %v591
  %v769 = vunpack.c.l.b16 %v592
  %v770 = vunpack.c.h.b16 %v592
  %v771 = vunpack.c.l.b16 %v593
  %v772 = vunpack.c.h.b16 %v593
  %v773 = vunpack.c.l.b16 %v594
  %v774 = vunpack.c.h.b16 %v594
  %v775 = vunpack.c.l.b16 %v595
  %v776 = vunpack.c.h.b16 %v595
  %v777 = vunpack.c.l.b16 %v596
  %v778 = vunpack.c.h.b16 %v596
  %v779 = vunpack.c.l.b16 %v597
  %v780 = vunpack.c.h.b16 %v597
  %v781 = vunpack.c.l.b16 %v598
  %v782 = vunpack.c.h.b16 %v598
  %v783 = vunpack.c.l.b16 %v599
  %v784 = vunpack.c.h.b16 %v599
  %v785 = vunpack.c.l.b16 %v600
  %v786 = vunpack.c.h.b16 %v600
  %v787 = vunpack.c.l.b16 %v601
  %v788 = vunpack.c.h.b16 %v601
  %v789 = vunpack.c.l.b16 %v602
  %v790 = vunpack.c.h.b16 %v602
  %v791 = vunpack.c.l.b16 %v603
  %v792 = vunpack.c.h.b16 %v603
  %v793 = vunpack.c.l.b16 %v604
  %v794 = vunpack.c.h.b16 %v604
  %v795 = vunpack.c.l.b16 %v605
  %v796 = vunpack.c.h.b16 %v605
  %v797 = vunpack.c.l.b16 %v606
  %v798 = vunpack.c.h.b16 %v606
  %v799 = vunpack.c.l.b16 %v607
  %v800 = vunpack.c.h.b16 %v607
  %v801 = vunpack.c.l.b16 %v608
  %v802 = vunpack.c.h.b16 %v608
  %v803 = vunpack.c.l.b16 %v609
  %v804 = vunpack.c.h.b16 %v609
  %v805 = vunpack.c.l.b16 %v610
  %v806 = vunpack.c.h.b16 %v610
  %v807 = vunpack.c.l.b16 %v611
  %v808 = vunpack.c.h.b16 %v611
  %v809 = vunpack.c.l.b16 %v612
  %v810 = vunpack.c.h.b16 %v612
  %v811 = vpack.c.b16 %v691, %v683
  %v812 = vpack.c.b16 %v692, %v684
  %v813 = vpack.c.b16 %v693, %v685
  %v814 = vpack.c.b16 %v694, %v686
  %v815 = vpack.c.b16 %v695, %v687
  %v816 = vpack.c.b16 %v696, %v688
  %v817 = vpack.c.b16 %v697, %v689
  %v818 = vpack.c.b16 %v698, %v690
  %v819 = vpack.c.b16 %v707, %v699
  %v820 = vpack.c.b16 %v708, %v700
  %v821 = vpack.c.b16 %v709, %v701
  %v822 = vpack.c.b16 %v710, %v702
  %v823 = vpack.c.b16 %v711, %v703
  %v824 = vpack.c.b16 %v712, %v704
  %v825 = vpack.c.b16 %v713, %v705
  %v826 = vpack.c.b16 %v714, %v706
  %v827 = vpack.c.b16 %v723, %v715
  %v828 = vpack.c.b16 %v724, %v716
  %v829 = vpack.c.b16 %v725, %v717
  %v830 = vpack.c.b16 %v726, %v718
  %v831 = vpack.c.b16 %v727, %v719
  %v832 = vpack.c.b16 %v728, %v720
  %v833 = vpack.c.b16 %v729, %v721
  %v834 = vpack.c.b16 %v730, %v722
  %v835 = vpack.c.b16 %v739, %v731
  %v836 = vpack.c.b16 %v740, %v732
  %v837 = vpack.c.b16 %v741, %v733
  %v838 = vpack.c.b16 %v742, %v734
  %v839 = vpack.c.b16 %v743, %v735
  %v840 = vpack.c.b16 %v744, %v736
  %v841 = vpack.c.b16 %v745, %v737
  %v842 = vpack.c.b16 %v746, %v738
  %v843 = vpack.c.b16 %v755, %v747
  %v844 = vpack.c.b16 %v756, %v748
  %v845 = vpack.c.b16 %v757, %v749
  %v846 = vpack.c.b16 %v758, %v750
  %v847 = vpack.c.b16 %v759, %v751
  %v848 = vpack.c.b16 %v760, %v752
  %v849 = vpack.c.b16 %v761, %v753
  %v850 = vpack.c.b16 %v762, %v754
  %v851 = vpack.c.b16 %v771, %v763
  %v852 = vpack.c.b16 %v772, %v764
  %v853 = vpack.c.b16 %v773, %v765
  %v854 = vpack.c.b16 %v774, %v766
  %v855 = vpack.c.b16 %v775, %v767
  %v856 = vpack.c.b16 %v776, %v768
  %v857 = vpack.c.b16 %v777, %v769
  %v858 = vpack.c.b16 %v778, %v770
  %v859 = vpack.c.b16 %v787, %v779
  %v860 = vpack.c.b16 %v788, %v780
  %v861 = vpack.c.b16 %v789, %v781
  %v862 = vpack.c.b16 %v790, %v782
  %v863 = vpack.c.b16 %v791, %v783
  %v864 = vpack.c.b16 %v792, %v784
  %v865 = vpack.c.b16 %v793, %v785
  %v866 = vpack.c.b16 %v794, %v786
  %v867 = vpack.c.b16 %v803, %v795
  %v868 = vpack.c.b16 %v804, %v796
  %v869 = vpack.c.b16 %v805, %v797
  %v870 = vpack.c.b16 %v806, %v798
  %v871 = vpack.c.b16 %v807, %v799
  %v872 = vpack.c.b16 %v808, %v800
  %v873 = vpack.c.b16 %v809, %v801
  %v874 = vpack.c.b16 %v810, %v802
  %939 = vmatprep.subr.bf16.mxu0 %v812
  %940 = vmatpush1.bf16.msra.mxu0 %v811
  %941 = vmatprep.subr.bf16.mxu0 %v820
  %942 = vmatpush1.bf16.msra.mxu0 %v819
  %943 = vmatprep.subr.bf16.mxu0 %v828
  %944 = vmatpush1.bf16.msra.mxu0 %v827
  %945 = vmatprep.subr.bf16.mxu0 %v836
  %946 = vmatpush1.bf16.msra.mxu0 %v835
  %947 = vmatprep.subr.bf16.mxu0 %v844
  %948 = vmatpush1.bf16.msra.mxu0 %v843
  %949 = vmatprep.subr.bf16.mxu0 %v852
  %950 = vmatpush1.bf16.msra.mxu0 %v851
  %951 = vmatprep.subr.bf16.mxu0 %v860
  %952 = vmatpush1.bf16.msra.mxu0 %v859
  %953 = vmatprep.subr.bf16.mxu0 %v868
  %954 = vmatpush1.bf16.msra.mxu0 %v867
  %955 = vmatprep.subr.bf16.mxu0 0
  %956 = vmatpush1.bf16.msra.mxu0 0
  %957 = vmatprep.subr.bf16.mxu0 0
  %958 = vmatpush1.bf16.msra.mxu0 0
  %959 = vmatprep.subr.bf16.mxu0 0
  %960 = vmatpush1.bf16.msra.mxu0 0
  %961 = vmatprep.subr.bf16.mxu0 0
  %962 = vmatpush1.bf16.msra.mxu0 0
  %963 = vmatprep.subr.bf16.mxu0 0
  %964 = vmatpush1.bf16.msra.mxu0 0
  %965 = vmatprep.subr.bf16.mxu0 0
  %966 = vmatpush1.bf16.msra.mxu0 0
  %967 = vmatprep.subr.bf16.mxu0 0
  %968 = vmatpush1.bf16.msra.mxu0 0
  %969 = vmatprep.subr.bf16.mxu0 0
  %970 = vmatpush1.bf16.msra.mxu0 0
  %971 = vmatprep.mubr.bf16.mxu0 0
  %972 = vmatmul.mubr.bf16.gmra.mrb[0].mxu0 %v617
  %v973 = vpop.f32.mrb[0].mxu0
  %v974 = vadd.f32 0.0, %v973
  %v975 = vpop.f32.mrb[0].mxu0
  %v976 = vadd.f32 0.0, %v975
  %v977 = vpop.f32.mrb[0].mxu0
  %v978 = vadd.f32 0.0, %v977
  %v979 = vpop.f32.mrb[0].mxu0
  %v980 = vadd.f32 0.0, %v979
  %981 = vdwg.mxu0
  %982 = vmatprep.subr.bf16.mxu0 %v814
  %983 = vmatpush1.bf16.msra.mxu0 %v813
  %984 = vmatprep.subr.bf16.mxu0 %v822
  %985 = vmatpush1.bf16.msra.mxu0 %v821
  %986 = vmatprep.subr.bf16.mxu0 %v830
  %987 = vmatpush1.bf16.msra.mxu0 %v829
  %988 = vmatprep.subr.bf16.mxu0 %v838
  %989 = vmatpush1.bf16.msra.mxu0 %v837
  %990 = vmatprep.subr.bf16.mxu0 %v846
  %991 = vmatpush1.bf16.msra.mxu0 %v845
  %992 = vmatprep.subr.bf16.mxu0 %v854
  %993 = vmatpush1.bf16.msra.mxu0 %v853
  %994 = vmatprep.subr.bf16.mxu0 %v862
  %995 = vmatpush1.bf16.msra.mxu0 %v861
  %996 = vmatprep.subr.bf16.mxu0 %v870
  %997 = vmatpush1.bf16.msra.mxu0 %v869
  %998 = vmatprep.subr.bf16.mxu0 0
  %999 = vmatpush1.bf16.msra.mxu0 0
  %1000 = vmatprep.subr.bf16.mxu0 0
  %1001 = vmatpush1.bf16.msra.mxu0 0
  %1002 = vmatprep.subr.bf16.mxu0 0
  %1003 = vmatpush1.bf16.msra.mxu0 0
  %1004 = vmatprep.subr.bf16.mxu0 0
  %1005 = vmatpush1.bf16.msra.mxu0 0
  %1006 = vmatprep.subr.bf16.mxu0 0
  %1007 = vmatpush1.bf16.msra.mxu0 0
  %1008 = vmatprep.subr.bf16.mxu0 0
  %1009 = vmatpush1.bf16.msra.mxu0 0
  %1010 = vmatprep.subr.bf16.mxu0 0
  %1011 = vmatpush1.bf16.msra.mxu0 0
  %1012 = vmatprep.subr.bf16.mxu0 0
  %1013 = vmatpush1.bf16.msra.mxu0 0
  %1014 = vmatprep.mubr.bf16.mxu0 0
  %1015 = vmatmul.mubr.bf16.gmra.mrb[0].mxu0 %v617
  %v1016 = vpop.f32.mrb[0].mxu0
  %v1017 = vadd.f32 0.0, %v1016
  %v1018 = vpop.f32.mrb[0].mxu0
  %v1019 = vadd.f32 0.0, %v1018
  %v1020 = vpop.f32.mrb[0].mxu0
  %v1021 = vadd.f32 0.0, %v1020
  %v1022 = vpop.f32.mrb[0].mxu0
  %v1023 = vadd.f32 0.0, %v1022
  %1024 = vdwg.mxu0
  %1025 = vmatprep.subr.bf16.mxu0 %v816
  %1026 = vmatpush1.bf16.msra.mxu0 %v815
  %1027 = vmatprep.subr.bf16.mxu0 %v824
  %1028 = vmatpush1.bf16.msra.mxu0 %v823
  %1029 = vmatprep.subr.bf16.mxu0 %v832
  %1030 = vmatpush1.bf16.msra.mxu0 %v831
  %1031 = vmatprep.subr.bf16.mxu0 %v840
  %1032 = vmatpush1.bf16.msra.mxu0 %v839
  %1033 = vmatprep.subr.bf16.mxu0 %v848
  %1034 = vmatpush1.bf16.msra.mxu0 %v847
  %1035 = vmatprep.subr.bf16.mxu0 %v856
  %1036 = vmatpush1.bf16.msra.mxu0 %v855
  %1037 = vmatprep.subr.bf16.mxu0 %v864
  %1038 = vmatpush1.bf16.msra.mxu0 %v863
  %1039 = vmatprep.subr.bf16.mxu0 %v872
  %1040 = vmatpush1.bf16.msra.mxu0 %v871
  %1041 = vmatprep.subr.bf16.mxu0 0
  %1042 = vmatpush1.bf16.msra.mxu0 0
  %1043 = vmatprep.subr.bf16.mxu0 0
  %1044 = vmatpush1.bf16.msra.mxu0 0
  %1045 = vmatprep.subr.bf16.mxu0 0
  %1046 = vmatpush1.bf16.msra.mxu0 0
  %1047 = vmatprep.subr.bf16.mxu0 0
  %1048 = vmatpush1.bf16.msra.mxu0 0
  %1049 = vmatprep.subr.bf16.mxu0 0
  %1050 = vmatpush1.bf16.msra.mxu0 0
  %1051 = vmatprep.subr.bf16.mxu0 0
  %1052 = vmatpush1.bf16.msra.mxu0 0
  %1053 = vmatprep.subr.bf16.mxu0 0
  %1054 = vmatpush1.bf16.msra.mxu0 0
  %1055 = vmatprep.subr.bf16.mxu0 0
  %1056 = vmatpush1.bf16.msra.mxu0 0
  %1057 = vmatprep.mubr.bf16.mxu0 0
  %1058 = vmatmul.mubr.bf16.gmra.mrb[0].mxu0 %v617
  %v1059 = vpop.f32.mrb[0].mxu0
  %v1060 = vadd.f32 0.0, %v1059
  %v1061 = vpop.f32.mrb[0].mxu0
  %v1062 = vadd.f32 0.0, %v1061
  %v1063 = vpop.f32.mrb[0].mxu0
  %v1064 = vadd.f32 0.0, %v1063
  %v1065 = vpop.f32.mrb[0].mxu0
  %v1066 = vadd.f32 0.0, %v1065
  %1067 = vdwg.mxu0
  %1068 = vmatprep.subr.bf16.mxu0 %v818
  %1069 = vmatpush1.bf16.msra.mxu0 %v817
  %1070 = vmatprep.subr.bf16.mxu0 %v826
  %1071 = vmatpush1.bf16.msra.mxu0 %v825
  %1072 = vmatprep.subr.bf16.mxu0 %v834
  %1073 = vmatpush1.bf16.msra.mxu0 %v833
  %1074 = vmatprep.subr.bf16.mxu0 %v842
  %1075 = vmatpush1.bf16.msra.mxu0 %v841
  %1076 = vmatprep.subr.bf16.mxu0 %v850
  %1077 = vmatpush1.bf16.msra.mxu0 %v849
  %1078 = vmatprep.subr.bf16.mxu0 %v858
  %1079 = vmatpush1.bf16.msra.mxu0 %v857
  %1080 = vmatprep.subr.bf16.mxu0 %v866
  %1081 = vmatpush1.bf16.msra.mxu0 %v865
  %1082 = vmatprep.subr.bf16.mxu0 %v874
  %1083 = vmatpush1.bf16.msra.mxu0 %v873
  %1084 = vmatprep.subr.bf16.mxu0 0
  %1085 = vmatpush1.bf16.msra.mxu0 0
  %1086 = vmatprep.subr.bf16.mxu0 0
  %1087 = vmatpush1.bf16.msra.mxu0 0
  %1088 = vmatprep.subr.bf16.mxu0 0
  %1089 = vmatpush1.bf16.msra.mxu0 0
  %1090 = vmatprep.subr.bf16.mxu0 0
  %1091 = vmatpush1.bf16.msra.mxu0 0
  %1092 = vmatprep.subr.bf16.mxu0 0
  %1093 = vmatpush1.bf16.msra.mxu0 0
  %1094 = vmatprep.subr.bf16.mxu0 0
  %1095 = vmatpush1.bf16.msra.mxu0 0
  %1096 = vmatprep.subr.bf16.mxu0 0
  %1097 = vmatpush1.bf16.msra.mxu0 0
  %1098 = vmatprep.subr.bf16.mxu0 0
  %1099 = vmatpush1.bf16.msra.mxu0 0
  %1100 = vmatprep.mubr.bf16.mxu0 0
  %1101 = vmatmul.mubr.bf16.gmra.mrb[0].mxu0 %v617
  %v1102 = vpop.f32.mrb[0].mxu0
  %v1103 = vadd.f32 0.0, %v1102
  %v1104 = vpop.f32.mrb[0].mxu0
  %v1105 = vadd.f32 0.0, %v1104
  %v1106 = vpop.f32.mrb[0].mxu0
  %v1107 = vadd.f32 0.0, %v1106
  %v1108 = vpop.f32.mrb[0].mxu0
  %v1109 = vadd.f32 0.0, %v1108
  %1110 = vdwg.mxu0
  %v1119 = vunpack.c.l.b16 %v27
  %v1120 = vunpack.c.h.b16 %v27
  %v1121 = vunpack.c.l.b16 %v28
  %v1122 = vunpack.c.h.b16 %v28
  %v1123 = vunpack.c.l.b16 %v29
  %v1124 = vunpack.c.h.b16 %v29
  %v1125 = vunpack.c.l.b16 %v30
  %v1126 = vunpack.c.h.b16 %v30
  %v1127 = vunpack.c.l.b16 %v31
  %v1128 = vunpack.c.h.b16 %v31
  %v1129 = vunpack.c.l.b16 %v32
  %v1130 = vunpack.c.h.b16 %v32
  %v1131 = vunpack.c.l.b16 %v33
  %v1132 = vunpack.c.h.b16 %v33
  %v1133 = vunpack.c.l.b16 %v34
  %v1134 = vunpack.c.h.b16 %v34
  %v1135 = vpack.c.b16 %v1127, %v1119
  %v1136 = vpack.c.b16 %v1128, %v1120
  %v1137 = vpack.c.b16 %v1129, %v1121
  %v1138 = vpack.c.b16 %v1130, %v1122
  %v1139 = vpack.c.b16 %v1131, %v1123
  %v1140 = vpack.c.b16 %v1132, %v1124
  %v1141 = vpack.c.b16 %v1133, %v1125
  %v1142 = vpack.c.b16 %v1134, %v1126
  %v1663 = vunpack.c.l.b16 %v35
  %v1664 = vunpack.c.h.b16 %v35
  %v1665 = vunpack.c.l.b16 %v36
  %v1666 = vunpack.c.h.b16 %v36
  %v1667 = vunpack.c.l.b16 %v37
  %v1668 = vunpack.c.h.b16 %v37
  %v1669 = vunpack.c.l.b16 %v38
  %v1670 = vunpack.c.h.b16 %v38
  %v1671 = vunpack.c.l.b16 %v39
  %v1672 = vunpack.c.h.b16 %v39
  %v1673 = vunpack.c.l.b16 %v40
  %v1674 = vunpack.c.h.b16 %v40
  %v1675 = vunpack.c.l.b16 %v41
  %v1676 = vunpack.c.h.b16 %v41
  %v1677 = vunpack.c.l.b16 %v42
  %v1678 = vunpack.c.h.b16 %v42
  %v1679 = vunpack.c.l.b16 %v43
  %v1680 = vunpack.c.h.b16 %v43
  %v1681 = vunpack.c.l.b16 %v44
  %v1682 = vunpack.c.h.b16 %v44
  %v1683 = vunpack.c.l.b16 %v45
  %v1684 = vunpack.c.h.b16 %v45
  %v1685 = vunpack.c.l.b16 %v46
  %v1686 = vunpack.c.h.b16 %v46
  %v1687 = vunpack.c.l.b16 %v47
  %v1688 = vunpack.c.h.b16 %v47
  %v1689 = vunpack.c.l.b16 %v48
  %v1690 = vunpack.c.h.b16 %v48
  %v1691 = vunpack.c.l.b16 %v49
  %v1692 = vunpack.c.h.b16 %v49
  %v1693 = vunpack.c.l.b16 %v50
  %v1694 = vunpack.c.h.b16 %v50
  %v1695 = vunpack.c.l.b16 %v51
  %v1696 = vunpack.c.h.b16 %v51
  %v1697 = vunpack.c.l.b16 %v52
  %v1698 = vunpack.c.h.b16 %v52
  %v1699 = vunpack.c.l.b16 %v53
  %v1700 = vunpack.c.h.b16 %v53
  %v1701 = vunpack.c.l.b16 %v54
  %v1702 = vunpack.c.h.b16 %v54
  %v1703 = vunpack.c.l.b16 %v55
  %v1704 = vunpack.c.h.b16 %v55
  %v1705 = vunpack.c.l.b16 %v56
  %v1706 = vunpack.c.h.b16 %v56
  %v1707 = vunpack.c.l.b16 %v57
  %v1708 = vunpack.c.h.b16 %v57
  %v1709 = vunpack.c.l.b16 %v58
  %v1710 = vunpack.c.h.b16 %v58
  %v1711 = vunpack.c.l.b16 %v59
  %v1712 = vunpack.c.h.b16 %v59
  %v1713 = vunpack.c.l.b16 %v60
  %v1714 = vunpack.c.h.b16 %v60
  %v1715 = vunpack.c.l.b16 %v61
  %v1716 = vunpack.c.h.b16 %v61
  %v1717 = vunpack.c.l.b16 %v62
  %v1718 = vunpack.c.h.b16 %v62
  %v1719 = vunpack.c.l.b16 %v63
  %v1720 = vunpack.c.h.b16 %v63
  %v1721 = vunpack.c.l.b16 %v64
  %v1722 = vunpack.c.h.b16 %v64
  %v1723 = vunpack.c.l.b16 %v65
  %v1724 = vunpack.c.h.b16 %v65
  %v1725 = vunpack.c.l.b16 %v66
  %v1726 = vunpack.c.h.b16 %v66
  %v1727 = vunpack.c.l.b16 %v67
  %v1728 = vunpack.c.h.b16 %v67
  %v1729 = vunpack.c.l.b16 %v68
  %v1730 = vunpack.c.h.b16 %v68
  %v1731 = vunpack.c.l.b16 %v69
  %v1732 = vunpack.c.h.b16 %v69
  %v1733 = vunpack.c.l.b16 %v70
  %v1734 = vunpack.c.h.b16 %v70
  %v1735 = vunpack.c.l.b16 %v71
  %v1736 = vunpack.c.h.b16 %v71
  %v1737 = vunpack.c.l.b16 %v72
  %v1738 = vunpack.c.h.b16 %v72
  %v1739 = vunpack.c.l.b16 %v73
  %v1740 = vunpack.c.h.b16 %v73
  %v1741 = vunpack.c.l.b16 %v74
  %v1742 = vunpack.c.h.b16 %v74
  %v1743 = vunpack.c.l.b16 %v75
  %v1744 = vunpack.c.h.b16 %v75
  %v1745 = vunpack.c.l.b16 %v76
  %v1746 = vunpack.c.h.b16 %v76
  %v1747 = vunpack.c.l.b16 %v77
  %v1748 = vunpack.c.h.b16 %v77
  %v1749 = vunpack.c.l.b16 %v78
  %v1750 = vunpack.c.h.b16 %v78
  %v1751 = vunpack.c.l.b16 %v79
  %v1752 = vunpack.c.h.b16 %v79
  %v1753 = vunpack.c.l.b16 %v80
  %v1754 = vunpack.c.h.b16 %v80
  %v1755 = vunpack.c.l.b16 %v81
  %v1756 = vunpack.c.h.b16 %v81
  %v1757 = vunpack.c.l.b16 %v82
  %v1758 = vunpack.c.h.b16 %v82
  %v1759 = vunpack.c.l.b16 %v83
  %v1760 = vunpack.c.h.b16 %v83
  %v1761 = vunpack.c.l.b16 %v84
  %v1762 = vunpack.c.h.b16 %v84
  %v1763 = vunpack.c.l.b16 %v85
  %v1764 = vunpack.c.h.b16 %v85
  %v1765 = vunpack.c.l.b16 %v86
  %v1766 = vunpack.c.h.b16 %v86
  %v1767 = vunpack.c.l.b16 %v87
  %v1768 = vunpack.c.h.b16 %v87
  %v1769 = vunpack.c.l.b16 %v88
  %v1770 = vunpack.c.h.b16 %v88
  %v1771 = vunpack.c.l.b16 %v89
  %v1772 = vunpack.c.h.b16 %v89
  %v1773 = vunpack.c.l.b16 %v90
  %v1774 = vunpack.c.h.b16 %v90
  %v1775 = vunpack.c.l.b16 %v91
  %v1776 = vunpack.c.h.b16 %v91
  %v1777 = vunpack.c.l.b16 %v92
  %v1778 = vunpack.c.h.b16 %v92
  %v1779 = vunpack.c.l.b16 %v93
  %v1780 = vunpack.c.h.b16 %v93
  %v1781 = vunpack.c.l.b16 %v94
  %v1782 = vunpack.c.h.b16 %v94
  %v1783 = vunpack.c.l.b16 %v95
  %v1784 = vunpack.c.h.b16 %v95
  %v1785 = vunpack.c.l.b16 %v96
  %v1786 = vunpack.c.h.b16 %v96
  %v1787 = vunpack.c.l.b16 %v97
  %v1788 = vunpack.c.h.b16 %v97
  %v1789 = vunpack.c.l.b16 %v98
  %v1790 = vunpack.c.h.b16 %v98
  %v1791 = vunpack.c.l.b16 %v99
  %v1792 = vunpack.c.h.b16 %v99
  %v1793 = vunpack.c.l.b16 %v100
  %v1794 = vunpack.c.h.b16 %v100
  %v1795 = vunpack.c.l.b16 %v101
  %v1796 = vunpack.c.h.b16 %v101
  %v1797 = vunpack.c.l.b16 %v102
  %v1798 = vunpack.c.h.b16 %v102
  %v1799 = vunpack.c.l.b16 %v103
  %v1800 = vunpack.c.h.b16 %v103
  %v1801 = vunpack.c.l.b16 %v104
  %v1802 = vunpack.c.h.b16 %v104
  %v1803 = vunpack.c.l.b16 %v105
  %v1804 = vunpack.c.h.b16 %v105
  %v1805 = vunpack.c.l.b16 %v106
  %v1806 = vunpack.c.h.b16 %v106
  %v1807 = vunpack.c.l.b16 %v107
  %v1808 = vunpack.c.h.b16 %v107
  %v1809 = vunpack.c.l.b16 %v108
  %v1810 = vunpack.c.h.b16 %v108
  %v1811 = vunpack.c.l.b16 %v109
  %v1812 = vunpack.c.h.b16 %v109
  %v1813 = vunpack.c.l.b16 %v110
  %v1814 = vunpack.c.h.b16 %v110
  %v1815 = vunpack.c.l.b16 %v111
  %v1816 = vunpack.c.h.b16 %v111
  %v1817 = vunpack.c.l.b16 %v112
  %v1818 = vunpack.c.h.b16 %v112
  %v1819 = vunpack.c.l.b16 %v113
  %v1820 = vunpack.c.h.b16 %v113
  %v1821 = vunpack.c.l.b16 %v114
  %v1822 = vunpack.c.h.b16 %v114
  %v1823 = vunpack.c.l.b16 %v115
  %v1824 = vunpack.c.h.b16 %v115
  %v1825 = vunpack.c.l.b16 %v116
  %v1826 = vunpack.c.h.b16 %v116
  %v1827 = vunpack.c.l.b16 %v117
  %v1828 = vunpack.c.h.b16 %v117
  %v1829 = vunpack.c.l.b16 %v118
  %v1830 = vunpack.c.h.b16 %v118
  %v1831 = vunpack.c.l.b16 %v119
  %v1832 = vunpack.c.h.b16 %v119
  %v1833 = vunpack.c.l.b16 %v120
  %v1834 = vunpack.c.h.b16 %v120
  %v1835 = vunpack.c.l.b16 %v121
  %v1836 = vunpack.c.h.b16 %v121
  %v1837 = vunpack.c.l.b16 %v122
  %v1838 = vunpack.c.h.b16 %v122
  %v1839 = vunpack.c.l.b16 %v123
  %v1840 = vunpack.c.h.b16 %v123
  %v1841 = vunpack.c.l.b16 %v124
  %v1842 = vunpack.c.h.b16 %v124
  %v1843 = vunpack.c.l.b16 %v125
  %v1844 = vunpack.c.h.b16 %v125
  %v1845 = vunpack.c.l.b16 %v126
  %v1846 = vunpack.c.h.b16 %v126
  %v1847 = vunpack.c.l.b16 %v127
  %v1848 = vunpack.c.h.b16 %v127
  %v1849 = vunpack.c.l.b16 %v128
  %v1850 = vunpack.c.h.b16 %v128
  %v1851 = vunpack.c.l.b16 %v129
  %v1852 = vunpack.c.h.b16 %v129
  %v1853 = vunpack.c.l.b16 %v130
  %v1854 = vunpack.c.h.b16 %v130
  %v1855 = vunpack.c.l.b16 %v131
  %v1856 = vunpack.c.h.b16 %v131
  %v1857 = vunpack.c.l.b16 %v132
  %v1858 = vunpack.c.h.b16 %v132
  %v1859 = vunpack.c.l.b16 %v133
  %v1860 = vunpack.c.h.b16 %v133
  %v1861 = vunpack.c.l.b16 %v134
  %v1862 = vunpack.c.h.b16 %v134
  %v1863 = vunpack.c.l.b16 %v135
  %v1864 = vunpack.c.h.b16 %v135
  %v1865 = vunpack.c.l.b16 %v136
  %v1866 = vunpack.c.h.b16 %v136
  %v1867 = vunpack.c.l.b16 %v137
  %v1868 = vunpack.c.h.b16 %v137
  %v1869 = vunpack.c.l.b16 %v138
  %v1870 = vunpack.c.h.b16 %v138
  %v1871 = vunpack.c.l.b16 %v139
  %v1872 = vunpack.c.h.b16 %v139
  %v1873 = vunpack.c.l.b16 %v140
  %v1874 = vunpack.c.h.b16 %v140
  %v1875 = vunpack.c.l.b16 %v141
  %v1876 = vunpack.c.h.b16 %v141
  %v1877 = vunpack.c.l.b16 %v142
  %v1878 = vunpack.c.h.b16 %v142
  %v1879 = vunpack.c.l.b16 %v143
  %v1880 = vunpack.c.h.b16 %v143
  %v1881 = vunpack.c.l.b16 %v144
  %v1882 = vunpack.c.h.b16 %v144
  %v1883 = vunpack.c.l.b16 %v145
  %v1884 = vunpack.c.h.b16 %v145
  %v1885 = vunpack.c.l.b16 %v146
  %v1886 = vunpack.c.h.b16 %v146
  %v1887 = vunpack.c.l.b16 %v147
  %v1888 = vunpack.c.h.b16 %v147
  %v1889 = vunpack.c.l.b16 %v148
  %v1890 = vunpack.c.h.b16 %v148
  %v1891 = vunpack.c.l.b16 %v149
  %v1892 = vunpack.c.h.b16 %v149
  %v1893 = vunpack.c.l.b16 %v150
  %v1894 = vunpack.c.h.b16 %v150
  %v1895 = vunpack.c.l.b16 %v151
  %v1896 = vunpack.c.h.b16 %v151
  %v1897 = vunpack.c.l.b16 %v152
  %v1898 = vunpack.c.h.b16 %v152
  %v1899 = vunpack.c.l.b16 %v153
  %v1900 = vunpack.c.h.b16 %v153
  %v1901 = vunpack.c.l.b16 %v154
  %v1902 = vunpack.c.h.b16 %v154
  %v1903 = vunpack.c.l.b16 %v155
  %v1904 = vunpack.c.h.b16 %v155
  %v1905 = vunpack.c.l.b16 %v156
  %v1906 = vunpack.c.h.b16 %v156
  %v1907 = vunpack.c.l.b16 %v157
  %v1908 = vunpack.c.h.b16 %v157
  %v1909 = vunpack.c.l.b16 %v158
  %v1910 = vunpack.c.h.b16 %v158
  %v1911 = vunpack.c.l.b16 %v159
  %v1912 = vunpack.c.h.b16 %v159
  %v1913 = vunpack.c.l.b16 %v160
  %v1914 = vunpack.c.h.b16 %v160
  %v1915 = vunpack.c.l.b16 %v161
  %v1916 = vunpack.c.h.b16 %v161
  %v1917 = vunpack.c.l.b16 %v162
  %v1918 = vunpack.c.h.b16 %v162
  %v1919 = vunpack.c.l.b16 %v163
  %v1920 = vunpack.c.h.b16 %v163
  %v1921 = vunpack.c.l.b16 %v164
  %v1922 = vunpack.c.h.b16 %v164
  %v1923 = vunpack.c.l.b16 %v165
  %v1924 = vunpack.c.h.b16 %v165
  %v1925 = vunpack.c.l.b16 %v166
  %v1926 = vunpack.c.h.b16 %v166
  %v1927 = vunpack.c.l.b16 %v167
  %v1928 = vunpack.c.h.b16 %v167
  %v1929 = vunpack.c.l.b16 %v168
  %v1930 = vunpack.c.h.b16 %v168
  %v1931 = vunpack.c.l.b16 %v169
  %v1932 = vunpack.c.h.b16 %v169
  %v1933 = vunpack.c.l.b16 %v170
  %v1934 = vunpack.c.h.b16 %v170
  %v1935 = vunpack.c.l.b16 %v171
  %v1936 = vunpack.c.h.b16 %v171
  %v1937 = vunpack.c.l.b16 %v172
  %v1938 = vunpack.c.h.b16 %v172
  %v1939 = vunpack.c.l.b16 %v173
  %v1940 = vunpack.c.h.b16 %v173
  %v1941 = vunpack.c.l.b16 %v174
  %v1942 = vunpack.c.h.b16 %v174
  %v1943 = vunpack.c.l.b16 %v175
  %v1944 = vunpack.c.h.b16 %v175
  %v1945 = vunpack.c.l.b16 %v176
  %v1946 = vunpack.c.h.b16 %v176
  %v1947 = vunpack.c.l.b16 %v177
  %v1948 = vunpack.c.h.b16 %v177
  %v1949 = vunpack.c.l.b16 %v178
  %v1950 = vunpack.c.h.b16 %v178
  %v1951 = vunpack.c.l.b16 %v179
  %v1952 = vunpack.c.h.b16 %v179
  %v1953 = vunpack.c.l.b16 %v180
  %v1954 = vunpack.c.h.b16 %v180
  %v1955 = vunpack.c.l.b16 %v181
  %v1956 = vunpack.c.h.b16 %v181
  %v1957 = vunpack.c.l.b16 %v182
  %v1958 = vunpack.c.h.b16 %v182
  %v1959 = vunpack.c.l.b16 %v183
  %v1960 = vunpack.c.h.b16 %v183
  %v1961 = vunpack.c.l.b16 %v184
  %v1962 = vunpack.c.h.b16 %v184
  %v1963 = vunpack.c.l.b16 %v185
  %v1964 = vunpack.c.h.b16 %v185
  %v1965 = vunpack.c.l.b16 %v186
  %v1966 = vunpack.c.h.b16 %v186
  %v1967 = vunpack.c.l.b16 %v187
  %v1968 = vunpack.c.h.b16 %v187
  %v1969 = vunpack.c.l.b16 %v188
  %v1970 = vunpack.c.h.b16 %v188
  %v1971 = vunpack.c.l.b16 %v189
  %v1972 = vunpack.c.h.b16 %v189
  %v1973 = vunpack.c.l.b16 %v190
  %v1974 = vunpack.c.h.b16 %v190
  %v1975 = vunpack.c.l.b16 %v191
  %v1976 = vunpack.c.h.b16 %v191
  %v1977 = vunpack.c.l.b16 %v192
  %v1978 = vunpack.c.h.b16 %v192
  %v1979 = vunpack.c.l.b16 %v193
  %v1980 = vunpack.c.h.b16 %v193
  %v1981 = vunpack.c.l.b16 %v194
  %v1982 = vunpack.c.h.b16 %v194
  %v1983 = vunpack.c.l.b16 %v195
  %v1984 = vunpack.c.h.b16 %v195
  %v1985 = vunpack.c.l.b16 %v196
  %v1986 = vunpack.c.h.b16 %v196
  %v1987 = vunpack.c.l.b16 %v197
  %v1988 = vunpack.c.h.b16 %v197
  %v1989 = vunpack.c.l.b16 %v198
  %v1990 = vunpack.c.h.b16 %v198
  %v1991 = vunpack.c.l.b16 %v199
  %v1992 = vunpack.c.h.b16 %v199
  %v1993 = vunpack.c.l.b16 %v200
  %v1994 = vunpack.c.h.b16 %v200
  %v1995 = vunpack.c.l.b16 %v201
  %v1996 = vunpack.c.h.b16 %v201
  %v1997 = vunpack.c.l.b16 %v202
  %v1998 = vunpack.c.h.b16 %v202
  %v1999 = vunpack.c.l.b16 %v203
  %v2000 = vunpack.c.h.b16 %v203
  %v2001 = vunpack.c.l.b16 %v204
  %v2002 = vunpack.c.h.b16 %v204
  %v2003 = vunpack.c.l.b16 %v205
  %v2004 = vunpack.c.h.b16 %v205
  %v2005 = vunpack.c.l.b16 %v206
  %v2006 = vunpack.c.h.b16 %v206
  %v2007 = vunpack.c.l.b16 %v207
  %v2008 = vunpack.c.h.b16 %v207
  %v2009 = vunpack.c.l.b16 %v208
  %v2010 = vunpack.c.h.b16 %v208
  %v2011 = vunpack.c.l.b16 %v209
  %v2012 = vunpack.c.h.b16 %v209
  %v2013 = vunpack.c.l.b16 %v210
  %v2014 = vunpack.c.h.b16 %v210
  %v2015 = vunpack.c.l.b16 %v211
  %v2016 = vunpack.c.h.b16 %v211
  %v2017 = vunpack.c.l.b16 %v212
  %v2018 = vunpack.c.h.b16 %v212
  %v2019 = vunpack.c.l.b16 %v213
  %v2020 = vunpack.c.h.b16 %v213
  %v2021 = vunpack.c.l.b16 %v214
  %v2022 = vunpack.c.h.b16 %v214
  %v2023 = vunpack.c.l.b16 %v215
  %v2024 = vunpack.c.h.b16 %v215
  %v2025 = vunpack.c.l.b16 %v216
  %v2026 = vunpack.c.h.b16 %v216
  %v2027 = vunpack.c.l.b16 %v217
  %v2028 = vunpack.c.h.b16 %v217
  %v2029 = vunpack.c.l.b16 %v218
  %v2030 = vunpack.c.h.b16 %v218
  %v2031 = vunpack.c.l.b16 %v219
  %v2032 = vunpack.c.h.b16 %v219
  %v2033 = vunpack.c.l.b16 %v220
  %v2034 = vunpack.c.h.b16 %v220
  %v2035 = vunpack.c.l.b16 %v221
  %v2036 = vunpack.c.h.b16 %v221
  %v2037 = vunpack.c.l.b16 %v222
  %v2038 = vunpack.c.h.b16 %v222
  %v2039 = vunpack.c.l.b16 %v223
  %v2040 = vunpack.c.h.b16 %v223
  %v2041 = vunpack.c.l.b16 %v224
  %v2042 = vunpack.c.h.b16 %v224
  %v2043 = vunpack.c.l.b16 %v225
  %v2044 = vunpack.c.h.b16 %v225
  %v2045 = vunpack.c.l.b16 %v226
  %v2046 = vunpack.c.h.b16 %v226
  %v2047 = vunpack.c.l.b16 %v227
  %v2048 = vunpack.c.h.b16 %v227
  %v2049 = vunpack.c.l.b16 %v228
  %v2050 = vunpack.c.h.b16 %v228
  %v2051 = vunpack.c.l.b16 %v229
  %v2052 = vunpack.c.h.b16 %v229
  %v2053 = vunpack.c.l.b16 %v230
  %v2054 = vunpack.c.h.b16 %v230
  %v2055 = vunpack.c.l.b16 %v231
  %v2056 = vunpack.c.h.b16 %v231
  %v2057 = vunpack.c.l.b16 %v232
  %v2058 = vunpack.c.h.b16 %v232
  %v2059 = vunpack.c.l.b16 %v233
  %v2060 = vunpack.c.h.b16 %v233
  %v2061 = vunpack.c.l.b16 %v234
  %v2062 = vunpack.c.h.b16 %v234
  %v2063 = vunpack.c.l.b16 %v235
  %v2064 = vunpack.c.h.b16 %v235
  %v2065 = vunpack.c.l.b16 %v236
  %v2066 = vunpack.c.h.b16 %v236
  %v2067 = vunpack.c.l.b16 %v237
  %v2068 = vunpack.c.h.b16 %v237
  %v2069 = vunpack.c.l.b16 %v238
  %v2070 = vunpack.c.h.b16 %v238
  %v2071 = vunpack.c.l.b16 %v239
  %v2072 = vunpack.c.h.b16 %v239
  %v2073 = vunpack.c.l.b16 %v240
  %v2074 = vunpack.c.h.b16 %v240
  %v2075 = vunpack.c.l.b16 %v241
  %v2076 = vunpack.c.h.b16 %v241
  %v2077 = vunpack.c.l.b16 %v242
  %v2078 = vunpack.c.h.b16 %v242
  %v2079 = vunpack.c.l.b16 %v243
  %v2080 = vunpack.c.h.b16 %v243
  %v2081 = vunpack.c.l.b16 %v244
  %v2082 = vunpack.c.h.b16 %v244
  %v2083 = vunpack.c.l.b16 %v245
  %v2084 = vunpack.c.h.b16 %v245
  %v2085 = vunpack.c.l.b16 %v246
  %v2086 = vunpack.c.h.b16 %v246
  %v2087 = vunpack.c.l.b16 %v247
  %v2088 = vunpack.c.h.b16 %v247
  %v2089 = vunpack.c.l.b16 %v248
  %v2090 = vunpack.c.h.b16 %v248
  %v2091 = vunpack.c.l.b16 %v249
  %v2092 = vunpack.c.h.b16 %v249
  %v2093 = vunpack.c.l.b16 %v250
  %v2094 = vunpack.c.h.b16 %v250
  %v2095 = vunpack.c.l.b16 %v251
  %v2096 = vunpack.c.h.b16 %v251
  %v2097 = vunpack.c.l.b16 %v252
  %v2098 = vunpack.c.h.b16 %v252
  %v2099 = vunpack.c.l.b16 %v253
  %v2100 = vunpack.c.h.b16 %v253
  %v2101 = vunpack.c.l.b16 %v254
  %v2102 = vunpack.c.h.b16 %v254
  %v2103 = vunpack.c.l.b16 %v255
  %v2104 = vunpack.c.h.b16 %v255
  %v2105 = vunpack.c.l.b16 %v256
  %v2106 = vunpack.c.h.b16 %v256
  %v2107 = vunpack.c.l.b16 %v257
  %v2108 = vunpack.c.h.b16 %v257
  %v2109 = vunpack.c.l.b16 %v258
  %v2110 = vunpack.c.h.b16 %v258
  %v2111 = vunpack.c.l.b16 %v259
  %v2112 = vunpack.c.h.b16 %v259
  %v2113 = vunpack.c.l.b16 %v260
  %v2114 = vunpack.c.h.b16 %v260
  %v2115 = vunpack.c.l.b16 %v261
  %v2116 = vunpack.c.h.b16 %v261
  %v2117 = vunpack.c.l.b16 %v262
  %v2118 = vunpack.c.h.b16 %v262
  %v2119 = vunpack.c.l.b16 %v263
  %v2120 = vunpack.c.h.b16 %v263
  %v2121 = vunpack.c.l.b16 %v264
  %v2122 = vunpack.c.h.b16 %v264
  %v2123 = vunpack.c.l.b16 %v265
  %v2124 = vunpack.c.h.b16 %v265
  %v2125 = vunpack.c.l.b16 %v266
  %v2126 = vunpack.c.h.b16 %v266
  %v2127 = vunpack.c.l.b16 %v267
  %v2128 = vunpack.c.h.b16 %v267
  %v2129 = vunpack.c.l.b16 %v268
  %v2130 = vunpack.c.h.b16 %v268
  %v2131 = vunpack.c.l.b16 %v269
  %v2132 = vunpack.c.h.b16 %v269
  %v2133 = vunpack.c.l.b16 %v270
  %v2134 = vunpack.c.h.b16 %v270
  %v2135 = vunpack.c.l.b16 %v271
  %v2136 = vunpack.c.h.b16 %v271
  %v2137 = vunpack.c.l.b16 %v272
  %v2138 = vunpack.c.h.b16 %v272
  %v2139 = vunpack.c.l.b16 %v273
  %v2140 = vunpack.c.h.b16 %v273
  %v2141 = vunpack.c.l.b16 %v274
  %v2142 = vunpack.c.h.b16 %v274
  %v2143 = vunpack.c.l.b16 %v275
  %v2144 = vunpack.c.h.b16 %v275
  %v2145 = vunpack.c.l.b16 %v276
  %v2146 = vunpack.c.h.b16 %v276
  %v2147 = vunpack.c.l.b16 %v277
  %v2148 = vunpack.c.h.b16 %v277
  %v2149 = vunpack.c.l.b16 %v278
  %v2150 = vunpack.c.h.b16 %v278
  %v2151 = vunpack.c.l.b16 %v279
  %v2152 = vunpack.c.h.b16 %v279
  %v2153 = vunpack.c.l.b16 %v280
  %v2154 = vunpack.c.h.b16 %v280
  %v2155 = vunpack.c.l.b16 %v281
  %v2156 = vunpack.c.h.b16 %v281
  %v2157 = vunpack.c.l.b16 %v282
  %v2158 = vunpack.c.h.b16 %v282
  %v2159 = vunpack.c.l.b16 %v283
  %v2160 = vunpack.c.h.b16 %v283
  %v2161 = vunpack.c.l.b16 %v284
  %v2162 = vunpack.c.h.b16 %v284
  %v2163 = vunpack.c.l.b16 %v285
  %v2164 = vunpack.c.h.b16 %v285
  %v2165 = vunpack.c.l.b16 %v286
  %v2166 = vunpack.c.h.b16 %v286
  %v2167 = vunpack.c.l.b16 %v287
  %v2168 = vunpack.c.h.b16 %v287
  %v2169 = vunpack.c.l.b16 %v288
  %v2170 = vunpack.c.h.b16 %v288
  %v2171 = vunpack.c.l.b16 %v289
  %v2172 = vunpack.c.h.b16 %v289
  %v2173 = vunpack.c.l.b16 %v290
  %v2174 = vunpack.c.h.b16 %v290
  %v2175 = vunpack.c.l.b16 %v291
  %v2176 = vunpack.c.h.b16 %v291
  %v2177 = vunpack.c.l.b16 %v292
  %v2178 = vunpack.c.h.b16 %v292
  %v2179 = vunpack.c.l.b16 %v293
  %v2180 = vunpack.c.h.b16 %v293
  %v2181 = vunpack.c.l.b16 %v294
  %v2182 = vunpack.c.h.b16 %v294
  %v2183 = vunpack.c.l.b16 %v295
  %v2184 = vunpack.c.h.b16 %v295
  %v2185 = vunpack.c.l.b16 %v296
  %v2186 = vunpack.c.h.b16 %v296
  %v2187 = vunpack.c.l.b16 %v297
  %v2188 = vunpack.c.h.b16 %v297
  %v2189 = vunpack.c.l.b16 %v298
  %v2190 = vunpack.c.h.b16 %v298
  %v2191 = vunpack.c.l.b16 %v299
  %v2192 = vunpack.c.h.b16 %v299
  %v2193 = vunpack.c.l.b16 %v300
  %v2194 = vunpack.c.h.b16 %v300
  %v2195 = vunpack.c.l.b16 %v301
  %v2196 = vunpack.c.h.b16 %v301
  %v2197 = vunpack.c.l.b16 %v302
  %v2198 = vunpack.c.h.b16 %v302
  %v2199 = vunpack.c.l.b16 %v303
  %v2200 = vunpack.c.h.b16 %v303
  %v2201 = vunpack.c.l.b16 %v304
  %v2202 = vunpack.c.h.b16 %v304
  %v2203 = vunpack.c.l.b16 %v305
  %v2204 = vunpack.c.h.b16 %v305
  %v2205 = vunpack.c.l.b16 %v306
  %v2206 = vunpack.c.h.b16 %v306
  %v2207 = vunpack.c.l.b16 %v307
  %v2208 = vunpack.c.h.b16 %v307
  %v2209 = vunpack.c.l.b16 %v308
  %v2210 = vunpack.c.h.b16 %v308
  %v2211 = vunpack.c.l.b16 %v309
  %v2212 = vunpack.c.h.b16 %v309
  %v2213 = vunpack.c.l.b16 %v310
  %v2214 = vunpack.c.h.b16 %v310
  %v2215 = vunpack.c.l.b16 %v311
  %v2216 = vunpack.c.h.b16 %v311
  %v2217 = vunpack.c.l.b16 %v312
  %v2218 = vunpack.c.h.b16 %v312
  %v2219 = vunpack.c.l.b16 %v313
  %v2220 = vunpack.c.h.b16 %v313
  %v2221 = vunpack.c.l.b16 %v314
  %v2222 = vunpack.c.h.b16 %v314
  %v2223 = vunpack.c.l.b16 %v315
  %v2224 = vunpack.c.h.b16 %v315
  %v2225 = vunpack.c.l.b16 %v316
  %v2226 = vunpack.c.h.b16 %v316
  %v2227 = vunpack.c.l.b16 %v317
  %v2228 = vunpack.c.h.b16 %v317
  %v2229 = vunpack.c.l.b16 %v318
  %v2230 = vunpack.c.h.b16 %v318
  %v2231 = vunpack.c.l.b16 %v319
  %v2232 = vunpack.c.h.b16 %v319
  %v2233 = vunpack.c.l.b16 %v320
  %v2234 = vunpack.c.h.b16 %v320
  %v2235 = vunpack.c.l.b16 %v321
  %v2236 = vunpack.c.h.b16 %v321
  %v2237 = vunpack.c.l.b16 %v322
  %v2238 = vunpack.c.h.b16 %v322
  %v2239 = vunpack.c.l.b16 %v323
  %v2240 = vunpack.c.h.b16 %v323
  %v2241 = vunpack.c.l.b16 %v324
  %v2242 = vunpack.c.h.b16 %v324
  %v2243 = vunpack.c.l.b16 %v325
  %v2244 = vunpack.c.h.b16 %v325
  %v2245 = vunpack.c.l.b16 %v326
  %v2246 = vunpack.c.h.b16 %v326
  %v2247 = vunpack.c.l.b16 %v327
  %v2248 = vunpack.c.h.b16 %v327
  %v2249 = vunpack.c.l.b16 %v328
  %v2250 = vunpack.c.h.b16 %v328
  %v2251 = vunpack.c.l.b16 %v329
  %v2252 = vunpack.c.h.b16 %v329
  %v2253 = vunpack.c.l.b16 %v330
  %v2254 = vunpack.c.h.b16 %v330
  %v2255 = vunpack.c.l.b16 %v331
  %v2256 = vunpack.c.h.b16 %v331
  %v2257 = vunpack.c.l.b16 %v332
  %v2258 = vunpack.c.h.b16 %v332
  %v2259 = vunpack.c.l.b16 %v333
  %v2260 = vunpack.c.h.b16 %v333
  %v2261 = vunpack.c.l.b16 %v334
  %v2262 = vunpack.c.h.b16 %v334
  %v2263 = vunpack.c.l.b16 %v335
  %v2264 = vunpack.c.h.b16 %v335
  %v2265 = vunpack.c.l.b16 %v336
  %v2266 = vunpack.c.h.b16 %v336
  %v2267 = vunpack.c.l.b16 %v337
  %v2268 = vunpack.c.h.b16 %v337
  %v2269 = vunpack.c.l.b16 %v338
  %v2270 = vunpack.c.h.b16 %v338
  %v2271 = vunpack.c.l.b16 %v339
  %v2272 = vunpack.c.h.b16 %v339
  %v2273 = vunpack.c.l.b16 %v340
  %v2274 = vunpack.c.h.b16 %v340
  %v2275 = vunpack.c.l.b16 %v341
  %v2276 = vunpack.c.h.b16 %v341
  %v2277 = vunpack.c.l.b16 %v342
  %v2278 = vunpack.c.h.b16 %v342
  %v2279 = vunpack.c.l.b16 %v343
  %v2280 = vunpack.c.h.b16 %v343
  %v2281 = vunpack.c.l.b16 %v344
  %v2282 = vunpack.c.h.b16 %v344
  %v2283 = vunpack.c.l.b16 %v345
  %v2284 = vunpack.c.h.b16 %v345
  %v2285 = vunpack.c.l.b16 %v346
  %v2286 = vunpack.c.h.b16 %v346
  %v2287 = vunpack.c.l.b16 %v347
  %v2288 = vunpack.c.h.b16 %v347
  %v2289 = vunpack.c.l.b16 %v348
  %v2290 = vunpack.c.h.b16 %v348
  %v2291 = vunpack.c.l.b16 %v349
  %v2292 = vunpack.c.h.b16 %v349
  %v2293 = vunpack.c.l.b16 %v350
  %v2294 = vunpack.c.h.b16 %v350
  %v2295 = vunpack.c.l.b16 %v351
  %v2296 = vunpack.c.h.b16 %v351
  %v2297 = vunpack.c.l.b16 %v352
  %v2298 = vunpack.c.h.b16 %v352
  %v2299 = vunpack.c.l.b16 %v353
  %v2300 = vunpack.c.h.b16 %v353
  %v2301 = vunpack.c.l.b16 %v354
  %v2302 = vunpack.c.h.b16 %v354
  %v2303 = vunpack.c.l.b16 %v355
  %v2304 = vunpack.c.h.b16 %v355
  %v2305 = vunpack.c.l.b16 %v356
  %v2306 = vunpack.c.h.b16 %v356
  %v2307 = vunpack.c.l.b16 %v357
  %v2308 = vunpack.c.h.b16 %v357
  %v2309 = vunpack.c.l.b16 %v358
  %v2310 = vunpack.c.h.b16 %v358
  %v2311 = vunpack.c.l.b16 %v359
  %v2312 = vunpack.c.h.b16 %v359
  %v2313 = vunpack.c.l.b16 %v360
  %v2314 = vunpack.c.h.b16 %v360
  %v2315 = vunpack.c.l.b16 %v361
  %v2316 = vunpack.c.h.b16 %v361
  %v2317 = vunpack.c.l.b16 %v362
  %v2318 = vunpack.c.h.b16 %v362
  %v2319 = vunpack.c.l.b16 %v363
  %v2320 = vunpack.c.h.b16 %v363
  %v2321 = vunpack.c.l.b16 %v364
  %v2322 = vunpack.c.h.b16 %v364
  %v2323 = vunpack.c.l.b16 %v365
  %v2324 = vunpack.c.h.b16 %v365
  %v2325 = vunpack.c.l.b16 %v366
  %v2326 = vunpack.c.h.b16 %v366
  %v2327 = vunpack.c.l.b16 %v367
  %v2328 = vunpack.c.h.b16 %v367
  %v2329 = vunpack.c.l.b16 %v368
  %v2330 = vunpack.c.h.b16 %v368
  %v2331 = vunpack.c.l.b16 %v369
  %v2332 = vunpack.c.h.b16 %v369
  %v2333 = vunpack.c.l.b16 %v370
  %v2334 = vunpack.c.h.b16 %v370
  %v2335 = vunpack.c.l.b16 %v371
  %v2336 = vunpack.c.h.b16 %v371
  %v2337 = vunpack.c.l.b16 %v372
  %v2338 = vunpack.c.h.b16 %v372
  %v2339 = vunpack.c.l.b16 %v373
  %v2340 = vunpack.c.h.b16 %v373
  %v2341 = vunpack.c.l.b16 %v374
  %v2342 = vunpack.c.h.b16 %v374
  %v2343 = vunpack.c.l.b16 %v375
  %v2344 = vunpack.c.h.b16 %v375
  %v2345 = vunpack.c.l.b16 %v376
  %v2346 = vunpack.c.h.b16 %v376
  %v2347 = vunpack.c.l.b16 %v377
  %v2348 = vunpack.c.h.b16 %v377
  %v2349 = vunpack.c.l.b16 %v378
  %v2350 = vunpack.c.h.b16 %v378
  %v2351 = vunpack.c.l.b16 %v379
  %v2352 = vunpack.c.h.b16 %v379
  %v2353 = vunpack.c.l.b16 %v380
  %v2354 = vunpack.c.h.b16 %v380
  %v2355 = vunpack.c.l.b16 %v381
  %v2356 = vunpack.c.h.b16 %v381
  %v2357 = vunpack.c.l.b16 %v382
  %v2358 = vunpack.c.h.b16 %v382
  %v2359 = vunpack.c.l.b16 %v383
  %v2360 = vunpack.c.h.b16 %v383
  %v2361 = vunpack.c.l.b16 %v384
  %v2362 = vunpack.c.h.b16 %v384
  %v2363 = vunpack.c.l.b16 %v385
  %v2364 = vunpack.c.h.b16 %v385
  %v2365 = vunpack.c.l.b16 %v386
  %v2366 = vunpack.c.h.b16 %v386
  %v2367 = vunpack.c.l.b16 %v387
  %v2368 = vunpack.c.h.b16 %v387
  %v2369 = vunpack.c.l.b16 %v388
  %v2370 = vunpack.c.h.b16 %v388
  %v2371 = vunpack.c.l.b16 %v389
  %v2372 = vunpack.c.h.b16 %v389
  %v2373 = vunpack.c.l.b16 %v390
  %v2374 = vunpack.c.h.b16 %v390
  %v2375 = vunpack.c.l.b16 %v391
  %v2376 = vunpack.c.h.b16 %v391
  %v2377 = vunpack.c.l.b16 %v392
  %v2378 = vunpack.c.h.b16 %v392
  %v2379 = vunpack.c.l.b16 %v393
  %v2380 = vunpack.c.h.b16 %v393
  %v2381 = vunpack.c.l.b16 %v394
  %v2382 = vunpack.c.h.b16 %v394
  %v2383 = vunpack.c.l.b16 %v395
  %v2384 = vunpack.c.h.b16 %v395
  %v2385 = vunpack.c.l.b16 %v396
  %v2386 = vunpack.c.h.b16 %v396
  %v2387 = vunpack.c.l.b16 %v397
  %v2388 = vunpack.c.h.b16 %v397
  %v2389 = vunpack.c.l.b16 %v398
  %v2390 = vunpack.c.h.b16 %v398
  %v2391 = vunpack.c.l.b16 %v399
  %v2392 = vunpack.c.h.b16 %v399
  %v2393 = vunpack.c.l.b16 %v400
  %v2394 = vunpack.c.h.b16 %v400
  %v2395 = vunpack.c.l.b16 %v401
  %v2396 = vunpack.c.h.b16 %v401
  %v2397 = vunpack.c.l.b16 %v402
  %v2398 = vunpack.c.h.b16 %v402
  %v2399 = vunpack.c.l.b16 %v403
  %v2400 = vunpack.c.h.b16 %v403
  %v2401 = vunpack.c.l.b16 %v404
  %v2402 = vunpack.c.h.b16 %v404
  %v2403 = vunpack.c.l.b16 %v405
  %v2404 = vunpack.c.h.b16 %v405
  %v2405 = vunpack.c.l.b16 %v406
  %v2406 = vunpack.c.h.b16 %v406
  %v2407 = vunpack.c.l.b16 %v407
  %v2408 = vunpack.c.h.b16 %v407
  %v2409 = vunpack.c.l.b16 %v408
  %v2410 = vunpack.c.h.b16 %v408
  %v2411 = vunpack.c.l.b16 %v409
  %v2412 = vunpack.c.h.b16 %v409
  %v2413 = vunpack.c.l.b16 %v410
  %v2414 = vunpack.c.h.b16 %v410
  %v2415 = vunpack.c.l.b16 %v411
  %v2416 = vunpack.c.h.b16 %v411
  %v2417 = vunpack.c.l.b16 %v412
  %v2418 = vunpack.c.h.b16 %v412
  %v2419 = vunpack.c.l.b16 %v413
  %v2420 = vunpack.c.h.b16 %v413
  %v2421 = vunpack.c.l.b16 %v414
  %v2422 = vunpack.c.h.b16 %v414
  %v2423 = vunpack.c.l.b16 %v415
  %v2424 = vunpack.c.h.b16 %v415
  %v2425 = vunpack.c.l.b16 %v416
  %v2426 = vunpack.c.h.b16 %v416
  %v2427 = vunpack.c.l.b16 %v417
  %v2428 = vunpack.c.h.b16 %v417
  %v2429 = vunpack.c.l.b16 %v418
  %v2430 = vunpack.c.h.b16 %v418
  %v2431 = vunpack.c.l.b16 %v419
  %v2432 = vunpack.c.h.b16 %v419
  %v2433 = vunpack.c.l.b16 %v420
  %v2434 = vunpack.c.h.b16 %v420
  %v2435 = vunpack.c.l.b16 %v421
  %v2436 = vunpack.c.h.b16 %v421
  %v2437 = vunpack.c.l.b16 %v422
  %v2438 = vunpack.c.h.b16 %v422
  %v2439 = vunpack.c.l.b16 %v423
  %v2440 = vunpack.c.h.b16 %v423
  %v2441 = vunpack.c.l.b16 %v424
  %v2442 = vunpack.c.h.b16 %v424
  %v2443 = vunpack.c.l.b16 %v425
  %v2444 = vunpack.c.h.b16 %v425
  %v2445 = vunpack.c.l.b16 %v426
  %v2446 = vunpack.c.h.b16 %v426
  %v2447 = vunpack.c.l.b16 %v427
  %v2448 = vunpack.c.h.b16 %v427
  %v2449 = vunpack.c.l.b16 %v428
  %v2450 = vunpack.c.h.b16 %v428
  %v2451 = vunpack.c.l.b16 %v429
  %v2452 = vunpack.c.h.b16 %v429
  %v2453 = vunpack.c.l.b16 %v430
  %v2454 = vunpack.c.h.b16 %v430
  %v2455 = vunpack.c.l.b16 %v431
  %v2456 = vunpack.c.h.b16 %v431
  %v2457 = vunpack.c.l.b16 %v432
  %v2458 = vunpack.c.h.b16 %v432
  %v2459 = vunpack.c.l.b16 %v433
  %v2460 = vunpack.c.h.b16 %v433
  %v2461 = vunpack.c.l.b16 %v434
  %v2462 = vunpack.c.h.b16 %v434
  %v2463 = vunpack.c.l.b16 %v435
  %v2464 = vunpack.c.h.b16 %v435
  %v2465 = vunpack.c.l.b16 %v436
  %v2466 = vunpack.c.h.b16 %v436
  %v2467 = vunpack.c.l.b16 %v437
  %v2468 = vunpack.c.h.b16 %v437
  %v2469 = vunpack.c.l.b16 %v438
  %v2470 = vunpack.c.h.b16 %v438
  %v2471 = vunpack.c.l.b16 %v439
  %v2472 = vunpack.c.h.b16 %v439
  %v2473 = vunpack.c.l.b16 %v440
  %v2474 = vunpack.c.h.b16 %v440
  %v2475 = vunpack.c.l.b16 %v441
  %v2476 = vunpack.c.h.b16 %v441
  %v2477 = vunpack.c.l.b16 %v442
  %v2478 = vunpack.c.h.b16 %v442
  %v2479 = vunpack.c.l.b16 %v443
  %v2480 = vunpack.c.h.b16 %v443
  %v2481 = vunpack.c.l.b16 %v444
  %v2482 = vunpack.c.h.b16 %v444
  %v2483 = vunpack.c.l.b16 %v445
  %v2484 = vunpack.c.h.b16 %v445
  %v2485 = vunpack.c.l.b16 %v446
  %v2486 = vunpack.c.h.b16 %v446
  %v2487 = vunpack.c.l.b16 %v447
  %v2488 = vunpack.c.h.b16 %v447
  %v2489 = vunpack.c.l.b16 %v448
  %v2490 = vunpack.c.h.b16 %v448
  %v2491 = vunpack.c.l.b16 %v449
  %v2492 = vunpack.c.h.b16 %v449
  %v2493 = vunpack.c.l.b16 %v450
  %v2494 = vunpack.c.h.b16 %v450
  %v2495 = vunpack.c.l.b16 %v451
  %v2496 = vunpack.c.h.b16 %v451
  %v2497 = vunpack.c.l.b16 %v452
  %v2498 = vunpack.c.h.b16 %v452
  %v2499 = vunpack.c.l.b16 %v453
  %v2500 = vunpack.c.h.b16 %v453
  %v2501 = vunpack.c.l.b16 %v454
  %v2502 = vunpack.c.h.b16 %v454
  %v2503 = vunpack.c.l.b16 %v455
  %v2504 = vunpack.c.h.b16 %v455
  %v2505 = vunpack.c.l.b16 %v456
  %v2506 = vunpack.c.h.b16 %v456
  %v2507 = vunpack.c.l.b16 %v457
  %v2508 = vunpack.c.h.b16 %v457
  %v2509 = vunpack.c.l.b16 %v458
  %v2510 = vunpack.c.h.b16 %v458
  %v2511 = vunpack.c.l.b16 %v459
  %v2512 = vunpack.c.h.b16 %v459
  %v2513 = vunpack.c.l.b16 %v460
  %v2514 = vunpack.c.h.b16 %v460
  %v2515 = vunpack.c.l.b16 %v461
  %v2516 = vunpack.c.h.b16 %v461
  %v2517 = vunpack.c.l.b16 %v462
  %v2518 = vunpack.c.h.b16 %v462
  %v2519 = vunpack.c.l.b16 %v463
  %v2520 = vunpack.c.h.b16 %v463
  %v2521 = vunpack.c.l.b16 %v464
  %v2522 = vunpack.c.h.b16 %v464
  %v2523 = vunpack.c.l.b16 %v465
  %v2524 = vunpack.c.h.b16 %v465
  %v2525 = vunpack.c.l.b16 %v466
  %v2526 = vunpack.c.h.b16 %v466
  %v2527 = vunpack.c.l.b16 %v467
  %v2528 = vunpack.c.h.b16 %v467
  %v2529 = vunpack.c.l.b16 %v468
  %v2530 = vunpack.c.h.b16 %v468
  %v2531 = vunpack.c.l.b16 %v469
  %v2532 = vunpack.c.h.b16 %v469
  %v2533 = vunpack.c.l.b16 %v470
  %v2534 = vunpack.c.h.b16 %v470
  %v2535 = vunpack.c.l.b16 %v471
  %v2536 = vunpack.c.h.b16 %v471
  %v2537 = vunpack.c.l.b16 %v472
  %v2538 = vunpack.c.h.b16 %v472
  %v2539 = vunpack.c.l.b16 %v473
  %v2540 = vunpack.c.h.b16 %v473
  %v2541 = vunpack.c.l.b16 %v474
  %v2542 = vunpack.c.h.b16 %v474
  %v2543 = vunpack.c.l.b16 %v475
  %v2544 = vunpack.c.h.b16 %v475
  %v2545 = vunpack.c.l.b16 %v476
  %v2546 = vunpack.c.h.b16 %v476
  %v2547 = vunpack.c.l.b16 %v477
  %v2548 = vunpack.c.h.b16 %v477
  %v2549 = vunpack.c.l.b16 %v478
  %v2550 = vunpack.c.h.b16 %v478
  %v2551 = vunpack.c.l.b16 %v479
  %v2552 = vunpack.c.h.b16 %v479
  %v2553 = vunpack.c.l.b16 %v480
  %v2554 = vunpack.c.h.b16 %v480
  %v2555 = vunpack.c.l.b16 %v481
  %v2556 = vunpack.c.h.b16 %v481
  %v2557 = vunpack.c.l.b16 %v482
  %v2558 = vunpack.c.h.b16 %v482
  %v2559 = vunpack.c.l.b16 %v483
  %v2560 = vunpack.c.h.b16 %v483
  %v2561 = vunpack.c.l.b16 %v484
  %v2562 = vunpack.c.h.b16 %v484
  %v2563 = vunpack.c.l.b16 %v485
  %v2564 = vunpack.c.h.b16 %v485
  %v2565 = vunpack.c.l.b16 %v486
  %v2566 = vunpack.c.h.b16 %v486
  %v2567 = vunpack.c.l.b16 %v487
  %v2568 = vunpack.c.h.b16 %v487
  %v2569 = vunpack.c.l.b16 %v488
  %v2570 = vunpack.c.h.b16 %v488
  %v2571 = vunpack.c.l.b16 %v489
  %v2572 = vunpack.c.h.b16 %v489
  %v2573 = vunpack.c.l.b16 %v490
  %v2574 = vunpack.c.h.b16 %v490
  %v2575 = vunpack.c.l.b16 %v491
  %v2576 = vunpack.c.h.b16 %v491
  %v2577 = vunpack.c.l.b16 %v492
  %v2578 = vunpack.c.h.b16 %v492
  %v2579 = vunpack.c.l.b16 %v493
  %v2580 = vunpack.c.h.b16 %v493
  %v2581 = vunpack.c.l.b16 %v494
  %v2582 = vunpack.c.h.b16 %v494
  %v2583 = vunpack.c.l.b16 %v495
  %v2584 = vunpack.c.h.b16 %v495
  %v2585 = vunpack.c.l.b16 %v496
  %v2586 = vunpack.c.h.b16 %v496
  %v2587 = vunpack.c.l.b16 %v497
  %v2588 = vunpack.c.h.b16 %v497
  %v2589 = vunpack.c.l.b16 %v498
  %v2590 = vunpack.c.h.b16 %v498
  %v2591 = vunpack.c.l.b16 %v499
  %v2592 = vunpack.c.h.b16 %v499
  %v2593 = vunpack.c.l.b16 %v500
  %v2594 = vunpack.c.h.b16 %v500
  %v2595 = vunpack.c.l.b16 %v501
  %v2596 = vunpack.c.h.b16 %v501
  %v2597 = vunpack.c.l.b16 %v502
  %v2598 = vunpack.c.h.b16 %v502
  %v2599 = vunpack.c.l.b16 %v503
  %v2600 = vunpack.c.h.b16 %v503
  %v2601 = vunpack.c.l.b16 %v504
  %v2602 = vunpack.c.h.b16 %v504
  %v2603 = vunpack.c.l.b16 %v505
  %v2604 = vunpack.c.h.b16 %v505
  %v2605 = vunpack.c.l.b16 %v506
  %v2606 = vunpack.c.h.b16 %v506
  %v2607 = vunpack.c.l.b16 %v507
  %v2608 = vunpack.c.h.b16 %v507
  %v2609 = vunpack.c.l.b16 %v508
  %v2610 = vunpack.c.h.b16 %v508
  %v2611 = vunpack.c.l.b16 %v509
  %v2612 = vunpack.c.h.b16 %v509
  %v2613 = vunpack.c.l.b16 %v510
  %v2614 = vunpack.c.h.b16 %v510
  %v2615 = vunpack.c.l.b16 %v511
  %v2616 = vunpack.c.h.b16 %v511
  %v2617 = vunpack.c.l.b16 %v512
  %v2618 = vunpack.c.h.b16 %v512
  %v2619 = vunpack.c.l.b16 %v513
  %v2620 = vunpack.c.h.b16 %v513
  %v2621 = vunpack.c.l.b16 %v514
  %v2622 = vunpack.c.h.b16 %v514
  %v2623 = vunpack.c.l.b16 %v515
  %v2624 = vunpack.c.h.b16 %v515
  %v2625 = vunpack.c.l.b16 %v516
  %v2626 = vunpack.c.h.b16 %v516
  %v2627 = vunpack.c.l.b16 %v517
  %v2628 = vunpack.c.h.b16 %v517
  %v2629 = vunpack.c.l.b16 %v518
  %v2630 = vunpack.c.h.b16 %v518
  %v2631 = vunpack.c.l.b16 %v519
  %v2632 = vunpack.c.h.b16 %v519
  %v2633 = vunpack.c.l.b16 %v520
  %v2634 = vunpack.c.h.b16 %v520
  %v2635 = vunpack.c.l.b16 %v521
  %v2636 = vunpack.c.h.b16 %v521
  %v2637 = vunpack.c.l.b16 %v522
  %v2638 = vunpack.c.h.b16 %v522
  %v2639 = vunpack.c.l.b16 %v523
  %v2640 = vunpack.c.h.b16 %v523
  %v2641 = vunpack.c.l.b16 %v524
  %v2642 = vunpack.c.h.b16 %v524
  %v2643 = vunpack.c.l.b16 %v525
  %v2644 = vunpack.c.h.b16 %v525
  %v2645 = vunpack.c.l.b16 %v526
  %v2646 = vunpack.c.h.b16 %v526
  %v2647 = vunpack.c.l.b16 %v527
  %v2648 = vunpack.c.h.b16 %v527
  %v2649 = vunpack.c.l.b16 %v528
  %v2650 = vunpack.c.h.b16 %v528
  %v2651 = vunpack.c.l.b16 %v529
  %v2652 = vunpack.c.h.b16 %v529
  %v2653 = vunpack.c.l.b16 %v530
  %v2654 = vunpack.c.h.b16 %v530
  %v2655 = vunpack.c.l.b16 %v531
  %v2656 = vunpack.c.h.b16 %v531
  %v2657 = vunpack.c.l.b16 %v532
  %v2658 = vunpack.c.h.b16 %v532
  %v2659 = vunpack.c.l.b16 %v533
  %v2660 = vunpack.c.h.b16 %v533
  %v2661 = vunpack.c.l.b16 %v534
  %v2662 = vunpack.c.h.b16 %v534
  %v2663 = vunpack.c.l.b16 %v535
  %v2664 = vunpack.c.h.b16 %v535
  %v2665 = vunpack.c.l.b16 %v536
  %v2666 = vunpack.c.h.b16 %v536
  %v2667 = vunpack.c.l.b16 %v537
  %v2668 = vunpack.c.h.b16 %v537
  %v2669 = vunpack.c.l.b16 %v538
  %v2670 = vunpack.c.h.b16 %v538
  %v2671 = vunpack.c.l.b16 %v539
  %v2672 = vunpack.c.h.b16 %v539
  %v2673 = vunpack.c.l.b16 %v540
  %v2674 = vunpack.c.h.b16 %v540
  %v2675 = vunpack.c.l.b16 %v541
  %v2676 = vunpack.c.h.b16 %v541
  %v2677 = vunpack.c.l.b16 %v542
  %v2678 = vunpack.c.h.b16 %v542
  %v2679 = vunpack.c.l.b16 %v543
  %v2680 = vunpack.c.h.b16 %v543
  %v2681 = vunpack.c.l.b16 %v544
  %v2682 = vunpack.c.h.b16 %v544
  %v2683 = vunpack.c.l.b16 %v545
  %v2684 = vunpack.c.h.b16 %v545
  %v2685 = vunpack.c.l.b16 %v546
  %v2686 = vunpack.c.h.b16 %v546
  %v2687 = vpack.c.b16 %v1671, %v1663
  %v2688 = vpack.c.b16 %v1672, %v1664
  %v2689 = vpack.c.b16 %v1673, %v1665
  %v2690 = vpack.c.b16 %v1674, %v1666
  %v2691 = vpack.c.b16 %v1675, %v1667
  %v2692 = vpack.c.b16 %v1676, %v1668
  %v2693 = vpack.c.b16 %v1677, %v1669
  %v2694 = vpack.c.b16 %v1678, %v1670
  %v2695 = vpack.c.b16 %v1687, %v1679
  %v2696 = vpack.c.b16 %v1688, %v1680
  %v2697 = vpack.c.b16 %v1689, %v1681
  %v2698 = vpack.c.b16 %v1690, %v1682
  %v2699 = vpack.c.b16 %v1691, %v1683
  %v2700 = vpack.c.b16 %v1692, %v1684
  %v2701 = vpack.c.b16 %v1693, %v1685
  %v2702 = vpack.c.b16 %v1694, %v1686
  %v2703 = vpack.c.b16 %v1703, %v1695
  %v2704 = vpack.c.b16 %v1704, %v1696
  %v2705 = vpack.c.b16 %v1705, %v1697
  %v2706 = vpack.c.b16 %v1706, %v1698
  %v2707 = vpack.c.b16 %v1707, %v1699
  %v2708 = vpack.c.b16 %v1708, %v1700
  %v2709 = vpack.c.b16 %v1709, %v1701
  %v2710 = vpack.c.b16 %v1710, %v1702
  %v2711 = vpack.c.b16 %v1719, %v1711
  %v2712 = vpack.c.b16 %v1720, %v1712
  %v2713 = vpack.c.b16 %v1721, %v1713
  %v2714 = vpack.c.b16 %v1722, %v1714
  %v2715 = vpack.c.b16 %v1723, %v1715
  %v2716 = vpack.c.b16 %v1724, %v1716
  %v2717 = vpack.c.b16 %v1725, %v1717
  %v2718 = vpack.c.b16 %v1726, %v1718
  %v2719 = vpack.c.b16 %v1735, %v1727
  %v2720 = vpack.c.b16 %v1736, %v1728
  %v2721 = vpack.c.b16 %v1737, %v1729
  %v2722 = vpack.c.b16 %v1738, %v1730
  %v2723 = vpack.c.b16 %v1739, %v1731
  %v2724 = vpack.c.b16 %v1740, %v1732
  %v2725 = vpack.c.b16 %v1741, %v1733
  %v2726 = vpack.c.b16 %v1742, %v1734
  %v2727 = vpack.c.b16 %v1751, %v1743
  %v2728 = vpack.c.b16 %v1752, %v1744
  %v2729 = vpack.c.b16 %v1753, %v1745
  %v2730 = vpack.c.b16 %v1754, %v1746
  %v2731 = vpack.c.b16 %v1755, %v1747
  %v2732 = vpack.c.b16 %v1756, %v1748
  %v2733 = vpack.c.b16 %v1757, %v1749
  %v2734 = vpack.c.b16 %v1758, %v1750
  %v2735 = vpack.c.b16 %v1767, %v1759
  %v2736 = vpack.c.b16 %v1768, %v1760
  %v2737 = vpack.c.b16 %v1769, %v1761
  %v2738 = vpack.c.b16 %v1770, %v1762
  %v2739 = vpack.c.b16 %v1771, %v1763
  %v2740 = vpack.c.b16 %v1772, %v1764
  %v2741 = vpack.c.b16 %v1773, %v1765
  %v2742 = vpack.c.b16 %v1774, %v1766
  %v2743 = vpack.c.b16 %v1783, %v1775
  %v2744 = vpack.c.b16 %v1784, %v1776
  %v2745 = vpack.c.b16 %v1785, %v1777
  %v2746 = vpack.c.b16 %v1786, %v1778
  %v2747 = vpack.c.b16 %v1787, %v1779
  %v2748 = vpack.c.b16 %v1788, %v1780
  %v2749 = vpack.c.b16 %v1789, %v1781
  %v2750 = vpack.c.b16 %v1790, %v1782
  %v2751 = vpack.c.b16 %v1799, %v1791
  %v2752 = vpack.c.b16 %v1800, %v1792
  %v2753 = vpack.c.b16 %v1801, %v1793
  %v2754 = vpack.c.b16 %v1802, %v1794
  %v2755 = vpack.c.b16 %v1803, %v1795
  %v2756 = vpack.c.b16 %v1804, %v1796
  %v2757 = vpack.c.b16 %v1805, %v1797
  %v2758 = vpack.c.b16 %v1806, %v1798
  %v2759 = vpack.c.b16 %v1815, %v1807
  %v2760 = vpack.c.b16 %v1816, %v1808
  %v2761 = vpack.c.b16 %v1817, %v1809
  %v2762 = vpack.c.b16 %v1818, %v1810
  %v2763 = vpack.c.b16 %v1819, %v1811
  %v2764 = vpack.c.b16 %v1820, %v1812
  %v2765 = vpack.c.b16 %v1821, %v1813
  %v2766 = vpack.c.b16 %v1822, %v1814
  %v2767 = vpack.c.b16 %v1831, %v1823
  %v2768 = vpack.c.b16 %v1832, %v1824
  %v2769 = vpack.c.b16 %v1833, %v1825
  %v2770 = vpack.c.b16 %v1834, %v1826
  %v2771 = vpack.c.b16 %v1835, %v1827
  %v2772 = vpack.c.b16 %v1836, %v1828
  %v2773 = vpack.c.b16 %v1837, %v1829
  %v2774 = vpack.c.b16 %v1838, %v1830
  %v2775 = vpack.c.b16 %v1847, %v1839
  %v2776 = vpack.c.b16 %v1848, %v1840
  %v2777 = vpack.c.b16 %v1849, %v1841
  %v2778 = vpack.c.b16 %v1850, %v1842
  %v2779 = vpack.c.b16 %v1851, %v1843
  %v2780 = vpack.c.b16 %v1852, %v1844
  %v2781 = vpack.c.b16 %v1853, %v1845
  %v2782 = vpack.c.b16 %v1854, %v1846
  %v2783 = vpack.c.b16 %v1863, %v1855
  %v2784 = vpack.c.b16 %v1864, %v1856
  %v2785 = vpack.c.b16 %v1865, %v1857
  %v2786 = vpack.c.b16 %v1866, %v1858
  %v2787 = vpack.c.b16 %v1867, %v1859
  %v2788 = vpack.c.b16 %v1868, %v1860
  %v2789 = vpack.c.b16 %v1869, %v1861
  %v2790 = vpack.c.b16 %v1870, %v1862
  %v2791 = vpack.c.b16 %v1879, %v1871
  %v2792 = vpack.c.b16 %v1880, %v1872
  %v2793 = vpack.c.b16 %v1881, %v1873
  %v2794 = vpack.c.b16 %v1882, %v1874
  %v2795 = vpack.c.b16 %v1883, %v1875
  %v2796 = vpack.c.b16 %v1884, %v1876
  %v2797 = vpack.c.b16 %v1885, %v1877
  %v2798 = vpack.c.b16 %v1886, %v1878
  %v2799 = vpack.c.b16 %v1895, %v1887
  %v2800 = vpack.c.b16 %v1896, %v1888
  %v2801 = vpack.c.b16 %v1897, %v1889
  %v2802 = vpack.c.b16 %v1898, %v1890
  %v2803 = vpack.c.b16 %v1899, %v1891
  %v2804 = vpack.c.b16 %v1900, %v1892
  %v2805 = vpack.c.b16 %v1901, %v1893
  %v2806 = vpack.c.b16 %v1902, %v1894
  %v2807 = vpack.c.b16 %v1911, %v1903
  %v2808 = vpack.c.b16 %v1912, %v1904
  %v2809 = vpack.c.b16 %v1913, %v1905
  %v2810 = vpack.c.b16 %v1914, %v1906
  %v2811 = vpack.c.b16 %v1915, %v1907
  %v2812 = vpack.c.b16 %v1916, %v1908
  %v2813 = vpack.c.b16 %v1917, %v1909
  %v2814 = vpack.c.b16 %v1918, %v1910
  %v2815 = vpack.c.b16 %v1927, %v1919
  %v2816 = vpack.c.b16 %v1928, %v1920
  %v2817 = vpack.c.b16 %v1929, %v1921
  %v2818 = vpack.c.b16 %v1930, %v1922
  %v2819 = vpack.c.b16 %v1931, %v1923
  %v2820 = vpack.c.b16 %v1932, %v1924
  %v2821 = vpack.c.b16 %v1933, %v1925
  %v2822 = vpack.c.b16 %v1934, %v1926
  %v2823 = vpack.c.b16 %v1943, %v1935
  %v2824 = vpack.c.b16 %v1944, %v1936
  %v2825 = vpack.c.b16 %v1945, %v1937
  %v2826 = vpack.c.b16 %v1946, %v1938
  %v2827 = vpack.c.b16 %v1947, %v1939
  %v2828 = vpack.c.b16 %v1948, %v1940
  %v2829 = vpack.c.b16 %v1949, %v1941
  %v2830 = vpack.c.b16 %v1950, %v1942
  %v2831 = vpack.c.b16 %v1959, %v1951
  %v2832 = vpack.c.b16 %v1960, %v1952
  %v2833 = vpack.c.b16 %v1961, %v1953
  %v2834 = vpack.c.b16 %v1962, %v1954
  %v2835 = vpack.c.b16 %v1963, %v1955
  %v2836 = vpack.c.b16 %v1964, %v1956
  %v2837 = vpack.c.b16 %v1965, %v1957
  %v2838 = vpack.c.b16 %v1966, %v1958
  %v2839 = vpack.c.b16 %v1975, %v1967
  %v2840 = vpack.c.b16 %v1976, %v1968
  %v2841 = vpack.c.b16 %v1977, %v1969
  %v2842 = vpack.c.b16 %v1978, %v1970
  %v2843 = vpack.c.b16 %v1979, %v1971
  %v2844 = vpack.c.b16 %v1980, %v1972
  %v2845 = vpack.c.b16 %v1981, %v1973
  %v2846 = vpack.c.b16 %v1982, %v1974
  %v2847 = vpack.c.b16 %v1991, %v1983
  %v2848 = vpack.c.b16 %v1992, %v1984
  %v2849 = vpack.c.b16 %v1993, %v1985
  %v2850 = vpack.c.b16 %v1994, %v1986
  %v2851 = vpack.c.b16 %v1995, %v1987
  %v2852 = vpack.c.b16 %v1996, %v1988
  %v2853 = vpack.c.b16 %v1997, %v1989
  %v2854 = vpack.c.b16 %v1998, %v1990
  %v2855 = vpack.c.b16 %v2007, %v1999
  %v2856 = vpack.c.b16 %v2008, %v2000
  %v2857 = vpack.c.b16 %v2009, %v2001
  %v2858 = vpack.c.b16 %v2010, %v2002
  %v2859 = vpack.c.b16 %v2011, %v2003
  %v2860 = vpack.c.b16 %v2012, %v2004
  %v2861 = vpack.c.b16 %v2013, %v2005
  %v2862 = vpack.c.b16 %v2014, %v2006
  %v2863 = vpack.c.b16 %v2023, %v2015
  %v2864 = vpack.c.b16 %v2024, %v2016
  %v2865 = vpack.c.b16 %v2025, %v2017
  %v2866 = vpack.c.b16 %v2026, %v2018
  %v2867 = vpack.c.b16 %v2027, %v2019
  %v2868 = vpack.c.b16 %v2028, %v2020
  %v2869 = vpack.c.b16 %v2029, %v2021
  %v2870 = vpack.c.b16 %v2030, %v2022
  %v2871 = vpack.c.b16 %v2039, %v2031
  %v2872 = vpack.c.b16 %v2040, %v2032
  %v2873 = vpack.c.b16 %v2041, %v2033
  %v2874 = vpack.c.b16 %v2042, %v2034
  %v2875 = vpack.c.b16 %v2043, %v2035
  %v2876 = vpack.c.b16 %v2044, %v2036
  %v2877 = vpack.c.b16 %v2045, %v2037
  %v2878 = vpack.c.b16 %v2046, %v2038
  %v2879 = vpack.c.b16 %v2055, %v2047
  %v2880 = vpack.c.b16 %v2056, %v2048
  %v2881 = vpack.c.b16 %v2057, %v2049
  %v2882 = vpack.c.b16 %v2058, %v2050
  %v2883 = vpack.c.b16 %v2059, %v2051
  %v2884 = vpack.c.b16 %v2060, %v2052
  %v2885 = vpack.c.b16 %v2061, %v2053
  %v2886 = vpack.c.b16 %v2062, %v2054
  %v2887 = vpack.c.b16 %v2071, %v2063
  %v2888 = vpack.c.b16 %v2072, %v2064
  %v2889 = vpack.c.b16 %v2073, %v2065
  %v2890 = vpack.c.b16 %v2074, %v2066
  %v2891 = vpack.c.b16 %v2075, %v2067
  %v2892 = vpack.c.b16 %v2076, %v2068
  %v2893 = vpack.c.b16 %v2077, %v2069
  %v2894 = vpack.c.b16 %v2078, %v2070
  %v2895 = vpack.c.b16 %v2087, %v2079
  %v2896 = vpack.c.b16 %v2088, %v2080
  %v2897 = vpack.c.b16 %v2089, %v2081
  %v2898 = vpack.c.b16 %v2090, %v2082
  %v2899 = vpack.c.b16 %v2091, %v2083
  %v2900 = vpack.c.b16 %v2092, %v2084
  %v2901 = vpack.c.b16 %v2093, %v2085
  %v2902 = vpack.c.b16 %v2094, %v2086
  %v2903 = vpack.c.b16 %v2103, %v2095
  %v2904 = vpack.c.b16 %v2104, %v2096
  %v2905 = vpack.c.b16 %v2105, %v2097
  %v2906 = vpack.c.b16 %v2106, %v2098
  %v2907 = vpack.c.b16 %v2107, %v2099
  %v2908 = vpack.c.b16 %v2108, %v2100
  %v2909 = vpack.c.b16 %v2109, %v2101
  %v2910 = vpack.c.b16 %v2110, %v2102
  %v2911 = vpack.c.b16 %v2119, %v2111
  %v2912 = vpack.c.b16 %v2120, %v2112
  %v2913 = vpack.c.b16 %v2121, %v2113
  %v2914 = vpack.c.b16 %v2122, %v2114
  %v2915 = vpack.c.b16 %v2123, %v2115
  %v2916 = vpack.c.b16 %v2124, %v2116
  %v2917 = vpack.c.b16 %v2125, %v2117
  %v2918 = vpack.c.b16 %v2126, %v2118
  %v2919 = vpack.c.b16 %v2135, %v2127
  %v2920 = vpack.c.b16 %v2136, %v2128
  %v2921 = vpack.c.b16 %v2137, %v2129
  %v2922 = vpack.c.b16 %v2138, %v2130
  %v2923 = vpack.c.b16 %v2139, %v2131
  %v2924 = vpack.c.b16 %v2140, %v2132
  %v2925 = vpack.c.b16 %v2141, %v2133
  %v2926 = vpack.c.b16 %v2142, %v2134
  %v2927 = vpack.c.b16 %v2151, %v2143
  %v2928 = vpack.c.b16 %v2152, %v2144
  %v2929 = vpack.c.b16 %v2153, %v2145
  %v2930 = vpack.c.b16 %v2154, %v2146
  %v2931 = vpack.c.b16 %v2155, %v2147
  %v2932 = vpack.c.b16 %v2156, %v2148
  %v2933 = vpack.c.b16 %v2157, %v2149
  %v2934 = vpack.c.b16 %v2158, %v2150
  %v2935 = vpack.c.b16 %v2167, %v2159
  %v2936 = vpack.c.b16 %v2168, %v2160
  %v2937 = vpack.c.b16 %v2169, %v2161
  %v2938 = vpack.c.b16 %v2170, %v2162
  %v2939 = vpack.c.b16 %v2171, %v2163
  %v2940 = vpack.c.b16 %v2172, %v2164
  %v2941 = vpack.c.b16 %v2173, %v2165
  %v2942 = vpack.c.b16 %v2174, %v2166
  %v2943 = vpack.c.b16 %v2183, %v2175
  %v2944 = vpack.c.b16 %v2184, %v2176
  %v2945 = vpack.c.b16 %v2185, %v2177
  %v2946 = vpack.c.b16 %v2186, %v2178
  %v2947 = vpack.c.b16 %v2187, %v2179
  %v2948 = vpack.c.b16 %v2188, %v2180
  %v2949 = vpack.c.b16 %v2189, %v2181
  %v2950 = vpack.c.b16 %v2190, %v2182
  %v2951 = vpack.c.b16 %v2199, %v2191
  %v2952 = vpack.c.b16 %v2200, %v2192
  %v2953 = vpack.c.b16 %v2201, %v2193
  %v2954 = vpack.c.b16 %v2202, %v2194
  %v2955 = vpack.c.b16 %v2203, %v2195
  %v2956 = vpack.c.b16 %v2204, %v2196
  %v2957 = vpack.c.b16 %v2205, %v2197
  %v2958 = vpack.c.b16 %v2206, %v2198
  %v2959 = vpack.c.b16 %v2215, %v2207
  %v2960 = vpack.c.b16 %v2216, %v2208
  %v2961 = vpack.c.b16 %v2217, %v2209
  %v2962 = vpack.c.b16 %v2218, %v2210
  %v2963 = vpack.c.b16 %v2219, %v2211
  %v2964 = vpack.c.b16 %v2220, %v2212
  %v2965 = vpack.c.b16 %v2221, %v2213
  %v2966 = vpack.c.b16 %v2222, %v2214
  %v2967 = vpack.c.b16 %v2231, %v2223
  %v2968 = vpack.c.b16 %v2232, %v2224
  %v2969 = vpack.c.b16 %v2233, %v2225
  %v2970 = vpack.c.b16 %v2234, %v2226
  %v2971 = vpack.c.b16 %v2235, %v2227
  %v2972 = vpack.c.b16 %v2236, %v2228
  %v2973 = vpack.c.b16 %v2237, %v2229
  %v2974 = vpack.c.b16 %v2238, %v2230
  %v2975 = vpack.c.b16 %v2247, %v2239
  %v2976 = vpack.c.b16 %v2248, %v2240
  %v2977 = vpack.c.b16 %v2249, %v2241
  %v2978 = vpack.c.b16 %v2250, %v2242
  %v2979 = vpack.c.b16 %v2251, %v2243
  %v2980 = vpack.c.b16 %v2252, %v2244
  %v2981 = vpack.c.b16 %v2253, %v2245
  %v2982 = vpack.c.b16 %v2254, %v2246
  %v2983 = vpack.c.b16 %v2263, %v2255
  %v2984 = vpack.c.b16 %v2264, %v2256
  %v2985 = vpack.c.b16 %v2265, %v2257
  %v2986 = vpack.c.b16 %v2266, %v2258
  %v2987 = vpack.c.b16 %v2267, %v2259
  %v2988 = vpack.c.b16 %v2268, %v2260
  %v2989 = vpack.c.b16 %v2269, %v2261
  %v2990 = vpack.c.b16 %v2270, %v2262
  %v2991 = vpack.c.b16 %v2279, %v2271
  %v2992 = vpack.c.b16 %v2280, %v2272
  %v2993 = vpack.c.b16 %v2281, %v2273
  %v2994 = vpack.c.b16 %v2282, %v2274
  %v2995 = vpack.c.b16 %v2283, %v2275
  %v2996 = vpack.c.b16 %v2284, %v2276
  %v2997 = vpack.c.b16 %v2285, %v2277
  %v2998 = vpack.c.b16 %v2286, %v2278
  %v2999 = vpack.c.b16 %v2295, %v2287
  %v3000 = vpack.c.b16 %v2296, %v2288
  %v3001 = vpack.c.b16 %v2297, %v2289
  %v3002 = vpack.c.b16 %v2298, %v2290
  %v3003 = vpack.c.b16 %v2299, %v2291
  %v3004 = vpack.c.b16 %v2300, %v2292
  %v3005 = vpack.c.b16 %v2301, %v2293
  %v3006 = vpack.c.b16 %v2302, %v2294
  %v3007 = vpack.c.b16 %v2311, %v2303
  %v3008 = vpack.c.b16 %v2312, %v2304
  %v3009 = vpack.c.b16 %v2313, %v2305
  %v3010 = vpack.c.b16 %v2314, %v2306
  %v3011 = vpack.c.b16 %v2315, %v2307
  %v3012 = vpack.c.b16 %v2316, %v2308
  %v3013 = vpack.c.b16 %v2317, %v2309
  %v3014 = vpack.c.b16 %v2318, %v2310
  %v3015 = vpack.c.b16 %v2327, %v2319
  %v3016 = vpack.c.b16 %v2328, %v2320
  %v3017 = vpack.c.b16 %v2329, %v2321
  %v3018 = vpack.c.b16 %v2330, %v2322
  %v3019 = vpack.c.b16 %v2331, %v2323
  %v3020 = vpack.c.b16 %v2332, %v2324
  %v3021 = vpack.c.b16 %v2333, %v2325
  %v3022 = vpack.c.b16 %v2334, %v2326
  %v3023 = vpack.c.b16 %v2343, %v2335
  %v3024 = vpack.c.b16 %v2344, %v2336
  %v3025 = vpack.c.b16 %v2345, %v2337
  %v3026 = vpack.c.b16 %v2346, %v2338
  %v3027 = vpack.c.b16 %v2347, %v2339
  %v3028 = vpack.c.b16 %v2348, %v2340
  %v3029 = vpack.c.b16 %v2349, %v2341
  %v3030 = vpack.c.b16 %v2350, %v2342
  %v3031 = vpack.c.b16 %v2359, %v2351
  %v3032 = vpack.c.b16 %v2360, %v2352
  %v3033 = vpack.c.b16 %v2361, %v2353
  %v3034 = vpack.c.b16 %v2362, %v2354
  %v3035 = vpack.c.b16 %v2363, %v2355
  %v3036 = vpack.c.b16 %v2364, %v2356
  %v3037 = vpack.c.b16 %v2365, %v2357
  %v3038 = vpack.c.b16 %v2366, %v2358
  %v3039 = vpack.c.b16 %v2375, %v2367
  %v3040 = vpack.c.b16 %v2376, %v2368
  %v3041 = vpack.c.b16 %v2377, %v2369
  %v3042 = vpack.c.b16 %v2378, %v2370
  %v3043 = vpack.c.b16 %v2379, %v2371
  %v3044 = vpack.c.b16 %v2380, %v2372
  %v3045 = vpack.c.b16 %v2381, %v2373
  %v3046 = vpack.c.b16 %v2382, %v2374
  %v3047 = vpack.c.b16 %v2391, %v2383
  %v3048 = vpack.c.b16 %v2392, %v2384
  %v3049 = vpack.c.b16 %v2393, %v2385
  %v3050 = vpack.c.b16 %v2394, %v2386
  %v3051 = vpack.c.b16 %v2395, %v2387
  %v3052 = vpack.c.b16 %v2396, %v2388
  %v3053 = vpack.c.b16 %v2397, %v2389
  %v3054 = vpack.c.b16 %v2398, %v2390
  %v3055 = vpack.c.b16 %v2407, %v2399
  %v3056 = vpack.c.b16 %v2408, %v2400
  %v3057 = vpack.c.b16 %v2409, %v2401
  %v3058 = vpack.c.b16 %v2410, %v2402
  %v3059 = vpack.c.b16 %v2411, %v2403
  %v3060 = vpack.c.b16 %v2412, %v2404
  %v3061 = vpack.c.b16 %v2413, %v2405
  %v3062 = vpack.c.b16 %v2414, %v2406
  %v3063 = vpack.c.b16 %v2423, %v2415
  %v3064 = vpack.c.b16 %v2424, %v2416
  %v3065 = vpack.c.b16 %v2425, %v2417
  %v3066 = vpack.c.b16 %v2426, %v2418
  %v3067 = vpack.c.b16 %v2427, %v2419
  %v3068 = vpack.c.b16 %v2428, %v2420
  %v3069 = vpack.c.b16 %v2429, %v2421
  %v3070 = vpack.c.b16 %v2430, %v2422
  %v3071 = vpack.c.b16 %v2439, %v2431
  %v3072 = vpack.c.b16 %v2440, %v2432
  %v3073 = vpack.c.b16 %v2441, %v2433
  %v3074 = vpack.c.b16 %v2442, %v2434
  %v3075 = vpack.c.b16 %v2443, %v2435
  %v3076 = vpack.c.b16 %v2444, %v2436
  %v3077 = vpack.c.b16 %v2445, %v2437
  %v3078 = vpack.c.b16 %v2446, %v2438
  %v3079 = vpack.c.b16 %v2455, %v2447
  %v3080 = vpack.c.b16 %v2456, %v2448
  %v3081 = vpack.c.b16 %v2457, %v2449
  %v3082 = vpack.c.b16 %v2458, %v2450
  %v3083 = vpack.c.b16 %v2459, %v2451
  %v3084 = vpack.c.b16 %v2460, %v2452
  %v3085 = vpack.c.b16 %v2461, %v2453
  %v3086 = vpack.c.b16 %v2462, %v2454
  %v3087 = vpack.c.b16 %v2471, %v2463
  %v3088 = vpack.c.b16 %v2472, %v2464
  %v3089 = vpack.c.b16 %v2473, %v2465
  %v3090 = vpack.c.b16 %v2474, %v2466
  %v3091 = vpack.c.b16 %v2475, %v2467
  %v3092 = vpack.c.b16 %v2476, %v2468
  %v3093 = vpack.c.b16 %v2477, %v2469
  %v3094 = vpack.c.b16 %v2478, %v2470
  %v3095 = vpack.c.b16 %v2487, %v2479
  %v3096 = vpack.c.b16 %v2488, %v2480
  %v3097 = vpack.c.b16 %v2489, %v2481
  %v3098 = vpack.c.b16 %v2490, %v2482
  %v3099 = vpack.c.b16 %v2491, %v2483
  %v3100 = vpack.c.b16 %v2492, %v2484
  %v3101 = vpack.c.b16 %v2493, %v2485
  %v3102 = vpack.c.b16 %v2494, %v2486
  %v3103 = vpack.c.b16 %v2503, %v2495
  %v3104 = vpack.c.b16 %v2504, %v2496
  %v3105 = vpack.c.b16 %v2505, %v2497
  %v3106 = vpack.c.b16 %v2506, %v2498
  %v3107 = vpack.c.b16 %v2507, %v2499
  %v3108 = vpack.c.b16 %v2508, %v2500
  %v3109 = vpack.c.b16 %v2509, %v2501
  %v3110 = vpack.c.b16 %v2510, %v2502
  %v3111 = vpack.c.b16 %v2519, %v2511
  %v3112 = vpack.c.b16 %v2520, %v2512
  %v3113 = vpack.c.b16 %v2521, %v2513
  %v3114 = vpack.c.b16 %v2522, %v2514
  %v3115 = vpack.c.b16 %v2523, %v2515
  %v3116 = vpack.c.b16 %v2524, %v2516
  %v3117 = vpack.c.b16 %v2525, %v2517
  %v3118 = vpack.c.b16 %v2526, %v2518
  %v3119 = vpack.c.b16 %v2535, %v2527
  %v3120 = vpack.c.b16 %v2536, %v2528
  %v3121 = vpack.c.b16 %v2537, %v2529
  %v3122 = vpack.c.b16 %v2538, %v2530
  %v3123 = vpack.c.b16 %v2539, %v2531
  %v3124 = vpack.c.b16 %v2540, %v2532
  %v3125 = vpack.c.b16 %v2541, %v2533
  %v3126 = vpack.c.b16 %v2542, %v2534
  %v3127 = vpack.c.b16 %v2551, %v2543
  %v3128 = vpack.c.b16 %v2552, %v2544
  %v3129 = vpack.c.b16 %v2553, %v2545
  %v3130 = vpack.c.b16 %v2554, %v2546
  %v3131 = vpack.c.b16 %v2555, %v2547
  %v3132 = vpack.c.b16 %v2556, %v2548
  %v3133 = vpack.c.b16 %v2557, %v2549
  %v3134 = vpack.c.b16 %v2558, %v2550
  %v3135 = vpack.c.b16 %v2567, %v2559
  %v3136 = vpack.c.b16 %v2568, %v2560
  %v3137 = vpack.c.b16 %v2569, %v2561
  %v3138 = vpack.c.b16 %v2570, %v2562
  %v3139 = vpack.c.b16 %v2571, %v2563
  %v3140 = vpack.c.b16 %v2572, %v2564
  %v3141 = vpack.c.b16 %v2573, %v2565
  %v3142 = vpack.c.b16 %v2574, %v2566
  %v3143 = vpack.c.b16 %v2583, %v2575
  %v3144 = vpack.c.b16 %v2584, %v2576
  %v3145 = vpack.c.b16 %v2585, %v2577
  %v3146 = vpack.c.b16 %v2586, %v2578
  %v3147 = vpack.c.b16 %v2587, %v2579
  %v3148 = vpack.c.b16 %v2588, %v2580
  %v3149 = vpack.c.b16 %v2589, %v2581
  %v3150 = vpack.c.b16 %v2590, %v2582
  %v3151 = vpack.c.b16 %v2599, %v2591
  %v3152 = vpack.c.b16 %v2600, %v2592
  %v3153 = vpack.c.b16 %v2601, %v2593
  %v3154 = vpack.c.b16 %v2602, %v2594
  %v3155 = vpack.c.b16 %v2603, %v2595
  %v3156 = vpack.c.b16 %v2604, %v2596
  %v3157 = vpack.c.b16 %v2605, %v2597
  %v3158 = vpack.c.b16 %v2606, %v2598
  %v3159 = vpack.c.b16 %v2615, %v2607
  %v3160 = vpack.c.b16 %v2616, %v2608
  %v3161 = vpack.c.b16 %v2617, %v2609
  %v3162 = vpack.c.b16 %v2618, %v2610
  %v3163 = vpack.c.b16 %v2619, %v2611
  %v3164 = vpack.c.b16 %v2620, %v2612
  %v3165 = vpack.c.b16 %v2621, %v2613
  %v3166 = vpack.c.b16 %v2622, %v2614
  %v3167 = vpack.c.b16 %v2631, %v2623
  %v3168 = vpack.c.b16 %v2632, %v2624
  %v3169 = vpack.c.b16 %v2633, %v2625
  %v3170 = vpack.c.b16 %v2634, %v2626
  %v3171 = vpack.c.b16 %v2635, %v2627
  %v3172 = vpack.c.b16 %v2636, %v2628
  %v3173 = vpack.c.b16 %v2637, %v2629
  %v3174 = vpack.c.b16 %v2638, %v2630
  %v3175 = vpack.c.b16 %v2647, %v2639
  %v3176 = vpack.c.b16 %v2648, %v2640
  %v3177 = vpack.c.b16 %v2649, %v2641
  %v3178 = vpack.c.b16 %v2650, %v2642
  %v3179 = vpack.c.b16 %v2651, %v2643
  %v3180 = vpack.c.b16 %v2652, %v2644
  %v3181 = vpack.c.b16 %v2653, %v2645
  %v3182 = vpack.c.b16 %v2654, %v2646
  %v3183 = vpack.c.b16 %v2663, %v2655
  %v3184 = vpack.c.b16 %v2664, %v2656
  %v3185 = vpack.c.b16 %v2665, %v2657
  %v3186 = vpack.c.b16 %v2666, %v2658
  %v3187 = vpack.c.b16 %v2667, %v2659
  %v3188 = vpack.c.b16 %v2668, %v2660
  %v3189 = vpack.c.b16 %v2669, %v2661
  %v3190 = vpack.c.b16 %v2670, %v2662
  %v3191 = vpack.c.b16 %v2679, %v2671
  %v3192 = vpack.c.b16 %v2680, %v2672
  %v3193 = vpack.c.b16 %v2681, %v2673
  %v3194 = vpack.c.b16 %v2682, %v2674
  %v3195 = vpack.c.b16 %v2683, %v2675
  %v3196 = vpack.c.b16 %v2684, %v2676
  %v3197 = vpack.c.b16 %v2685, %v2677
  %v3198 = vpack.c.b16 %v2686, %v2678
  %3711 = vmatprep.subr.bf16.mxu0 %v2688
  %3712 = vmatpush1.bf16.msra.mxu0 %v2687
  %3713 = vmatprep.subr.bf16.mxu0 %v2696
  %3714 = vmatpush1.bf16.msra.mxu0 %v2695
  %3715 = vmatprep.subr.bf16.mxu0 %v2704
  %3716 = vmatpush1.bf16.msra.mxu0 %v2703
  %3717 = vmatprep.subr.bf16.mxu0 %v2712
  %3718 = vmatpush1.bf16.msra.mxu0 %v2711
  %3719 = vmatprep.subr.bf16.mxu0 %v2720
  %3720 = vmatpush1.bf16.msra.mxu0 %v2719
  %3721 = vmatprep.subr.bf16.mxu0 %v2728
  %3722 = vmatpush1.bf16.msra.mxu0 %v2727
  %3723 = vmatprep.subr.bf16.mxu0 %v2736
  %3724 = vmatpush1.bf16.msra.mxu0 %v2735
  %3725 = vmatprep.subr.bf16.mxu0 %v2744
  %3726 = vmatpush1.bf16.msra.mxu0 %v2743
  %3727 = vmatprep.subr.bf16.mxu0 %v2752
  %3728 = vmatpush1.bf16.msra.mxu0 %v2751
  %3729 = vmatprep.subr.bf16.mxu0 %v2760
  %3730 = vmatpush1.bf16.msra.mxu0 %v2759
  %3731 = vmatprep.subr.bf16.mxu0 %v2768
  %3732 = vmatpush1.bf16.msra.mxu0 %v2767
  %3733 = vmatprep.subr.bf16.mxu0 %v2776
  %3734 = vmatpush1.bf16.msra.mxu0 %v2775
  %3735 = vmatprep.subr.bf16.mxu0 %v2784
  %3736 = vmatpush1.bf16.msra.mxu0 %v2783
  %3737 = vmatprep.subr.bf16.mxu0 %v2792
  %3738 = vmatpush1.bf16.msra.mxu0 %v2791
  %3739 = vmatprep.subr.bf16.mxu0 %v2800
  %3740 = vmatpush1.bf16.msra.mxu0 %v2799
  %3741 = vmatprep.subr.bf16.mxu0 %v2808
  %3742 = vmatpush1.bf16.msra.mxu0 %v2807
  %3743 = vmatprep.mubr.bf16.mxu0 %v1136
  %3744 = vmatmul.mubr.bf16.gmra.mrb[0].mxu0 %v1135
  %v3745 = vpop.f32.mrb[0].mxu0
  %v3746 = vadd.f32 %v974, %v3745
  %v3747 = vpop.f32.mrb[0].mxu0
  %v3748 = vadd.f32 %v976, %v3747
  %v3749 = vpop.f32.mrb[0].mxu0
  %v3750 = vadd.f32 %v978, %v3749
  %v3751 = vpop.f32.mrb[0].mxu0
  %v3752 = vadd.f32 %v980, %v3751
  %3753 = vdwg.mxu0
  %3754 = vmatprep.subr.bf16.mxu0 %v2816
  %3755 = vmatpush1.bf16.msra.mxu0 %v2815
  %3756 = vmatprep.subr.bf16.mxu0 %v2824
  %3757 = vmatpush1.bf16.msra.mxu0 %v2823
  %3758 = vmatprep.subr.bf16.mxu0 %v2832
  %3759 = vmatpush1.bf16.msra.mxu0 %v2831
  %3760 = vmatprep.subr.bf16.mxu0 %v2840
  %3761 = vmatpush1.bf16.msra.mxu0 %v2839
  %3762 = vmatprep.subr.bf16.mxu0 %v2848
  %3763 = vmatpush1.bf16.msra.mxu0 %v2847
  %3764 = vmatprep.subr.bf16.mxu0 %v2856
  %3765 = vmatpush1.bf16.msra.mxu0 %v2855
  %3766 = vmatprep.subr.bf16.mxu0 %v2864
  %3767 = vmatpush1.bf16.msra.mxu0 %v2863
  %3768 = vmatprep.subr.bf16.mxu0 %v2872
  %3769 = vmatpush1.bf16.msra.mxu0 %v2871
  %3770 = vmatprep.subr.bf16.mxu0 %v2880
  %3771 = vmatpush1.bf16.msra.mxu0 %v2879
  %3772 = vmatprep.subr.bf16.mxu0 %v2888
  %3773 = vmatpush1.bf16.msra.mxu0 %v2887
  %3774 = vmatprep.subr.bf16.mxu0 %v2896
  %3775 = vmatpush1.bf16.msra.mxu0 %v2895
  %3776 = vmatprep.subr.bf16.mxu0 %v2904
  %3777 = vmatpush1.bf16.msra.mxu0 %v2903
  %3778 = vmatprep.subr.bf16.mxu0 %v2912
  %3779 = vmatpush1.bf16.msra.mxu0 %v2911
  %3780 = vmatprep.subr.bf16.mxu0 %v2920
  %3781 = vmatpush1.bf16.msra.mxu0 %v2919
  %3782 = vmatprep.subr.bf16.mxu0 %v2928
  %3783 = vmatpush1.bf16.msra.mxu0 %v2927
  %3784 = vmatprep.subr.bf16.mxu0 %v2936
  %3785 = vmatpush1.bf16.msra.mxu0 %v2935
  %3786 = vmatprep.mubr.bf16.mxu0 %v1138
  %3787 = vmatmul.mubr.bf16.gmra.mrb[0].mxu0 %v1137
  %v3788 = vpop.f32.mrb[0].mxu0
  %v3789 = vadd.f32 %v3746, %v3788
  %v3790 = vpop.f32.mrb[0].mxu0
  %v3791 = vadd.f32 %v3748, %v3790
  %v3792 = vpop.f32.mrb[0].mxu0
  %v3793 = vadd.f32 %v3750, %v3792
  %v3794 = vpop.f32.mrb[0].mxu0
  %v3795 = vadd.f32 %v3752, %v3794
  %3796 = vdwg.mxu0
  %3797 = vmatprep.subr.bf16.mxu0 %v2944
  %3798 = vmatpush1.bf16.msra.mxu0 %v2943
  %3799 = vmatprep.subr.bf16.mxu0 %v2952
  %3800 = vmatpush1.bf16.msra.mxu0 %v2951
  %3801 = vmatprep.subr.bf16.mxu0 %v2960
  %3802 = vmatpush1.bf16.msra.mxu0 %v2959
  %3803 = vmatprep.subr.bf16.mxu0 %v2968
  %3804 = vmatpush1.bf16.msra.mxu0 %v2967
  %3805 = vmatprep.subr.bf16.mxu0 %v2976
  %3806 = vmatpush1.bf16.msra.mxu0 %v2975
  %3807 = vmatprep.subr.bf16.mxu0 %v2984
  %3808 = vmatpush1.bf16.msra.mxu0 %v2983
  %3809 = vmatprep.subr.bf16.mxu0 %v2992
  %3810 = vmatpush1.bf16.msra.mxu0 %v2991
  %3811 = vmatprep.subr.bf16.mxu0 %v3000
  %3812 = vmatpush1.bf16.msra.mxu0 %v2999
  %3813 = vmatprep.subr.bf16.mxu0 %v3008
  %3814 = vmatpush1.bf16.msra.mxu0 %v3007
  %3815 = vmatprep.subr.bf16.mxu0 %v3016
  %3816 = vmatpush1.bf16.msra.mxu0 %v3015
  %3817 = vmatprep.subr.bf16.mxu0 %v3024
  %3818 = vmatpush1.bf16.msra.mxu0 %v3023
  %3819 = vmatprep.subr.bf16.mxu0 %v3032
  %3820 = vmatpush1.bf16.msra.mxu0 %v3031
  %3821 = vmatprep.subr.bf16.mxu0 %v3040
  %3822 = vmatpush1.bf16.msra.mxu0 %v3039
  %3823 = vmatprep.subr.bf16.mxu0 %v3048
  %3824 = vmatpush1.bf16.msra.mxu0 %v3047
  %3825 = vmatprep.subr.bf16.mxu0 %v3056
  %3826 = vmatpush1.bf16.msra.mxu0 %v3055
  %3827 = vmatprep.subr.bf16.mxu0 %v3064
  %3828 = vmatpush1.bf16.msra.mxu0 %v3063
  %3829 = vmatprep.mubr.bf16.mxu0 %v1140
  %3830 = vmatmul.mubr.bf16.gmra.mrb[0].mxu0 %v1139
  %v3831 = vpop.f32.mrb[0].mxu0
  %v3832 = vadd.f32 %v3789, %v3831
  %v3833 = vpop.f32.mrb[0].mxu0
  %v3834 = vadd.f32 %v3791, %v3833
  %v3835 = vpop.f32.mrb[0].mxu0
  %v3836 = vadd.f32 %v3793, %v3835
  %v3837 = vpop.f32.mrb[0].mxu0
  %v3838 = vadd.f32 %v3795, %v3837
  %3839 = vdwg.mxu0
  %3840 = vmatprep.subr.bf16.mxu0 %v3072
  %3841 = vmatpush1.bf16.msra.mxu0 %v3071
  %3842 = vmatprep.subr.bf16.mxu0 %v3080
  %3843 = vmatpush1.bf16.msra.mxu0 %v3079
  %3844 = vmatprep.subr.bf16.mxu0 %v3088
  %3845 = vmatpush1.bf16.msra.mxu0 %v3087
  %3846 = vmatprep.subr.bf16.mxu0 %v3096
  %3847 = vmatpush1.bf16.msra.mxu0 %v3095
  %3848 = vmatprep.subr.bf16.mxu0 %v3104
  %3849 = vmatpush1.bf16.msra.mxu0 %v3103
  %3850 = vmatprep.subr.bf16.mxu0 %v3112
  %3851 = vmatpush1.bf16.msra.mxu0 %v3111
  %3852 = vmatprep.subr.bf16.mxu0 %v3120
  %3853 = vmatpush1.bf16.msra.mxu0 %v3119
  %3854 = vmatprep.subr.bf16.mxu0 %v3128
  %3855 = vmatpush1.bf16.msra.mxu0 %v3127
  %3856 = vmatprep.subr.bf16.mxu0 %v3136
  %3857 = vmatpush1.bf16.msra.mxu0 %v3135
  %3858 = vmatprep.subr.bf16.mxu0 %v3144
  %3859 = vmatpush1.bf16.msra.mxu0 %v3143
  %3860 = vmatprep.subr.bf16.mxu0 %v3152
  %3861 = vmatpush1.bf16.msra.mxu0 %v3151
  %3862 = vmatprep.subr.bf16.mxu0 %v3160
  %3863 = vmatpush1.bf16.msra.mxu0 %v3159
  %3864 = vmatprep.subr.bf16.mxu0 %v3168
  %3865 = vmatpush1.bf16.msra.mxu0 %v3167
  %3866 = vmatprep.subr.bf16.mxu0 %v3176
  %3867 = vmatpush1.bf16.msra.mxu0 %v3175
  %3868 = vmatprep.subr.bf16.mxu0 %v3184
  %3869 = vmatpush1.bf16.msra.mxu0 %v3183
  %3870 = vmatprep.subr.bf16.mxu0 %v3192
  %3871 = vmatpush1.bf16.msra.mxu0 %v3191
  %3872 = vmatprep.mubr.bf16.mxu0 %v1142
  %3873 = vmatmul.mubr.bf16.gmra.mrb[0].mxu0 %v1141
  %v3874 = vpop.f32.mrb[0].mxu0
  %v3875 = vadd.f32 %v3832, %v3874
  %v3876 = vpop.f32.mrb[0].mxu0
  %v3877 = vadd.f32 %v3834, %v3876
  %v3878 = vpop.f32.mrb[0].mxu0
  %v3879 = vadd.f32 %v3836, %v3878
  %v3880 = vpop.f32.mrb[0].mxu0
  %v3881 = vadd.f32 %v3838, %v3880
  %3882 = vdwg.mxu0
  %3883 = vmatprep.subr.bf16.mxu0 %v2690
  %3884 = vmatpush1.bf16.msra.mxu0 %v2689
  %3885 = vmatprep.subr.bf16.mxu0 %v2698
  %3886 = vmatpush1.bf16.msra.mxu0 %v2697
  %3887 = vmatprep.subr.bf16.mxu0 %v2706
  %3888 = vmatpush1.bf16.msra.mxu0 %v2705
  %3889 = vmatprep.subr.bf16.mxu0 %v2714
  %3890 = vmatpush1.bf16.msra.mxu0 %v2713
  %3891 = vmatprep.subr.bf16.mxu0 %v2722
  %3892 = vmatpush1.bf16.msra.mxu0 %v2721
  %3893 = vmatprep.subr.bf16.mxu0 %v2730
  %3894 = vmatpush1.bf16.msra.mxu0 %v2729
  %3895 = vmatprep.subr.bf16.mxu0 %v2738
  %3896 = vmatpush1.bf16.msra.mxu0 %v2737
  %3897 = vmatprep.subr.bf16.mxu0 %v2746
  %3898 = vmatpush1.bf16.msra.mxu0 %v2745
  %3899 = vmatprep.subr.bf16.mxu0 %v2754
  %3900 = vmatpush1.bf16.msra.mxu0 %v2753
  %3901 = vmatprep.subr.bf16.mxu0 %v2762
  %3902 = vmatpush1.bf16.msra.mxu0 %v2761
  %3903 = vmatprep.subr.bf16.mxu0 %v2770
  %3904 = vmatpush1.bf16.msra.mxu0 %v2769
  %3905 = vmatprep.subr.bf16.mxu0 %v2778
  %3906 = vmatpush1.bf16.msra.mxu0 %v2777
  %3907 = vmatprep.subr.bf16.mxu0 %v2786
  %3908 = vmatpush1.bf16.msra.mxu0 %v2785
  %3909 = vmatprep.subr.bf16.mxu0 %v2794
  %3910 = vmatpush1.bf16.msra.mxu0 %v2793
  %3911 = vmatprep.subr.bf16.mxu0 %v2802
  %3912 = vmatpush1.bf16.msra.mxu0 %v2801
  %3913 = vmatprep.subr.bf16.mxu0 %v2810
  %3914 = vmatpush1.bf16.msra.mxu0 %v2809
  %3915 = vmatprep.mubr.bf16.mxu0 %v1136
  %3916 = vmatmul.mubr.bf16.gmra.mrb[0].mxu0 %v1135
  %v3917 = vpop.f32.mrb[0].mxu0
  %v3918 = vadd.f32 %v1017, %v3917
  %v3919 = vpop.f32.mrb[0].mxu0
  %v3920 = vadd.f32 %v1019, %v3919
  %v3921 = vpop.f32.mrb[0].mxu0
  %v3922 = vadd.f32 %v1021, %v3921
  %v3923 = vpop.f32.mrb[0].mxu0
  %v3924 = vadd.f32 %v1023, %v3923
  %3925 = vdwg.mxu0
  %3926 = vmatprep.subr.bf16.mxu0 %v2818
  %3927 = vmatpush1.bf16.msra.mxu0 %v2817
  %3928 = vmatprep.subr.bf16.mxu0 %v2826
  %3929 = vmatpush1.bf16.msra.mxu0 %v2825
  %3930 = vmatprep.subr.bf16.mxu0 %v2834
  %3931 = vmatpush1.bf16.msra.mxu0 %v2833
  %3932 = vmatprep.subr.bf16.mxu0 %v2842
  %3933 = vmatpush1.bf16.msra.mxu0 %v2841
  %3934 = vmatprep.subr.bf16.mxu0 %v2850
  %3935 = vmatpush1.bf16.msra.mxu0 %v2849
  %3936 = vmatprep.subr.bf16.mxu0 %v2858
  %3937 = vmatpush1.bf16.msra.mxu0 %v2857
  %3938 = vmatprep.subr.bf16.mxu0 %v2866
  %3939 = vmatpush1.bf16.msra.mxu0 %v2865
  %3940 = vmatprep.subr.bf16.mxu0 %v2874
  %3941 = vmatpush1.bf16.msra.mxu0 %v2873
  %3942 = vmatprep.subr.bf16.mxu0 %v2882
  %3943 = vmatpush1.bf16.msra.mxu0 %v2881
  %3944 = vmatprep.subr.bf16.mxu0 %v2890
  %3945 = vmatpush1.bf16.msra.mxu0 %v2889
  %3946 = vmatprep.subr.bf16.mxu0 %v2898
  %3947 = vmatpush1.bf16.msra.mxu0 %v2897
  %3948 = vmatprep.subr.bf16.mxu0 %v2906
  %3949 = vmatpush1.bf16.msra.mxu0 %v2905
  %3950 = vmatprep.subr.bf16.mxu0 %v2914
  %3951 = vmatpush1.bf16.msra.mxu0 %v2913
  %3952 = vmatprep.subr.bf16.mxu0 %v2922
  %3953 = vmatpush1.bf16.msra.mxu0 %v2921
  %3954 = vmatprep.subr.bf16.mxu0 %v2930
  %3955 = vmatpush1.bf16.msra.mxu0 %v2929
  %3956 = vmatprep.subr.bf16.mxu0 %v2938
  %3957 = vmatpush1.bf16.msra.mxu0 %v2937
  %3958 = vmatprep.mubr.bf16.mxu0 %v1138
  %3959 = vmatmul.mubr.bf16.gmra.mrb[0].mxu0 %v1137
  %v3960 = vpop.f32.mrb[0].mxu0
  %v3961 = vadd.f32 %v3918, %v3960
  %v3962 = vpop.f32.mrb[0].mxu0
  %v3963 = vadd.f32 %v3920, %v3962
  %v3964 = vpop.f32.mrb[0].mxu0
  %v3965 = vadd.f32 %v3922, %v3964
  %v3966 = vpop.f32.mrb[0].mxu0
  %v3967 = vadd.f32 %v3924, %v3966
  %3968 = vdwg.mxu0
  %3969 = vmatprep.subr.bf16.mxu0 %v2946
  %3970 = vmatpush1.bf16.msra.mxu0 %v2945
  %3971 = vmatprep.subr.bf16.mxu0 %v2954
  %3972 = vmatpush1.bf16.msra.mxu0 %v2953
  %3973 = vmatprep.subr.bf16.mxu0 %v2962
  %3974 = vmatpush1.bf16.msra.mxu0 %v2961
  %3975 = vmatprep.subr.bf16.mxu0 %v2970
  %3976 = vmatpush1.bf16.msra.mxu0 %v2969
  %3977 = vmatprep.subr.bf16.mxu0 %v2978
  %3978 = vmatpush1.bf16.msra.mxu0 %v2977
  %3979 = vmatprep.subr.bf16.mxu0 %v2986
  %3980 = vmatpush1.bf16.msra.mxu0 %v2985
  %3981 = vmatprep.subr.bf16.mxu0 %v2994
  %3982 = vmatpush1.bf16.msra.mxu0 %v2993
  %3983 = vmatprep.subr.bf16.mxu0 %v3002
  %3984 = vmatpush1.bf16.msra.mxu0 %v3001
  %3985 = vmatprep.subr.bf16.mxu0 %v3010
  %3986 = vmatpush1.bf16.msra.mxu0 %v3009
  %3987 = vmatprep.subr.bf16.mxu0 %v3018
  %3988 = vmatpush1.bf16.msra.mxu0 %v3017
  %3989 = vmatprep.subr.bf16.mxu0 %v3026
  %3990 = vmatpush1.bf16.msra.mxu0 %v3025
  %3991 = vmatprep.subr.bf16.mxu0 %v3034
  %3992 = vmatpush1.bf16.msra.mxu0 %v3033
  %3993 = vmatprep.subr.bf16.mxu0 %v3042
  %3994 = vmatpush1.bf16.msra.mxu0 %v3041
  %3995 = vmatprep.subr.bf16.mxu0 %v3050
  %3996 = vmatpush1.bf16.msra.mxu0 %v3049
  %3997 = vmatprep.subr.bf16.mxu0 %v3058
  %3998 = vmatpush1.bf16.msra.mxu0 %v3057
  %3999 = vmatprep.subr.bf16.mxu0 %v3066
  %4000 = vmatpush1.bf16.msra.mxu0 %v3065
  %4001 = vmatprep.mubr.bf16.mxu0 %v1140
  %4002 = vmatmul.mubr.bf16.gmra.mrb[0].mxu0 %v1139
  %v4003 = vpop.f32.mrb[0].mxu0
  %v4004 = vadd.f32 %v3961, %v4003
  %v4005 = vpop.f32.mrb[0].mxu0
  %v4006 = vadd.f32 %v3963, %v4005
  %v4007 = vpop.f32.mrb[0].mxu0
  %v4008 = vadd.f32 %v3965, %v4007
  %v4009 = vpop.f32.mrb[0].mxu0
  %v4010 = vadd.f32 %v3967, %v4009
  %4011 = vdwg.mxu0
  %4012 = vmatprep.subr.bf16.mxu0 %v3074
  %4013 = vmatpush1.bf16.msra.mxu0 %v3073
  %4014 = vmatprep.subr.bf16.mxu0 %v3082
  %4015 = vmatpush1.bf16.msra.mxu0 %v3081
  %4016 = vmatprep.subr.bf16.mxu0 %v3090
  %4017 = vmatpush1.bf16.msra.mxu0 %v3089
  %4018 = vmatprep.subr.bf16.mxu0 %v3098
  %4019 = vmatpush1.bf16.msra.mxu0 %v3097
  %4020 = vmatprep.subr.bf16.mxu0 %v3106
  %4021 = vmatpush1.bf16.msra.mxu0 %v3105
  %4022 = vmatprep.subr.bf16.mxu0 %v3114
  %4023 = vmatpush1.bf16.msra.mxu0 %v3113
  %4024 = vmatprep.subr.bf16.mxu0 %v3122
  %4025 = vmatpush1.bf16.msra.mxu0 %v3121
  %4026 = vmatprep.subr.bf16.mxu0 %v3130
  %4027 = vmatpush1.bf16.msra.mxu0 %v3129
  %4028 = vmatprep.subr.bf16.mxu0 %v3138
  %4029 = vmatpush1.bf16.msra.mxu0 %v3137
  %4030 = vmatprep.subr.bf16.mxu0 %v3146
  %4031 = vmatpush1.bf16.msra.mxu0 %v3145
  %4032 = vmatprep.subr.bf16.mxu0 %v3154
  %4033 = vmatpush1.bf16.msra.mxu0 %v3153
  %4034 = vmatprep.subr.bf16.mxu0 %v3162
  %4035 = vmatpush1.bf16.msra.mxu0 %v3161
  %4036 = vmatprep.subr.bf16.mxu0 %v3170
  %4037 = vmatpush1.bf16.msra.mxu0 %v3169
  %4038 = vmatprep.subr.bf16.mxu0 %v3178
  %4039 = vmatpush1.bf16.msra.mxu0 %v3177
  %4040 = vmatprep.subr.bf16.mxu0 %v3186
  %4041 = vmatpush1.bf16.msra.mxu0 %v3185
  %4042 = vmatprep.subr.bf16.mxu0 %v3194
  %4043 = vmatpush1.bf16.msra.mxu0 %v3193
  %4044 = vmatprep.mubr.bf16.mxu0 %v1142
  %4045 = vmatmul.mubr.bf16.gmra.mrb[0].mxu0 %v1141
  %v4046 = vpop.f32.mrb[0].mxu0
  %v4047 = vadd.f32 %v4004, %v4046
  %v4048 = vpop.f32.mrb[0].mxu0
  %v4049 = vadd.f32 %v4006, %v4048
  %v4050 = vpop.f32.mrb[0].mxu0
  %v4051 = vadd.f32 %v4008, %v4050
  %v4052 = vpop.f32.mrb[0].mxu0
  %v4053 = vadd.f32 %v4010, %v4052
  %4054 = vdwg.mxu0
  %4055 = vmatprep.subr.bf16.mxu0 %v2692
  %4056 = vmatpush1.bf16.msra.mxu0 %v2691
  %4057 = vmatprep.subr.bf16.mxu0 %v2700
  %4058 = vmatpush1.bf16.msra.mxu0 %v2699
  %4059 = vmatprep.subr.bf16.mxu0 %v2708
  %4060 = vmatpush1.bf16.msra.mxu0 %v2707
  %4061 = vmatprep.subr.bf16.mxu0 %v2716
  %4062 = vmatpush1.bf16.msra.mxu0 %v2715
  %4063 = vmatprep.subr.bf16.mxu0 %v2724
  %4064 = vmatpush1.bf16.msra.mxu0 %v2723
  %4065 = vmatprep.subr.bf16.mxu0 %v2732
  %4066 = vmatpush1.bf16.msra.mxu0 %v2731
  %4067 = vmatprep.subr.bf16.mxu0 %v2740
  %4068 = vmatpush1.bf16.msra.mxu0 %v2739
  %4069 = vmatprep.subr.bf16.mxu0 %v2748
  %4070 = vmatpush1.bf16.msra.mxu0 %v2747
  %4071 = vmatprep.subr.bf16.mxu0 %v2756
  %4072 = vmatpush1.bf16.msra.mxu0 %v2755
  %4073 = vmatprep.subr.bf16.mxu0 %v2764
  %4074 = vmatpush1.bf16.msra.mxu0 %v2763
  %4075 = vmatprep.subr.bf16.mxu0 %v2772
  %4076 = vmatpush1.bf16.msra.mxu0 %v2771
  %4077 = vmatprep.subr.bf16.mxu0 %v2780
  %4078 = vmatpush1.bf16.msra.mxu0 %v2779
  %4079 = vmatprep.subr.bf16.mxu0 %v2788
  %4080 = vmatpush1.bf16.msra.mxu0 %v2787
  %4081 = vmatprep.subr.bf16.mxu0 %v2796
  %4082 = vmatpush1.bf16.msra.mxu0 %v2795
  %4083 = vmatprep.subr.bf16.mxu0 %v2804
  %4084 = vmatpush1.bf16.msra.mxu0 %v2803
  %4085 = vmatprep.subr.bf16.mxu0 %v2812
  %4086 = vmatpush1.bf16.msra.mxu0 %v2811
  %4087 = vmatprep.mubr.bf16.mxu0 %v1136
  %4088 = vmatmul.mubr.bf16.gmra.mrb[0].mxu0 %v1135
  %v4089 = vpop.f32.mrb[0].mxu0
  %v4090 = vadd.f32 %v1060, %v4089
  %v4091 = vpop.f32.mrb[0].mxu0
  %v4092 = vadd.f32 %v1062, %v4091
  %v4093 = vpop.f32.mrb[0].mxu0
  %v4094 = vadd.f32 %v1064, %v4093
  %v4095 = vpop.f32.mrb[0].mxu0
  %v4096 = vadd.f32 %v1066, %v4095
  %4097 = vdwg.mxu0
  %4098 = vmatprep.subr.bf16.mxu0 %v2820
  %4099 = vmatpush1.bf16.msra.mxu0 %v2819
  %4100 = vmatprep.subr.bf16.mxu0 %v2828
  %4101 = vmatpush1.bf16.msra.mxu0 %v2827
  %4102 = vmatprep.subr.bf16.mxu0 %v2836
  %4103 = vmatpush1.bf16.msra.mxu0 %v2835
  %4104 = vmatprep.subr.bf16.mxu0 %v2844
  %4105 = vmatpush1.bf16.msra.mxu0 %v2843
  %4106 = vmatprep.subr.bf16.mxu0 %v2852
  %4107 = vmatpush1.bf16.msra.mxu0 %v2851
  %4108 = vmatprep.subr.bf16.mxu0 %v2860
  %4109 = vmatpush1.bf16.msra.mxu0 %v2859
  %4110 = vmatprep.subr.bf16.mxu0 %v2868
  %4111 = vmatpush1.bf16.msra.mxu0 %v2867
  %4112 = vmatprep.subr.bf16.mxu0 %v2876
  %4113 = vmatpush1.bf16.msra.mxu0 %v2875
  %4114 = vmatprep.subr.bf16.mxu0 %v2884
  %4115 = vmatpush1.bf16.msra.mxu0 %v2883
  %4116 = vmatprep.subr.bf16.mxu0 %v2892
  %4117 = vmatpush1.bf16.msra.mxu0 %v2891
  %4118 = vmatprep.subr.bf16.mxu0 %v2900
  %4119 = vmatpush1.bf16.msra.mxu0 %v2899
  %4120 = vmatprep.subr.bf16.mxu0 %v2908
  %4121 = vmatpush1.bf16.msra.mxu0 %v2907
  %4122 = vmatprep.subr.bf16.mxu0 %v2916
  %4123 = vmatpush1.bf16.msra.mxu0 %v2915
  %4124 = vmatprep.subr.bf16.mxu0 %v2924
  %4125 = vmatpush1.bf16.msra.mxu0 %v2923
  %4126 = vmatprep.subr.bf16.mxu0 %v2932
  %4127 = vmatpush1.bf16.msra.mxu0 %v2931
  %4128 = vmatprep.subr.bf16.mxu0 %v2940
  %4129 = vmatpush1.bf16.msra.mxu0 %v2939
  %4130 = vmatprep.mubr.bf16.mxu0 %v1138
  %4131 = vmatmul.mubr.bf16.gmra.mrb[0].mxu0 %v1137
  %v4132 = vpop.f32.mrb[0].mxu0
  %v4133 = vadd.f32 %v4090, %v4132
  %v4134 = vpop.f32.mrb[0].mxu0
  %v4135 = vadd.f32 %v4092, %v4134
  %v4136 = vpop.f32.mrb[0].mxu0
  %v4137 = vadd.f32 %v4094, %v4136
  %v4138 = vpop.f32.mrb[0].mxu0
  %v4139 = vadd.f32 %v4096, %v4138
  %4140 = vdwg.mxu0
  %4141 = vmatprep.subr.bf16.mxu0 %v2948
  %4142 = vmatpush1.bf16.msra.mxu0 %v2947
  %4143 = vmatprep.subr.bf16.mxu0 %v2956
  %4144 = vmatpush1.bf16.msra.mxu0 %v2955
  %4145 = vmatprep.subr.bf16.mxu0 %v2964
  %4146 = vmatpush1.bf16.msra.mxu0 %v2963
  %4147 = vmatprep.subr.bf16.mxu0 %v2972
  %4148 = vmatpush1.bf16.msra.mxu0 %v2971
  %4149 = vmatprep.subr.bf16.mxu0 %v2980
  %4150 = vmatpush1.bf16.msra.mxu0 %v2979
  %4151 = vmatprep.subr.bf16.mxu0 %v2988
  %4152 = vmatpush1.bf16.msra.mxu0 %v2987
  %4153 = vmatprep.subr.bf16.mxu0 %v2996
  %4154 = vmatpush1.bf16.msra.mxu0 %v2995
  %4155 = vmatprep.subr.bf16.mxu0 %v3004
  %4156 = vmatpush1.bf16.msra.mxu0 %v3003
  %4157 = vmatprep.subr.bf16.mxu0 %v3012
  %4158 = vmatpush1.bf16.msra.mxu0 %v3011
  %4159 = vmatprep.subr.bf16.mxu0 %v3020
  %4160 = vmatpush1.bf16.msra.mxu0 %v3019
  %4161 = vmatprep.subr.bf16.mxu0 %v3028
  %4162 = vmatpush1.bf16.msra.mxu0 %v3027
  %4163 = vmatprep.subr.bf16.mxu0 %v3036
  %4164 = vmatpush1.bf16.msra.mxu0 %v3035
  %4165 = vmatprep.subr.bf16.mxu0 %v3044
  %4166 = vmatpush1.bf16.msra.mxu0 %v3043
  %4167 = vmatprep.subr.bf16.mxu0 %v3052
  %4168 = vmatpush1.bf16.msra.mxu0 %v3051
  %4169 = vmatprep.subr.bf16.mxu0 %v3060
  %4170 = vmatpush1.bf16.msra.mxu0 %v3059
  %4171 = vmatprep.subr.bf16.mxu0 %v3068
  %4172 = vmatpush1.bf16.msra.mxu0 %v3067
  %4173 = vmatprep.mubr.bf16.mxu0 %v1140
  %4174 = vmatmul.mubr.bf16.gmra.mrb[0].mxu0 %v1139
  %v4175 = vpop.f32.mrb[0].mxu0
  %v4176 = vadd.f32 %v4133, %v4175
  %v4177 = vpop.f32.mrb[0].mxu0
  %v4178 = vadd.f32 %v4135, %v4177
  %v4179 = vpop.f32.mrb[0].mxu0
  %v4180 = vadd.f32 %v4137, %v4179
  %v4181 = vpop.f32.mrb[0].mxu0
  %v4182 = vadd.f32 %v4139, %v4181
  %4183 = vdwg.mxu0
  %4184 = vmatprep.subr.bf16.mxu0 %v3076
  %4185 = vmatpush1.bf16.msra.mxu0 %v3075
  %4186 = vmatprep.subr.bf16.mxu0 %v3084
  %4187 = vmatpush1.bf16.msra.mxu0 %v3083
  %4188 = vmatprep.subr.bf16.mxu0 %v3092
  %4189 = vmatpush1.bf16.msra.mxu0 %v3091
  %4190 = vmatprep.subr.bf16.mxu0 %v3100
  %4191 = vmatpush1.bf16.msra.mxu0 %v3099
  %4192 = vmatprep.subr.bf16.mxu0 %v3108
  %4193 = vmatpush1.bf16.msra.mxu0 %v3107
  %4194 = vmatprep.subr.bf16.mxu0 %v3116
  %4195 = vmatpush1.bf16.msra.mxu0 %v3115
  %4196 = vmatprep.subr.bf16.mxu0 %v3124
  %4197 = vmatpush1.bf16.msra.mxu0 %v3123
  %4198 = vmatprep.subr.bf16.mxu0 %v3132
  %4199 = vmatpush1.bf16.msra.mxu0 %v3131
  %4200 = vmatprep.subr.bf16.mxu0 %v3140
  %4201 = vmatpush1.bf16.msra.mxu0 %v3139
  %4202 = vmatprep.subr.bf16.mxu0 %v3148
  %4203 = vmatpush1.bf16.msra.mxu0 %v3147
  %4204 = vmatprep.subr.bf16.mxu0 %v3156
  %4205 = vmatpush1.bf16.msra.mxu0 %v3155
  %4206 = vmatprep.subr.bf16.mxu0 %v3164
  %4207 = vmatpush1.bf16.msra.mxu0 %v3163
  %4208 = vmatprep.subr.bf16.mxu0 %v3172
  %4209 = vmatpush1.bf16.msra.mxu0 %v3171
  %4210 = vmatprep.subr.bf16.mxu0 %v3180
  %4211 = vmatpush1.bf16.msra.mxu0 %v3179
  %4212 = vmatprep.subr.bf16.mxu0 %v3188
  %4213 = vmatpush1.bf16.msra.mxu0 %v3187
  %4214 = vmatprep.subr.bf16.mxu0 %v3196
  %4215 = vmatpush1.bf16.msra.mxu0 %v3195
  %4216 = vmatprep.mubr.bf16.mxu0 %v1142
  %4217 = vmatmul.mubr.bf16.gmra.mrb[0].mxu0 %v1141
  %v4218 = vpop.f32.mrb[0].mxu0
  %v4219 = vadd.f32 %v4176, %v4218
  %v4220 = vpop.f32.mrb[0].mxu0
  %v4221 = vadd.f32 %v4178, %v4220
  %v4222 = vpop.f32.mrb[0].mxu0
  %v4223 = vadd.f32 %v4180, %v4222
  %v4224 = vpop.f32.mrb[0].mxu0
  %v4225 = vadd.f32 %v4182, %v4224
  %4226 = vdwg.mxu0
  %4227 = vmatprep.subr.bf16.mxu0 %v2694
  %4228 = vmatpush1.bf16.msra.mxu0 %v2693
  %4229 = vmatprep.subr.bf16.mxu0 %v2702
  %4230 = vmatpush1.bf16.msra.mxu0 %v2701
  %4231 = vmatprep.subr.bf16.mxu0 %v2710
  %4232 = vmatpush1.bf16.msra.mxu0 %v2709
  %4233 = vmatprep.subr.bf16.mxu0 %v2718
  %4234 = vmatpush1.bf16.msra.mxu0 %v2717
  %4235 = vmatprep.subr.bf16.mxu0 %v2726
  %4236 = vmatpush1.bf16.msra.mxu0 %v2725
  %4237 = vmatprep.subr.bf16.mxu0 %v2734
  %4238 = vmatpush1.bf16.msra.mxu0 %v2733
  %4239 = vmatprep.subr.bf16.mxu0 %v2742
  %4240 = vmatpush1.bf16.msra.mxu0 %v2741
  %4241 = vmatprep.subr.bf16.mxu0 %v2750
  %4242 = vmatpush1.bf16.msra.mxu0 %v2749
  %4243 = vmatprep.subr.bf16.mxu0 %v2758
  %4244 = vmatpush1.bf16.msra.mxu0 %v2757
  %4245 = vmatprep.subr.bf16.mxu0 %v2766
  %4246 = vmatpush1.bf16.msra.mxu0 %v2765
  %4247 = vmatprep.subr.bf16.mxu0 %v2774
  %4248 = vmatpush1.bf16.msra.mxu0 %v2773
  %4249 = vmatprep.subr.bf16.mxu0 %v2782
  %4250 = vmatpush1.bf16.msra.mxu0 %v2781
  %4251 = vmatprep.subr.bf16.mxu0 %v2790
  %4252 = vmatpush1.bf16.msra.mxu0 %v2789
  %4253 = vmatprep.subr.bf16.mxu0 %v2798
  %4254 = vmatpush1.bf16.msra.mxu0 %v2797
  %4255 = vmatprep.subr.bf16.mxu0 %v2806
  %4256 = vmatpush1.bf16.msra.mxu0 %v2805
  %4257 = vmatprep.subr.bf16.mxu0 %v2814
  %4258 = vmatpush1.bf16.msra.mxu0 %v2813
  %4259 = vmatprep.mubr.bf16.mxu0 %v1136
  %4260 = vmatmul.mubr.bf16.gmra.mrb[0].mxu0 %v1135
  %v4261 = vpop.f32.mrb[0].mxu0
  %v4262 = vadd.f32 %v1103, %v4261
  %v4263 = vpop.f32.mrb[0].mxu0
  %v4264 = vadd.f32 %v1105, %v4263
  %v4265 = vpop.f32.mrb[0].mxu0
  %v4266 = vadd.f32 %v1107, %v4265
  %v4267 = vpop.f32.mrb[0].mxu0
  %v4268 = vadd.f32 %v1109, %v4267
  %4269 = vdwg.mxu0
  %4270 = vmatprep.subr.bf16.mxu0 %v2822
  %4271 = vmatpush1.bf16.msra.mxu0 %v2821
  %4272 = vmatprep.subr.bf16.mxu0 %v2830
  %4273 = vmatpush1.bf16.msra.mxu0 %v2829
  %4274 = vmatprep.subr.bf16.mxu0 %v2838
  %4275 = vmatpush1.bf16.msra.mxu0 %v2837
  %4276 = vmatprep.subr.bf16.mxu0 %v2846
  %4277 = vmatpush1.bf16.msra.mxu0 %v2845
  %4278 = vmatprep.subr.bf16.mxu0 %v2854
  %4279 = vmatpush1.bf16.msra.mxu0 %v2853
  %4280 = vmatprep.subr.bf16.mxu0 %v2862
  %4281 = vmatpush1.bf16.msra.mxu0 %v2861
  %4282 = vmatprep.subr.bf16.mxu0 %v2870
  %4283 = vmatpush1.bf16.msra.mxu0 %v2869
  %4284 = vmatprep.subr.bf16.mxu0 %v2878
  %4285 = vmatpush1.bf16.msra.mxu0 %v2877
  %4286 = vmatprep.subr.bf16.mxu0 %v2886
  %4287 = vmatpush1.bf16.msra.mxu0 %v2885
  %4288 = vmatprep.subr.bf16.mxu0 %v2894
  %4289 = vmatpush1.bf16.msra.mxu0 %v2893
  %4290 = vmatprep.subr.bf16.mxu0 %v2902
  %4291 = vmatpush1.bf16.msra.mxu0 %v2901
  %4292 = vmatprep.subr.bf16.mxu0 %v2910
  %4293 = vmatpush1.bf16.msra.mxu0 %v2909
  %4294 = vmatprep.subr.bf16.mxu0 %v2918
  %4295 = vmatpush1.bf16.msra.mxu0 %v2917
  %4296 = vmatprep.subr.bf16.mxu0 %v2926
  %4297 = vmatpush1.bf16.msra.mxu0 %v2925
  %4298 = vmatprep.subr.bf16.mxu0 %v2934
  %4299 = vmatpush1.bf16.msra.mxu0 %v2933
  %4300 = vmatprep.subr.bf16.mxu0 %v2942
  %4301 = vmatpush1.bf16.msra.mxu0 %v2941
  %4302 = vmatprep.mubr.bf16.mxu0 %v1138
  %4303 = vmatmul.mubr.bf16.gmra.mrb[0].mxu0 %v1137
  %v4304 = vpop.f32.mrb[0].mxu0
  %v4305 = vadd.f32 %v4262, %v4304
  %v4306 = vpop.f32.mrb[0].mxu0
  %v4307 = vadd.f32 %v4264, %v4306
  %v4308 = vpop.f32.mrb[0].mxu0
  %v4309 = vadd.f32 %v4266, %v4308
  %v4310 = vpop.f32.mrb[0].mxu0
  %v4311 = vadd.f32 %v4268, %v4310
  %4312 = vdwg.mxu0
  %4313 = vmatprep.subr.bf16.mxu0 %v2950
  %4314 = vmatpush1.bf16.msra.mxu0 %v2949
  %4315 = vmatprep.subr.bf16.mxu0 %v2958
  %4316 = vmatpush1.bf16.msra.mxu0 %v2957
  %4317 = vmatprep.subr.bf16.mxu0 %v2966
  %4318 = vmatpush1.bf16.msra.mxu0 %v2965
  %4319 = vmatprep.subr.bf16.mxu0 %v2974
  %4320 = vmatpush1.bf16.msra.mxu0 %v2973
  %4321 = vmatprep.subr.bf16.mxu0 %v2982
  %4322 = vmatpush1.bf16.msra.mxu0 %v2981
  %4323 = vmatprep.subr.bf16.mxu0 %v2990
  %4324 = vmatpush1.bf16.msra.mxu0 %v2989
  %4325 = vmatprep.subr.bf16.mxu0 %v2998
  %4326 = vmatpush1.bf16.msra.mxu0 %v2997
  %4327 = vmatprep.subr.bf16.mxu0 %v3006
  %4328 = vmatpush1.bf16.msra.mxu0 %v3005
  %4329 = vmatprep.subr.bf16.mxu0 %v3014
  %4330 = vmatpush1.bf16.msra.mxu0 %v3013
  %4331 = vmatprep.subr.bf16.mxu0 %v3022
  %4332 = vmatpush1.bf16.msra.mxu0 %v3021
  %4333 = vmatprep.subr.bf16.mxu0 %v3030
  %4334 = vmatpush1.bf16.msra.mxu0 %v3029
  %4335 = vmatprep.subr.bf16.mxu0 %v3038
  %4336 = vmatpush1.bf16.msra.mxu0 %v3037
  %4337 = vmatprep.subr.bf16.mxu0 %v3046
  %4338 = vmatpush1.bf16.msra.mxu0 %v3045
  %4339 = vmatprep.subr.bf16.mxu0 %v3054
  %4340 = vmatpush1.bf16.msra.mxu0 %v3053
  %4341 = vmatprep.subr.bf16.mxu0 %v3062
  %4342 = vmatpush1.bf16.msra.mxu0 %v3061
  %4343 = vmatprep.subr.bf16.mxu0 %v3070
  %4344 = vmatpush1.bf16.msra.mxu0 %v3069
  %4345 = vmatprep.mubr.bf16.mxu0 %v1140
  %4346 = vmatmul.mubr.bf16.gmra.mrb[0].mxu0 %v1139
  %v4347 = vpop.f32.mrb[0].mxu0
  %v4348 = vadd.f32 %v4305, %v4347
  %v4349 = vpop.f32.mrb[0].mxu0
  %v4350 = vadd.f32 %v4307, %v4349
  %v4351 = vpop.f32.mrb[0].mxu0
  %v4352 = vadd.f32 %v4309, %v4351
  %v4353 = vpop.f32.mrb[0].mxu0
  %v4354 = vadd.f32 %v4311, %v4353
  %4355 = vdwg.mxu0
  %4356 = vmatprep.subr.bf16.mxu0 %v3078
  %4357 = vmatpush1.bf16.msra.mxu0 %v3077
  %4358 = vmatprep.subr.bf16.mxu0 %v3086
  %4359 = vmatpush1.bf16.msra.mxu0 %v3085
  %4360 = vmatprep.subr.bf16.mxu0 %v3094
  %4361 = vmatpush1.bf16.msra.mxu0 %v3093
  %4362 = vmatprep.subr.bf16.mxu0 %v3102
  %4363 = vmatpush1.bf16.msra.mxu0 %v3101
  %4364 = vmatprep.subr.bf16.mxu0 %v3110
  %4365 = vmatpush1.bf16.msra.mxu0 %v3109
  %4366 = vmatprep.subr.bf16.mxu0 %v3118
  %4367 = vmatpush1.bf16.msra.mxu0 %v3117
  %4368 = vmatprep.subr.bf16.mxu0 %v3126
  %4369 = vmatpush1.bf16.msra.mxu0 %v3125
  %4370 = vmatprep.subr.bf16.mxu0 %v3134
  %4371 = vmatpush1.bf16.msra.mxu0 %v3133
  %4372 = vmatprep.subr.bf16.mxu0 %v3142
  %4373 = vmatpush1.bf16.msra.mxu0 %v3141
  %4374 = vmatprep.subr.bf16.mxu0 %v3150
  %4375 = vmatpush1.bf16.msra.mxu0 %v3149
  %4376 = vmatprep.subr.bf16.mxu0 %v3158
  %4377 = vmatpush1.bf16.msra.mxu0 %v3157
  %4378 = vmatprep.subr.bf16.mxu0 %v3166
  %4379 = vmatpush1.bf16.msra.mxu0 %v3165
  %4380 = vmatprep.subr.bf16.mxu0 %v3174
  %4381 = vmatpush1.bf16.msra.mxu0 %v3173
  %4382 = vmatprep.subr.bf16.mxu0 %v3182
  %4383 = vmatpush1.bf16.msra.mxu0 %v3181
  %4384 = vmatprep.subr.bf16.mxu0 %v3190
  %4385 = vmatpush1.bf16.msra.mxu0 %v3189
  %4386 = vmatprep.subr.bf16.mxu0 %v3198
  %4387 = vmatpush1.bf16.msra.mxu0 %v3197
  %4388 = vmatprep.mubr.bf16.mxu0 %v1142
  %4389 = vmatmul.mubr.bf16.gmra.mrb[0].mxu0 %v1141
  %v4390 = vpop.f32.mrb[0].mxu0
  %v4391 = vadd.f32 %v4348, %v4390
  %v4392 = vpop.f32.mrb[0].mxu0
  %v4393 = vadd.f32 %v4350, %v4392
  %v4394 = vpop.f32.mrb[0].mxu0
  %v4395 = vadd.f32 %v4352, %v4394
  %v4396 = vpop.f32.mrb[0].mxu0
  %v4397 = vadd.f32 %v4354, %v4396
  %4398 = vdwg.mxu0
  %v4399 = vld [vmem:[%s4] sm:$0xff]
  %v4401 = vlaneseq
  %v4402 = vshrl.u32 %v4401, 7
  %v4403 = vsub.s32 0, %v4402
  %v4404 = vrot.slane %v4399, %v4403
  %v4405 = vlaneseq
  %v4406 = vshrl.u32 %v4405, 7
  %v4407 = vsub.s32 1, %v4406
  %v4408 = vrot.slane %v4399, %v4407
  %v4409 = vlaneseq
  %v4410 = vshrl.u32 %v4409, 7
  %v4411 = vsub.s32 2, %v4410
  %v4412 = vrot.slane %v4399, %v4411
  %v4413 = vlaneseq
  %v4414 = vshrl.u32 %v4413, 7
  %v4415 = vsub.s32 3, %v4414
  %v4416 = vrot.slane %v4399, %v4415
  %v4417 = vlaneseq
  %v4418 = vshrl.u32 %v4417, 7
  %v4419 = vsub.s32 4, %v4418
  %v4420 = vrot.slane %v4399, %v4419
  %v4421 = vlaneseq
  %v4422 = vshrl.u32 %v4421, 7
  %v4423 = vsub.s32 5, %v4422
  %v4424 = vrot.slane %v4399, %v4423
  %v4425 = vlaneseq
  %v4426 = vshrl.u32 %v4425, 7
  %v4427 = vsub.s32 6, %v4426
  %v4428 = vrot.slane %v4399, %v4427
  %v4429 = vlaneseq
  %v4430 = vshrl.u32 %v4429, 7
  %v4431 = vsub.s32 7, %v4430
  %v4432 = vrot.slane %v4399, %v4431
  %v4441 = vadd.f32 %v3875, %v4404
  %v4442 = vadd.f32 %v3877, %v4408
  %v4443 = vadd.f32 %v4047, %v4412
  %v4444 = vadd.f32 %v4049, %v4416
  %v4445 = vadd.f32 %v4219, %v4420
  %v4446 = vadd.f32 %v4221, %v4424
  %v4447 = vadd.f32 %v4391, %v4428
  %v4448 = vadd.f32 %v4393, %v4432
  %v4449 = vadd.f32 %v3879, %v4404
  %v4450 = vadd.f32 %v3881, %v4408
  %v4451 = vadd.f32 %v4051, %v4412
  %v4452 = vadd.f32 %v4053, %v4416
  %v4453 = vadd.f32 %v4223, %v4420
  %v4454 = vadd.f32 %v4225, %v4424
  %v4455 = vadd.f32 %v4395, %v4428
  %v4456 = vadd.f32 %v4397, %v4432
  %v4457 = vtanh.pop %v4441
  %v4458 = vtanh.pop %v4442
  %v4459 = vtanh.pop %v4443
  %v4460 = vtanh.pop %v4444
  %v4461 = vtanh.pop %v4445
  %v4462 = vtanh.pop %v4446
  %v4463 = vtanh.pop %v4447
  %v4464 = vtanh.pop %v4448
  %v4465 = vtanh.pop %v4449
  %v4466 = vtanh.pop %v4450
  %v4467 = vtanh.pop %v4451
  %v4468 = vtanh.pop %v4452
  %v4469 = vtanh.pop %v4453
  %v4470 = vtanh.pop %v4454
  %v4471 = vtanh.pop %v4455
  %v4472 = vtanh.pop %v4456
  %v4473 = vpack.c.bf16 %v4465, %v4457
  %v4474 = vpack.c.bf16 %v4466, %v4458
  %v4475 = vpack.c.bf16 %v4467, %v4459
  %v4476 = vpack.c.bf16 %v4468, %v4460
  %v4477 = vpack.c.bf16 %v4469, %v4461
  %v4478 = vpack.c.bf16 %v4470, %v4462
  %v4479 = vpack.c.bf16 %v4471, %v4463
  %v4480 = vpack.c.bf16 %v4472, %v4464
  %v4481 = vld [vmem:[%s5] sm:$0xf]
  %v4482 = vld [vmem:[%s5 + $0x4] sm:$0xf]
  %v4483 = vld [vmem:[%s5 + $0x8] sm:$0xf]
  %v4484 = vld [vmem:[%s5 + $0xc] sm:$0xf]
  %v4485 = vld [vmem:[%s5 + $0x10] sm:$0xf]
  %v4486 = vld [vmem:[%s5 + $0x14] sm:$0xf]
  %v4487 = vld [vmem:[%s5 + $0x18] sm:$0xf]
  %v4488 = vld [vmem:[%s5 + $0x1c] sm:$0xf]
  %v4489 = vld [vmem:[%s5 + $0x20] sm:$0xf]
  %v4490 = vld [vmem:[%s5 + $0x24] sm:$0xf]
  %v4491 = vld [vmem:[%s5 + $0x28] sm:$0xf]
  %v4492 = vld [vmem:[%s5 + $0x2c] sm:$0xf]
  %v4493 = vld [vmem:[%s5 + $0x30] sm:$0xf]
  %v4494 = vld [vmem:[%s5 + $0x34] sm:$0xf]
  %v4495 = vld [vmem:[%s5 + $0x38] sm:$0xf]
  %v4496 = vld [vmem:[%s5 + $0x3c] sm:$0xf]
  %v4497 = vld [vmem:[%s5 + $0x40] sm:$0xf]
  %v4498 = vld [vmem:[%s5 + $0x44] sm:$0xf]
  %v4499 = vld [vmem:[%s5 + $0x48] sm:$0xf]
  %v4500 = vld [vmem:[%s5 + $0x4c] sm:$0xf]
  %v4501 = vld [vmem:[%s5 + $0x50] sm:$0xf]
  %v4502 = vld [vmem:[%s5 + $0x54] sm:$0xf]
  %v4503 = vld [vmem:[%s5 + $0x58] sm:$0xf]
  %v4504 = vld [vmem:[%s5 + $0x5c] sm:$0xf]
  %v4505 = vld [vmem:[%s5 + $0x60] sm:$0xf]
  %v4506 = vld [vmem:[%s5 + $0x64] sm:$0xf]
  %v4507 = vld [vmem:[%s5 + $0x68] sm:$0xf]
  %v4508 = vld [vmem:[%s5 + $0x6c] sm:$0xf]
  %v4509 = vld [vmem:[%s5 + $0x70] sm:$0xf]
  %v4510 = vld [vmem:[%s5 + $0x74] sm:$0xf]
  %v4511 = vld [vmem:[%s5 + $0x78] sm:$0xf]
  %v4512 = vld [vmem:[%s5 + $0x7c] sm:$0xf]
  %v4513 = vld [vmem:[%s5 + $0x80] sm:$0xf]
  %v4514 = vld [vmem:[%s5 + $0x84] sm:$0xf]
  %v4515 = vld [vmem:[%s5 + $0x88] sm:$0xf]
  %v4516 = vld [vmem:[%s5 + $0x8c] sm:$0xf]
  %v4517 = vld [vmem:[%s5 + $0x90] sm:$0xf]
  %v4518 = vld [vmem:[%s5 + $0x94] sm:$0xf]
  %v4519 = vld [vmem:[%s5 + $0x98] sm:$0xf]
  %v4520 = vld [vmem:[%s5 + $0x9c] sm:$0xf]
  %v4521 = vld [vmem:[%s5 + $0xa0] sm:$0xf]
  %v4522 = vld [vmem:[%s5 + $0xa4] sm:$0xf]
  %v4523 = vld [vmem:[%s5 + $0xa8] sm:$0xf]
  %v4524 = vld [vmem:[%s5 + $0xac] sm:$0xf]
  %v4525 = vld [vmem:[%s5 + $0xb0] sm:$0xf]
  %v4526 = vld [vmem:[%s5 + $0xb4] sm:$0xf]
  %v4527 = vld [vmem:[%s5 + $0xb8] sm:$0xf]
  %v4528 = vld [vmem:[%s5 + $0xbc] sm:$0xf]
  %v4529 = vld [vmem:[%s5 + $0xc0] sm:$0xf]
  %v4530 = vld [vmem:[%s5 + $0xc4] sm:$0xf]
  %v4531 = vld [vmem:[%s5 + $0xc8] sm:$0xf]
  %v4532 = vld [vmem:[%s5 + $0xcc] sm:$0xf]
  %v4533 = vld [vmem:[%s5 + $0xd0] sm:$0xf]
  %v4534 = vld [vmem:[%s5 + $0xd4] sm:$0xf]
  %v4535 = vld [vmem:[%s5 + $0xd8] sm:$0xf]
  %v4536 = vld [vmem:[%s5 + $0xdc] sm:$0xf]
  %v4537 = vld [vmem:[%s5 + $0xe0] sm:$0xf]
  %v4538 = vld [vmem:[%s5 + $0xe4] sm:$0xf]
  %v4539 = vld [vmem:[%s5 + $0xe8] sm:$0xf]
  %v4540 = vld [vmem:[%s5 + $0xec] sm:$0xf]
  %v4541 = vld [vmem:[%s5 + $0xf0] sm:$0xf]
  %v4542 = vld [vmem:[%s5 + $0xf4] sm:$0xf]
  %v4543 = vld [vmem:[%s5 + $0xf8] sm:$0xf]
  %v4544 = vld [vmem:[%s5 + $0xfc] sm:$0xf]
  %v4545 = vld [vmem:[%s5 + $0x100] sm:$0xf]
  %v4546 = vld [vmem:[%s5 + $0x104] sm:$0xf]
  %v4547 = vld [vmem:[%s5 + $0x108] sm:$0xf]
  %v4548 = vld [vmem:[%s5 + $0x10c] sm:$0xf]
  %v4549 = vld [vmem:[%s5 + $0x110] sm:$0xf]
  %v4550 = vld [vmem:[%s5 + $0x114] sm:$0xf]
  %v4551 = vld [vmem:[%s5 + $0x118] sm:$0xf]
  %v4552 = vld [vmem:[%s5 + $0x11c] sm:$0xf]
  %v4553 = vld [vmem:[%s5 + $0x120] sm:$0xf]
  %v4554 = vld [vmem:[%s5 + $0x124] sm:$0xf]
  %v4555 = vld [vmem:[%s5 + $0x128] sm:$0xf]
  %v4556 = vld [vmem:[%s5 + $0x12c] sm:$0xf]
  %v4557 = vld [vmem:[%s5 + $0x130] sm:$0xf]
  %v4558 = vld [vmem:[%s5 + $0x134] sm:$0xf]
  %v4559 = vld [vmem:[%s5 + $0x138] sm:$0xf]
  %v4560 = vld [vmem:[%s5 + $0x13c] sm:$0xf]
  %v4561 = vld [vmem:[%s5 + $0x140] sm:$0xf]
  %v4562 = vld [vmem:[%s5 + $0x144] sm:$0xf]
  %v4563 = vld [vmem:[%s5 + $0x148] sm:$0xf]
  %v4564 = vld [vmem:[%s5 + $0x14c] sm:$0xf]
  %v4565 = vld [vmem:[%s5 + $0x150] sm:$0xf]
  %v4566 = vld [vmem:[%s5 + $0x154] sm:$0xf]
  %v4567 = vld [vmem:[%s5 + $0x158] sm:$0xf]
  %v4568 = vld [vmem:[%s5 + $0x15c] sm:$0xf]
  %v4569 = vld [vmem:[%s5 + $0x160] sm:$0xf]
  %v4570 = vld [vmem:[%s5 + $0x164] sm:$0xf]
  %v4571 = vld [vmem:[%s5 + $0x168] sm:$0xf]
  %v4572 = vld [vmem:[%s5 + $0x16c] sm:$0xf]
  %v4573 = vld [vmem:[%s5 + $0x170] sm:$0xf]
  %v4574 = vld [vmem:[%s5 + $0x174] sm:$0xf]
  %v4575 = vld [vmem:[%s5 + $0x178] sm:$0xf]
  %v4576 = vld [vmem:[%s5 + $0x17c] sm:$0xf]
  %v4577 = vld [vmem:[%s5 + $0x180] sm:$0xf]
  %v4578 = vld [vmem:[%s5 + $0x184] sm:$0xf]
  %v4579 = vld [vmem:[%s5 + $0x188] sm:$0xf]
  %v4580 = vld [vmem:[%s5 + $0x18c] sm:$0xf]
  %v4581 = vld [vmem:[%s5 + $0x190] sm:$0xf]
  %v4582 = vld [vmem:[%s5 + $0x194] sm:$0xf]
  %v4583 = vld [vmem:[%s5 + $0x198] sm:$0xf]
  %v4584 = vld [vmem:[%s5 + $0x19c] sm:$0xf]
  %v4585 = vld [vmem:[%s5 + $0x1a0] sm:$0xf]
  %v4586 = vld [vmem:[%s5 + $0x1a4] sm:$0xf]
  %v4587 = vld [vmem:[%s5 + $0x1a8] sm:$0xf]
  %v4588 = vld [vmem:[%s5 + $0x1ac] sm:$0xf]
  %v4589 = vld [vmem:[%s5 + $0x1b0] sm:$0xf]
  %v4590 = vld [vmem:[%s5 + $0x1b4] sm:$0xf]
  %v4591 = vld [vmem:[%s5 + $0x1b8] sm:$0xf]
  %v4592 = vld [vmem:[%s5 + $0x1bc] sm:$0xf]
  %v4593 = vld [vmem:[%s5 + $0x1c0] sm:$0xf]
  %v4594 = vld [vmem:[%s5 + $0x1c4] sm:$0xf]
  %v4595 = vld [vmem:[%s5 + $0x1c8] sm:$0xf]
  %v4596 = vld [vmem:[%s5 + $0x1cc] sm:$0xf]
  %v4597 = vld [vmem:[%s5 + $0x1d0] sm:$0xf]
  %v4598 = vld [vmem:[%s5 + $0x1d4] sm:$0xf]
  %v4599 = vld [vmem:[%s5 + $0x1d8] sm:$0xf]
  %v4600 = vld [vmem:[%s5 + $0x1dc] sm:$0xf]
  %v4601 = vld [vmem:[%s5 + $0x1e0] sm:$0xf]
  %v4602 = vld [vmem:[%s5 + $0x1e4] sm:$0xf]
  %v4603 = vld [vmem:[%s5 + $0x1e8] sm:$0xf]
  %v4604 = vld [vmem:[%s5 + $0x1ec] sm:$0xf]
  %v4605 = vld [vmem:[%s5 + $0x1f0] sm:$0xf]
  %v4606 = vld [vmem:[%s5 + $0x1f4] sm:$0xf]
  %v4607 = vld [vmem:[%s5 + $0x1f8] sm:$0xf]
  %v4608 = vld [vmem:[%s5 + $0x1fc] sm:$0xf]
  %v4609 = vld [vmem:[%s6] sm:$0x1]
  %v4611 = vlaneseq
  %v4612 = vshrl.u32 %v4611, 7
  %v4613 = vsub.s32 0, %v4612
  %v4614 = vrot.slane %v4609, %v4613
  %v4744 = vunpack.c.l.b16 %v4481
  %v4745 = vunpack.c.l.b16 %v4482
  %v4746 = vunpack.c.l.b16 %v4483
  %v4747 = vunpack.c.l.b16 %v4484
  %v4748 = vunpack.c.l.b16 %v4485
  %v4749 = vunpack.c.l.b16 %v4486
  %v4750 = vunpack.c.l.b16 %v4487
  %v4751 = vunpack.c.l.b16 %v4488
  %v4752 = vunpack.c.l.b16 %v4489
  %v4753 = vunpack.c.l.b16 %v4490
  %v4754 = vunpack.c.l.b16 %v4491
  %v4755 = vunpack.c.l.b16 %v4492
  %v4756 = vunpack.c.l.b16 %v4493
  %v4757 = vunpack.c.l.b16 %v4494
  %v4758 = vunpack.c.l.b16 %v4495
  %v4759 = vunpack.c.l.b16 %v4496
  %v4760 = vunpack.c.l.b16 %v4497
  %v4761 = vunpack.c.l.b16 %v4498
  %v4762 = vunpack.c.l.b16 %v4499
  %v4763 = vunpack.c.l.b16 %v4500
  %v4764 = vunpack.c.l.b16 %v4501
  %v4765 = vunpack.c.l.b16 %v4502
  %v4766 = vunpack.c.l.b16 %v4503
  %v4767 = vunpack.c.l.b16 %v4504
  %v4768 = vunpack.c.l.b16 %v4505
  %v4769 = vunpack.c.l.b16 %v4506
  %v4770 = vunpack.c.l.b16 %v4507
  %v4771 = vunpack.c.l.b16 %v4508
  %v4772 = vunpack.c.l.b16 %v4509
  %v4773 = vunpack.c.l.b16 %v4510
  %v4774 = vunpack.c.l.b16 %v4511
  %v4775 = vunpack.c.l.b16 %v4512
  %v4776 = vunpack.c.l.b16 %v4513
  %v4777 = vunpack.c.l.b16 %v4514
  %v4778 = vunpack.c.l.b16 %v4515
  %v4779 = vunpack.c.l.b16 %v4516
  %v4780 = vunpack.c.l.b16 %v4517
  %v4781 = vunpack.c.l.b16 %v4518
  %v4782 = vunpack.c.l.b16 %v4519
  %v4783 = vunpack.c.l.b16 %v4520
  %v4784 = vunpack.c.l.b16 %v4521
  %v4785 = vunpack.c.l.b16 %v4522
  %v4786 = vunpack.c.l.b16 %v4523
  %v4787 = vunpack.c.l.b16 %v4524
  %v4788 = vunpack.c.l.b16 %v4525
  %v4789 = vunpack.c.l.b16 %v4526
  %v4790 = vunpack.c.l.b16 %v4527
  %v4791 = vunpack.c.l.b16 %v4528
  %v4792 = vunpack.c.l.b16 %v4529
  %v4793 = vunpack.c.l.b16 %v4530
  %v4794 = vunpack.c.l.b16 %v4531
  %v4795 = vunpack.c.l.b16 %v4532
  %v4796 = vunpack.c.l.b16 %v4533
  %v4797 = vunpack.c.l.b16 %v4534
  %v4798 = vunpack.c.l.b16 %v4535
  %v4799 = vunpack.c.l.b16 %v4536
  %v4800 = vunpack.c.l.b16 %v4537
  %v4801 = vunpack.c.l.b16 %v4538
  %v4802 = vunpack.c.l.b16 %v4539
  %v4803 = vunpack.c.l.b16 %v4540
  %v4804 = vunpack.c.l.b16 %v4541
  %v4805 = vunpack.c.l.b16 %v4542
  %v4806 = vunpack.c.l.b16 %v4543
  %v4807 = vunpack.c.l.b16 %v4544
  %v4808 = vunpack.c.l.b16 %v4545
  %v4809 = vunpack.c.l.b16 %v4546
  %v4810 = vunpack.c.l.b16 %v4547
  %v4811 = vunpack.c.l.b16 %v4548
  %v4812 = vunpack.c.l.b16 %v4549
  %v4813 = vunpack.c.l.b16 %v4550
  %v4814 = vunpack.c.l.b16 %v4551
  %v4815 = vunpack.c.l.b16 %v4552
  %v4816 = vunpack.c.l.b16 %v4553
  %v4817 = vunpack.c.l.b16 %v4554
  %v4818 = vunpack.c.l.b16 %v4555
  %v4819 = vunpack.c.l.b16 %v4556
  %v4820 = vunpack.c.l.b16 %v4557
  %v4821 = vunpack.c.l.b16 %v4558
  %v4822 = vunpack.c.l.b16 %v4559
  %v4823 = vunpack.c.l.b16 %v4560
  %v4824 = vunpack.c.l.b16 %v4561
  %v4825 = vunpack.c.l.b16 %v4562
  %v4826 = vunpack.c.l.b16 %v4563
  %v4827 = vunpack.c.l.b16 %v4564
  %v4828 = vunpack.c.l.b16 %v4565
  %v4829 = vunpack.c.l.b16 %v4566
  %v4830 = vunpack.c.l.b16 %v4567
  %v4831 = vunpack.c.l.b16 %v4568
  %v4832 = vunpack.c.l.b16 %v4569
  %v4833 = vunpack.c.l.b16 %v4570
  %v4834 = vunpack.c.l.b16 %v4571
  %v4835 = vunpack.c.l.b16 %v4572
  %v4836 = vunpack.c.l.b16 %v4573
  %v4837 = vunpack.c.l.b16 %v4574
  %v4838 = vunpack.c.l.b16 %v4575
  %v4839 = vunpack.c.l.b16 %v4576
  %v4840 = vunpack.c.l.b16 %v4577
  %v4841 = vunpack.c.l.b16 %v4578
  %v4842 = vunpack.c.l.b16 %v4579
  %v4843 = vunpack.c.l.b16 %v4580
  %v4844 = vunpack.c.l.b16 %v4581
  %v4845 = vunpack.c.l.b16 %v4582
  %v4846 = vunpack.c.l.b16 %v4583
  %v4847 = vunpack.c.l.b16 %v4584
  %v4848 = vunpack.c.l.b16 %v4585
  %v4849 = vunpack.c.l.b16 %v4586
  %v4850 = vunpack.c.l.b16 %v4587
  %v4851 = vunpack.c.l.b16 %v4588
  %v4852 = vunpack.c.l.b16 %v4589
  %v4853 = vunpack.c.l.b16 %v4590
  %v4854 = vunpack.c.l.b16 %v4591
  %v4855 = vunpack.c.l.b16 %v4592
  %v4856 = vunpack.c.l.b16 %v4593
  %v4857 = vunpack.c.l.b16 %v4594
  %v4858 = vunpack.c.l.b16 %v4595
  %v4859 = vunpack.c.l.b16 %v4596
  %v4860 = vunpack.c.l.b16 %v4597
  %v4861 = vunpack.c.l.b16 %v4598
  %v4862 = vunpack.c.l.b16 %v4599
  %v4863 = vunpack.c.l.b16 %v4600
  %v4864 = vunpack.c.l.b16 %v4601
  %v4865 = vunpack.c.l.b16 %v4602
  %v4866 = vunpack.c.l.b16 %v4603
  %v4867 = vunpack.c.l.b16 %v4604
  %v4868 = vunpack.c.l.b16 %v4605
  %v4869 = vunpack.c.l.b16 %v4606
  %v4870 = vunpack.c.l.b16 %v4607
  %v4871 = vunpack.c.l.b16 %v4608
  %v4872 = vpack.c.b16 %v4745, %v4744
  %v4873 = vpack.c.b16 %v4747, %v4746
  %v4874 = vpack.c.b16 %v4749, %v4748
  %v4875 = vpack.c.b16 %v4751, %v4750
  %v4876 = vpack.c.b16 %v4753, %v4752
  %v4877 = vpack.c.b16 %v4755, %v4754
  %v4878 = vpack.c.b16 %v4757, %v4756
  %v4879 = vpack.c.b16 %v4759, %v4758
  %v4880 = vpack.c.b16 %v4761, %v4760
  %v4881 = vpack.c.b16 %v4763, %v4762
  %v4882 = vpack.c.b16 %v4765, %v4764
  %v4883 = vpack.c.b16 %v4767, %v4766
  %v4884 = vpack.c.b16 %v4769, %v4768
  %v4885 = vpack.c.b16 %v4771, %v4770
  %v4886 = vpack.c.b16 %v4773, %v4772
  %v4887 = vpack.c.b16 %v4775, %v4774
  %v4888 = vpack.c.b16 %v4777, %v4776
  %v4889 = vpack.c.b16 %v4779, %v4778
  %v4890 = vpack.c.b16 %v4781, %v4780
  %v4891 = vpack.c.b16 %v4783, %v4782
  %v4892 = vpack.c.b16 %v4785, %v4784
  %v4893 = vpack.c.b16 %v4787, %v4786
  %v4894 = vpack.c.b16 %v4789, %v4788
  %v4895 = vpack.c.b16 %v4791, %v4790
  %v4896 = vpack.c.b16 %v4793, %v4792
  %v4897 = vpack.c.b16 %v4795, %v4794
  %v4898 = vpack.c.b16 %v4797, %v4796
  %v4899 = vpack.c.b16 %v4799, %v4798
  %v4900 = vpack.c.b16 %v4801, %v4800
  %v4901 = vpack.c.b16 %v4803, %v4802
  %v4902 = vpack.c.b16 %v4805, %v4804
  %v4903 = vpack.c.b16 %v4807, %v4806
  %v4904 = vpack.c.b16 %v4809, %v4808
  %v4905 = vpack.c.b16 %v4811, %v4810
  %v4906 = vpack.c.b16 %v4813, %v4812
  %v4907 = vpack.c.b16 %v4815, %v4814
  %v4908 = vpack.c.b16 %v4817, %v4816
  %v4909 = vpack.c.b16 %v4819, %v4818
  %v4910 = vpack.c.b16 %v4821, %v4820
  %v4911 = vpack.c.b16 %v4823, %v4822
  %v4912 = vpack.c.b16 %v4825, %v4824
  %v4913 = vpack.c.b16 %v4827, %v4826
  %v4914 = vpack.c.b16 %v4829, %v4828
  %v4915 = vpack.c.b16 %v4831, %v4830
  %v4916 = vpack.c.b16 %v4833, %v4832
  %v4917 = vpack.c.b16 %v4835, %v4834
  %v4918 = vpack.c.b16 %v4837, %v4836
  %v4919 = vpack.c.b16 %v4839, %v4838
  %v4920 = vpack.c.b16 %v4841, %v4840
  %v4921 = vpack.c.b16 %v4843, %v4842
  %v4922 = vpack.c.b16 %v4845, %v4844
  %v4923 = vpack.c.b16 %v4847, %v4846
  %v4924 = vpack.c.b16 %v4849, %v4848
  %v4925 = vpack.c.b16 %v4851, %v4850
  %v4926 = vpack.c.b16 %v4853, %v4852
  %v4927 = vpack.c.b16 %v4855, %v4854
  %v4928 = vpack.c.b16 %v4857, %v4856
  %v4929 = vpack.c.b16 %v4859, %v4858
  %v4930 = vpack.c.b16 %v4861, %v4860
  %v4931 = vpack.c.b16 %v4863, %v4862
  %v4932 = vpack.c.b16 %v4865, %v4864
  %v4933 = vpack.c.b16 %v4867, %v4866
  %v4934 = vpack.c.b16 %v4869, %v4868
  %v4935 = vpack.c.b16 %v4871, %v4870
  %5000 = vmatprep.subr.bf16.mxu0 0
  %5001 = vmatpush1.bf16.msra.mxu0 %v4872
  %5002 = vmatprep.subr.bf16.mxu0 0
  %5003 = vmatpush1.bf16.msra.mxu0 %v4873
  %5004 = vmatprep.subr.bf16.mxu0 0
  %5005 = vmatpush1.bf16.msra.mxu0 %v4874
  %5006 = vmatprep.subr.bf16.mxu0 0
  %5007 = vmatpush1.bf16.msra.mxu0 %v4875
  %5008 = vmatprep.subr.bf16.mxu0 0
  %5009 = vmatpush1.bf16.msra.mxu0 %v4876
  %5010 = vmatprep.subr.bf16.mxu0 0
  %5011 = vmatpush1.bf16.msra.mxu0 %v4877
  %5012 = vmatprep.subr.bf16.mxu0 0
  %5013 = vmatpush1.bf16.msra.mxu0 %v4878
  %5014 = vmatprep.subr.bf16.mxu0 0
  %5015 = vmatpush1.bf16.msra.mxu0 %v4879
  %5016 = vmatprep.subr.bf16.mxu0 0
  %5017 = vmatpush1.bf16.msra.mxu0 %v4880
  %5018 = vmatprep.subr.bf16.mxu0 0
  %5019 = vmatpush1.bf16.msra.mxu0 %v4881
  %5020 = vmatprep.subr.bf16.mxu0 0
  %5021 = vmatpush1.bf16.msra.mxu0 %v4882
  %5022 = vmatprep.subr.bf16.mxu0 0
  %5023 = vmatpush1.bf16.msra.mxu0 %v4883
  %5024 = vmatprep.subr.bf16.mxu0 0
  %5025 = vmatpush1.bf16.msra.mxu0 %v4884
  %5026 = vmatprep.subr.bf16.mxu0 0
  %5027 = vmatpush1.bf16.msra.mxu0 %v4885
  %5028 = vmatprep.subr.bf16.mxu0 0
  %5029 = vmatpush1.bf16.msra.mxu0 %v4886
  %5030 = vmatprep.subr.bf16.mxu0 0
  %5031 = vmatpush1.bf16.msra.mxu0 %v4887
  %5032 = vmatprep.mubr.bf16.mxu0 %v4474
  %5033 = vmatmul.mubr.bf16.gmra.mrb[0].mxu0 %v4473
  %v5034 = vpop.f32.mrb[0].mxu0
  %v5035 = vadd.f32 %v4614, %v5034
  %v5036 = vpop.f32.mrb[0].mxu0
  %v5037 = vpop.f32.mrb[0].mxu0
  %v5038 = vadd.f32 %v4614, %v5037
  %v5039 = vpop.f32.mrb[0].mxu0
  %5040 = vdwg.mxu0
  %5041 = vmatprep.subr.bf16.mxu0 0
  %5042 = vmatpush1.bf16.msra.mxu0 %v4888
  %5043 = vmatprep.subr.bf16.mxu0 0
  %5044 = vmatpush1.bf16.msra.mxu0 %v4889
  %5045 = vmatprep.subr.bf16.mxu0 0
  %5046 = vmatpush1.bf16.msra.mxu0 %v4890
  %5047 = vmatprep.subr.bf16.mxu0 0
  %5048 = vmatpush1.bf16.msra.mxu0 %v4891
  %5049 = vmatprep.subr.bf16.mxu0 0
  %5050 = vmatpush1.bf16.msra.mxu0 %v4892
  %5051 = vmatprep.subr.bf16.mxu0 0
  %5052 = vmatpush1.bf16.msra.mxu0 %v4893
  %5053 = vmatprep.subr.bf16.mxu0 0
  %5054 = vmatpush1.bf16.msra.mxu0 %v4894
  %5055 = vmatprep.subr.bf16.mxu0 0
  %5056 = vmatpush1.bf16.msra.mxu0 %v4895
  %5057 = vmatprep.subr.bf16.mxu0 0
  %5058 = vmatpush1.bf16.msra.mxu0 %v4896
  %5059 = vmatprep.subr.bf16.mxu0 0
  %5060 = vmatpush1.bf16.msra.mxu0 %v4897
  %5061 = vmatprep.subr.bf16.mxu0 0
  %5062 = vmatpush1.bf16.msra.mxu0 %v4898
  %5063 = vmatprep.subr.bf16.mxu0 0
  %5064 = vmatpush1.bf16.msra.mxu0 %v4899
  %5065 = vmatprep.subr.bf16.mxu0 0
  %5066 = vmatpush1.bf16.msra.mxu0 %v4900
  %5067 = vmatprep.subr.bf16.mxu0 0
  %5068 = vmatpush1.bf16.msra.mxu0 %v4901
  %5069 = vmatprep.subr.bf16.mxu0 0
  %5070 = vmatpush1.bf16.msra.mxu0 %v4902
  %5071 = vmatprep.subr.bf16.mxu0 0
  %5072 = vmatpush1.bf16.msra.mxu0 %v4903
  %5073 = vmatprep.mubr.bf16.mxu0 %v4476
  %5074 = vmatmul.mubr.bf16.gmra.mrb[0].mxu0 %v4475
  %v5075 = vpop.f32.mrb[0].mxu0
  %v5076 = vadd.f32 %v5035, %v5075
  %v5077 = vpop.f32.mrb[0].mxu0
  %v5078 = vpop.f32.mrb[0].mxu0
  %v5079 = vadd.f32 %v5038, %v5078
  %v5080 = vpop.f32.mrb[0].mxu0
  %5081 = vdwg.mxu0
  %5082 = vmatprep.subr.bf16.mxu0 0
  %5083 = vmatpush1.bf16.msra.mxu0 %v4904
  %5084 = vmatprep.subr.bf16.mxu0 0
  %5085 = vmatpush1.bf16.msra.mxu0 %v4905
  %5086 = vmatprep.subr.bf16.mxu0 0
  %5087 = vmatpush1.bf16.msra.mxu0 %v4906
  %5088 = vmatprep.subr.bf16.mxu0 0
  %5089 = vmatpush1.bf16.msra.mxu0 %v4907
  %5090 = vmatprep.subr.bf16.mxu0 0
  %5091 = vmatpush1.bf16.msra.mxu0 %v4908
  %5092 = vmatprep.subr.bf16.mxu0 0
  %5093 = vmatpush1.bf16.msra.mxu0 %v4909
  %5094 = vmatprep.subr.bf16.mxu0 0
  %5095 = vmatpush1.bf16.msra.mxu0 %v4910
  %5096 = vmatprep.subr.bf16.mxu0 0
  %5097 = vmatpush1.bf16.msra.mxu0 %v4911
  %5098 = vmatprep.subr.bf16.mxu0 0
  %5099 = vmatpush1.bf16.msra.mxu0 %v4912
  %5100 = vmatprep.subr.bf16.mxu0 0
  %5101 = vmatpush1.bf16.msra.mxu0 %v4913
  %5102 = vmatprep.subr.bf16.mxu0 0
  %5103 = vmatpush1.bf16.msra.mxu0 %v4914
  %5104 = vmatprep.subr.bf16.mxu0 0
  %5105 = vmatpush1.bf16.msra.mxu0 %v4915
  %5106 = vmatprep.subr.bf16.mxu0 0
  %5107 = vmatpush1.bf16.msra.mxu0 %v4916
  %5108 = vmatprep.subr.bf16.mxu0 0
  %5109 = vmatpush1.bf16.msra.mxu0 %v4917
  %5110 = vmatprep.subr.bf16.mxu0 0
  %5111 = vmatpush1.bf16.msra.mxu0 %v4918
  %5112 = vmatprep.subr.bf16.mxu0 0
  %5113 = vmatpush1.bf16.msra.mxu0 %v4919
  %5114 = vmatprep.mubr.bf16.mxu0 %v4478
  %5115 = vmatmul.mubr.bf16.gmra.mrb[0].mxu0 %v4477
  %v5116 = vpop.f32.mrb[0].mxu0
  %v5117 = vadd.f32 %v5076, %v5116
  %v5118 = vpop.f32.mrb[0].mxu0
  %v5119 = vpop.f32.mrb[0].mxu0
  %v5120 = vadd.f32 %v5079, %v5119
  %v5121 = vpop.f32.mrb[0].mxu0
  %5122 = vdwg.mxu0
  %5123 = vmatprep.subr.bf16.mxu0 0
  %5124 = vmatpush1.bf16.msra.mxu0 %v4920
  %5125 = vmatprep.subr.bf16.mxu0 0
  %5126 = vmatpush1.bf16.msra.mxu0 %v4921
  %5127 = vmatprep.subr.bf16.mxu0 0
  %5128 = vmatpush1.bf16.msra.mxu0 %v4922
  %5129 = vmatprep.subr.bf16.mxu0 0
  %5130 = vmatpush1.bf16.msra.mxu0 %v4923
  %5131 = vmatprep.subr.bf16.mxu0 0
  %5132 = vmatpush1.bf16.msra.mxu0 %v4924
  %5133 = vmatprep.subr.bf16.mxu0 0
  %5134 = vmatpush1.bf16.msra.mxu0 %v4925
  %5135 = vmatprep.subr.bf16.mxu0 0
  %5136 = vmatpush1.bf16.msra.mxu0 %v4926
  %5137 = vmatprep.subr.bf16.mxu0 0
  %5138 = vmatpush1.bf16.msra.mxu0 %v4927
  %5139 = vmatprep.subr.bf16.mxu0 0
  %5140 = vmatpush1.bf16.msra.mxu0 %v4928
  %5141 = vmatprep.subr.bf16.mxu0 0
  %5142 = vmatpush1.bf16.msra.mxu0 %v4929
  %5143 = vmatprep.subr.bf16.mxu0 0
  %5144 = vmatpush1.bf16.msra.mxu0 %v4930
  %5145 = vmatprep.subr.bf16.mxu0 0
  %5146 = vmatpush1.bf16.msra.mxu0 %v4931
  %5147 = vmatprep.subr.bf16.mxu0 0
  %5148 = vmatpush1.bf16.msra.mxu0 %v4932
  %5149 = vmatprep.subr.bf16.mxu0 0
  %5150 = vmatpush1.bf16.msra.mxu0 %v4933
  %5151 = vmatprep.subr.bf16.mxu0 0
  %5152 = vmatpush1.bf16.msra.mxu0 %v4934
  %5153 = vmatprep.subr.bf16.mxu0 0
  %5154 = vmatpush1.bf16.msra.mxu0 %v4935
  %5155 = vmatprep.mubr.bf16.mxu0 %v4480
  %5156 = vmatmul.mubr.bf16.gmra.mrb[0].mxu0 %v4479
  %v5157 = vpop.f32.mrb[0].mxu0
  %v5158 = vadd.f32 %v5117, %v5157
  %v5159 = vpop.f32.mrb[0].mxu0
  %v5160 = vpop.f32.mrb[0].mxu0
  %v5161 = vadd.f32 %v5120, %v5160
  %v5162 = vpop.f32.mrb[0].mxu0
  %5163 = vdwg.mxu0
  %5166 = vrot.lane.b32.xlu0 %v5158, 127
  %v5167 = vpop.permute.xlu0 %5166
  %5168 = vrot.lane.b32.xlu0 %v5161, 127
  %v5169 = vpop.permute.xlu0 %5168
  %v5172 = vsub.f32 %v5158, %v5167
  %v5173 = vsub.f32 %v5161, %v5169
  %v5174 = vmul.f32 %v5172, 1.442695
  %v5175 = vpow.pop %v5174
  %v5176 = vmul.f32 %v5173, 1.442695
  %v5177 = vpow.pop %v5176
  %v5178 = vadd.f32 %v5175, 1.0
  %v5179 = vadd.f32 %v5177, 1.0
  %v5180 = vrcp.pop %v5178
  %v5181 = vrcp.pop %v5179
  %v5182 = vlaneseq
  %v5183 = vand.u32 %v5182, 127
  %vm5184 = vcmp.lt.s32.totalorder %v5183, 2
  %5186 = vset.pattern.permute.xlu0 0
  %5187 = vperm.xlu0 %5186, %v5180
  %v5188 = vpop.permute.xlu0 %5187
  %5191 = vset.pattern.permute.xlu0 0
  %5192 = vperm.xlu0 %5191, %v5181
  %v5193 = vpop.permute.xlu0 %5192
  %5195 = vset.pattern.permute.xlu0 2
  %5196 = vperm.xlu0 %5195, %v5180
  %v5197 = vpop.permute.xlu0 %5196
  %5199 = vset.pattern.permute.xlu0 2
  %5200 = vperm.xlu0 %5199, %v5181
  %v5201 = vpop.permute.xlu0 %5200
  %v5203 = vsel %vm5184, %v5188, %v5197
  %v5204 = vsel %vm5184, %v5193, %v5201
  %vm5205 = vcmp.lt.s32.totalorder %v5183, 0
  %v5206 = vsub.s32 0, %v5183
  %v5207 = vsel %vm5205, %v5206, %v5183
  %v5208 = vshrl.u32 %v5207, 1
  %v5209 = vand.u32 %v5207, 1
  %v5210 = vsub.s32 0, %v5209
  %v5211 = vsel %vm5205, %v5210, %v5209
  %vm5212 = vcmp.ne.s32.totalorder %v5211, 0
  %vm5213 = vcmp.lt.s32.totalorder %v5211, 0
  %vm5214 = vmand %vm5213, %vm5212
  %v5215 = vadd.s32 %v5211, 2
  %v5216 = vsel %vm5214, %v5215, %v5211
  %vm5217 = vcmp.eq.s32.totalorder %v5216, 1
  %v5218 = vsub.f32 1.0, %v5203
  %v5219 = vsub.f32 1.0, %v5204
  %v5220 = vsel %vm5217, %v5203, %v5218
  %v5221 = vsel %vm5217, %v5204, %v5219
  %vm5222 = vcmask 31744
  %5223 = vst.msk [vmem:[%s7] sm:$0xff] %vm5222, %v5220
  %5224 = vst.msk [vmem:[%s7 + $0x8] sm:$0xff] %vm5222, %v5221
  // Predicated region
  $region30: #{mrc_head_pallas.1} parent=0 // pred_check
    _
  $region31: #{mrc_head_pallas.1} parent=0 // pred_check_branch
    %5226 = sbr.rel (0) target = $region33
  $region32: #{mrc_head_pallas.1} parent=0 // pred_region
    _
  $region33: #{mrc_head_pallas.1} parent=0 // pred_fallthru
    _
  // Predicated region
  $region34: #{mrc_head_pallas.1} parent=0 // pred_check
    _
  $region35: #{mrc_head_pallas.1} parent=0 // pred_check_branch
    %5228 = sbr.rel (0) target = $region37
  $region36: #{mrc_head_pallas.1} parent=0 // pred_region
    _
  $region37: #{mrc_head_pallas.1} parent=0 // pred_fallthru
    _

</llo_original>
